<compile_context>
chip_gen: v5e
topology: v5e:2x2
jax: 0.10.0
libtpu: 0.0.40
codegen_flags: <defaults>
</compile_context>

<pallas_src>
import jax
import jax.numpy as jnp
from jax.experimental import pallas as pl
from jax.experimental.pallas import tpu as pltpu


# ----------------------------- fused Pallas kernel ----------------------------
def fused_model_kernel(enc_ids, dec_ids,                       # SMEM (scalar prefetch)
                       enc_emb, dec_emb,                       # (V, D) tables
                       enc_wih, enc_whh, enc_bih, enc_bhh,     # encoder GRU
                       dec_wih, dec_whh, dec_bih, dec_bhh,     # decoder GRU
                       fc_w, fc_b,                             # head
                       out_ref,                                # (B, O)
                       tab_s,                                  # VMEM (V, D)
                       xemb_s,                                 # VMEM (T*B, D)
                       dec_acc_s):                             # VMEM (B, T*H)
    B, T = enc_ids.shape
    V, D = enc_emb.shape
    H = enc_whh.shape[0]

    def gather_embed(emb_ref, ids_ref):
        """max_norm=1.0 renorm of the table + per-token row gather (time-major)."""
        tab = emb_ref[...]                                             # (V, D)
        norm = jnp.sqrt(jnp.sum(tab * tab, axis=-1, keepdims=True))    # (V, 1)
        scale = jnp.where(norm > 1.0, 1.0 / (norm + 1e-7), 1.0)
        tab_s[...] = tab * scale
        for t in range(T):                 # static loops: B*T tiny row copies
            for b in range(B):
                idx = ids_ref[b, t]                                    # SMEM scalar
                xemb_s[pl.ds(t * B + b, 1), :] = tab_s[pl.ds(idx, 1), :]

    def gru(gi_all, whh_ref, bhh_ref, h0, collect):
        """gi_all: (T*B, 3H) precomputed input-side gates (hoisted matmul)."""
        h = h0
        for t in range(T):
            gi = gi_all[t * B:(t + 1) * B, :]                          # (B, 3H)
            gh = jnp.dot(h, whh_ref[...],
                         preferred_element_type=jnp.float32) + bhh_ref[...]
            r = jax.nn.sigmoid(gi[:, 0:H] + gh[:, 0:H])
            z = jax.nn.sigmoid(gi[:, H:2 * H] + gh[:, H:2 * H])
            n = jnp.tanh(gi[:, 2 * H:3 * H] + r * gh[:, 2 * H:3 * H])
            h = (1.0 - z) * n + z * h
            if collect:
                # lane-dense accumulation, already in reshape(B, T*H) layout
                dec_acc_s[:, pl.ds(t * H, H)] = h
        return h

    # ---------------- encoder: embed -> GRU, keep only final hidden ----------
    gather_embed(enc_emb, enc_ids)
    gi_enc = jnp.dot(xemb_s[...], enc_wih[...],
                     preferred_element_type=jnp.float32) + enc_bih[...]
    h_enc = gru(gi_enc, enc_whh, enc_bhh,
                jnp.zeros((B, H), jnp.float32), collect=False)

    # ---------------- decoder: embed -> GRU (init = encoder state) -----------
    gather_embed(dec_emb, dec_ids)
    gi_dec = jnp.dot(xemb_s[...], dec_wih[...],
                     preferred_element_type=jnp.float32) + dec_bih[...]
    gru(gi_dec, dec_whh, dec_bhh, h_enc, collect=True)

    # ---------------- head: Linear(T*H -> O) on the VMEM-resident states -----
    out_ref[...] = (jnp.dot(dec_acc_s[...], fc_w[...],
                            preferred_element_type=jnp.float32) + fc_b[...])


def fused_forward(enc_ids, dec_ids, params):
    """One pallas_call for the whole ModelV1 forward. ids: int32 (B, T)."""
    B, T = enc_ids.shape
    V, D = params["enc_emb"].shape
    H = params["enc_w_hh_t"].shape[0]
    O = params["fc_w_t"].shape[1]

    def full_spec(shape):
        nd = len(shape)
        return pl.BlockSpec(shape, lambda i, *_: (0,) * nd)

    array_args = [
        params["enc_emb"], params["dec_emb"],
        params["enc_w_ih_t"], params["enc_w_hh_t"],
        params["enc_b_ih"], params["enc_b_hh"],
        params["dec_w_ih_t"], params["dec_w_hh_t"],
        params["dec_b_ih"], params["dec_b_hh"],
        params["fc_w_t"], params["fc_b"],
    ]

    return pl.pallas_call(
        fused_model_kernel,
        out_shape=jax.ShapeDtypeStruct((B, O), jnp.float32),
        grid_spec=pltpu.PrefetchScalarGridSpec(
            num_scalar_prefetch=2,            # enc_ids, dec_ids -> SMEM
            grid=(1,),
            in_specs=[full_spec(a.shape) for a in array_args],
            out_specs=full_spec((B, O)),
            scratch_shapes=[
                pltpu.VMEM((V, D), jnp.float32),       # renormed embedding table
                pltpu.VMEM((T * B, D), jnp.float32),   # time-major embedded tokens
                pltpu.VMEM((B, T * H), jnp.float32),   # lane-dense decoder states
            ]),
        compiler_params=pltpu.CompilerParams(
            dimension_semantics=("arbitrary",)),
    )(enc_ids, dec_ids, *array_args)


# ----------------------------- params / wrapper --------------------------------
def init_params(key, vocab_len, input_size, hidden_size, out_dim):
    ks = jax.random.split(key, 12)
    D, H = input_size, hidden_size
    s_gru = 1.0 / jnp.sqrt(H)
    s_fc = 1.0 / jnp.sqrt(D * H)
    u = lambda k, shp, s: jax.random.uniform(k, shp, jnp.float32, -s, s)
    return {
        "enc_emb": jax.random.normal(ks[0], (vocab_len, D), jnp.float32),
        "dec_emb": jax.random.normal(ks[1], (vocab_len, D), jnp.float32),
        # encoder GRU (stored already transposed for the kernel)
        "enc_w_ih_t": u(ks[2], (D, 3 * H), s_gru),
        "enc_w_hh_t": u(ks[3], (H, 3 * H), s_gru),
        "enc_b_ih": u(ks[4], (1, 3 * H), s_gru),
        "enc_b_hh": u(ks[5], (1, 3 * H), s_gru),
        # decoder GRU
        "dec_w_ih_t": u(ks[6], (D, 3 * H), s_gru),
        "dec_w_hh_t": u(ks[7], (H, 3 * H), s_gru),
        "dec_b_ih": u(ks[8], (1, 3 * H), s_gru),
        "dec_b_hh": u(ks[9], (1, 3 * H), s_gru),
        # decoder_fc: Linear(input_size*hidden_size, out_dim)
        "fc_w_t": u(ks[10], (D * H, out_dim), s_fc),
        "fc_b": u(ks[11], (1, out_dim), s_fc),
    }


def model_v1_forward(params, x, y=None, teacher_force=False):
    """Reproduces ModelV1.forward.  x: int32 (B, T) with T == input_size.

    TODO(synk): torch decides teacher forcing with `random() > 0.5` at runtime;
    here it is an explicit deterministic flag.
    TODO(synk): torch's nn.Embedding(max_norm=...) renormalizes the weight
    tensor in place (affects later calls / gradients); we only renormalize the
    rows used in this forward, which matches the forward-pass output.
    """
    dec_ids = y if (teacher_force and y is not None) else x
    out = fused_forward(x.astype(jnp.int32), dec_ids.astype(jnp.int32), params)
    return out, y


if __name__ == "__main__":
    # small shapes consistent with the module: seq_len must equal input_size
    INPUT_SIZE = 8      # == seq_len
    HIDDEN = 32
    VOCAB = 16
    OUT_DIM = 10
    BATCH = 2

    key = jax.random.PRNGKey(0)
    k_par, k_x = jax.random.split(key)
    params = init_params(k_par, VOCAB, INPUT_SIZE, HIDDEN, OUT_DIM)
    x = jax.random.randint(k_x, (BATCH, INPUT_SIZE), 0, VOCAB, dtype=jnp.int32)

    out, y_ret = model_v1_forward(params, x, y=None)
    out = jax.block_until_ready(out)
    assert out.shape == (BATCH, OUT_DIM) and out.dtype == jnp.float32
    assert y_ret is None
    print("KERNEL_OK")
</pallas_src>

<mosaic_0001>
module attributes {stable_mosaic.version = 11 : i64} {
  func.func @fused_model_kernel(%arg0: i32, %arg1: memref<2x8xi32, #tpu.memory_space<smem>>, %arg2: memref<2x8xi32, #tpu.memory_space<smem>>, %arg3: memref<16x8xf32, #tpu.memory_space<vmem>>, %arg4: memref<16x8xf32, #tpu.memory_space<vmem>>, %arg5: memref<8x96xf32, #tpu.memory_space<vmem>>, %arg6: memref<32x96xf32, #tpu.memory_space<vmem>>, %arg7: memref<1x96xf32, #tpu.memory_space<vmem>>, %arg8: memref<1x96xf32, #tpu.memory_space<vmem>>, %arg9: memref<8x96xf32, #tpu.memory_space<vmem>>, %arg10: memref<32x96xf32, #tpu.memory_space<vmem>>, %arg11: memref<1x96xf32, #tpu.memory_space<vmem>>, %arg12: memref<1x96xf32, #tpu.memory_space<vmem>>, %arg13: memref<256x10xf32, #tpu.memory_space<vmem>>, %arg14: memref<1x10xf32, #tpu.memory_space<vmem>>, %arg15: memref<2x10xf32, #tpu.memory_space<vmem>>, %arg16: memref<16x8xf32, #tpu.memory_space<vmem>>, %arg17: memref<16x8xf32, #tpu.memory_space<vmem>>, %arg18: memref<2x256xf32, #tpu.memory_space<vmem>>) attributes {dimension_semantics = [#tpu.dimension_semantics<arbitrary>], iteration_bounds = array<i64: 1>, scalar_prefetch = 2 : i64, scratch_operands = 3 : i64, tpu.core_type = #tpu.core_type<tc>, window_params = [{pipeline_mode = #tpu.pipeline_mode<synchronous>, transform_indices = @transform_0, window_bounds = array<i64: 16, 8>}, {pipeline_mode = #tpu.pipeline_mode<synchronous>, transform_indices = @transform_1, window_bounds = array<i64: 16, 8>}, {pipeline_mode = #tpu.pipeline_mode<synchronous>, transform_indices = @transform_2, window_bounds = array<i64: 8, 96>}, {pipeline_mode = #tpu.pipeline_mode<synchronous>, transform_indices = @transform_3, window_bounds = array<i64: 32, 96>}, {pipeline_mode = #tpu.pipeline_mode<synchronous>, transform_indices = @transform_4, window_bounds = array<i64: 1, 96>}, {pipeline_mode = #tpu.pipeline_mode<synchronous>, transform_indices = @transform_5, window_bounds = array<i64: 1, 96>}, {pipeline_mode = #tpu.pipeline_mode<synchronous>, transform_indices = @transform_6, window_bounds = array<i64: 8, 96>}, {pipeline_mode = #tpu.pipeline_mode<synchronous>, transform_indices = @transform_7, window_bounds = array<i64: 32, 96>}, {pipeline_mode = #tpu.pipeline_mode<synchronous>, transform_indices = @transform_8, window_bounds = array<i64: 1, 96>}, {pipeline_mode = #tpu.pipeline_mode<synchronous>, transform_indices = @transform_9, window_bounds = array<i64: 1, 96>}, {pipeline_mode = #tpu.pipeline_mode<synchronous>, transform_indices = @transform_10, window_bounds = array<i64: 256, 10>}, {pipeline_mode = #tpu.pipeline_mode<synchronous>, transform_indices = @transform_11, window_bounds = array<i64: 1, 10>}, {pipeline_mode = #tpu.pipeline_mode<synchronous>, transform_indices = @transform_12, window_bounds = array<i64: 2, 10>}]} {
    %c0 = arith.constant 0 : index
    %c0_0 = arith.constant 0 : index
    %0 = vector.load %arg3[%c0, %c0_0] : memref<16x8xf32, #tpu.memory_space<vmem>>, vector<16x8xf32>
    %1 = arith.mulf %0, %0 : vector<16x8xf32>
    %cst = arith.constant dense<0.000000e+00> : vector<16xf32>
    %2 = vector.multi_reduction <add>, %1, %cst [1] : vector<16x8xf32> to vector<16xf32>
    %3 = vector.shape_cast %2 : vector<16xf32> to vector<16x1xf32>
    %4 = math.sqrt %3 : vector<16x1xf32>
    %cst_1 = arith.constant 1.000000e+00 : f32
    %5 = vector.broadcast %cst_1 : f32 to vector<16x1xf32>
    %6 = arith.cmpf ogt, %4, %5 : vector<16x1xf32>
    %cst_2 = arith.constant 1.000000e-07 : f32
    %7 = vector.broadcast %cst_2 : f32 to vector<16x1xf32>
    %8 = arith.addf %4, %7 : vector<16x1xf32>
    %cst_3 = arith.constant 1.000000e+00 : f32
    %9 = vector.broadcast %cst_3 : f32 to vector<16x1xf32>
    %10 = arith.divf %9, %8 : vector<16x1xf32>
    %cst_4 = arith.constant 1.000000e+00 : f32
    %11 = vector.broadcast %cst_4 : f32 to vector<16x1xf32>
    %12 = arith.select %6, %10, %11 : vector<16x1xi1>, vector<16x1xf32>
    %13 = vector.broadcast %12 : vector<16x1xf32> to vector<16x8xf32>
    %14 = arith.mulf %0, %13 : vector<16x8xf32>
    %c0_5 = arith.constant 0 : index
    %c0_6 = arith.constant 0 : index
    %15 = vector.load %arg16[%c0_5, %c0_6] : memref<16x8xf32, #tpu.memory_space<vmem>>, vector<16x8xf32>
    tpu.vector_store %arg16[%c0_5, %c0_6], %14 {strides = array<i32>} : memref<16x8xf32, #tpu.memory_space<vmem>>, vector<16x8xf32>,
    %c0_7 = arith.constant 0 : index
    %c0_8 = arith.constant 0 : index
    %16 = memref.load %arg1[%c0_7, %c0_8] : memref<2x8xi32, #tpu.memory_space<smem>>
    %17 = arith.index_cast %16 : i32 to index
    %c0_9 = arith.constant 0 : index
    %18 = vector.load %arg16[%17, %c0_9] : memref<16x8xf32, #tpu.memory_space<vmem>>, vector<1x8xf32>
    %c0_10 = arith.constant 0 : index
    %c0_11 = arith.constant 0 : index
    %19 = vector.load %arg17[%c0_10, %c0_11] : memref<16x8xf32, #tpu.memory_space<vmem>>, vector<1x8xf32>
    tpu.vector_store %arg17[%c0_10, %c0_11], %18 {strides = array<i32>} : memref<16x8xf32, #tpu.memory_space<vmem>>, vector<1x8xf32>,
    %c1 = arith.constant 1 : index
    %c0_12 = arith.constant 0 : index
    %20 = memref.load %arg1[%c1, %c0_12] : memref<2x8xi32, #tpu.memory_space<smem>>
    %21 = arith.index_cast %20 : i32 to index
    %c0_13 = arith.constant 0 : index
    %22 = vector.load %arg16[%21, %c0_13] : memref<16x8xf32, #tpu.memory_space<vmem>>, vector<1x8xf32>
    %c1_14 = arith.constant 1 : index
    %c0_15 = arith.constant 0 : index
    %23 = vector.load %arg17[%c1_14, %c0_15] : memref<16x8xf32, #tpu.memory_space<vmem>>, vector<1x8xf32>
    tpu.vector_store %arg17[%c1_14, %c0_15], %22 {strides = array<i32>} : memref<16x8xf32, #tpu.memory_space<vmem>>, vector<1x8xf32>,
    %c0_16 = arith.constant 0 : index
    %c1_17 = arith.constant 1 : index
    %24 = memref.load %arg1[%c0_16, %c1_17] : memref<2x8xi32, #tpu.memory_space<smem>>
    %25 = arith.index_cast %24 : i32 to index
    %c0_18 = arith.constant 0 : index
    %26 = vector.load %arg16[%25, %c0_18] : memref<16x8xf32, #tpu.memory_space<vmem>>, vector<1x8xf32>
    %c2 = arith.constant 2 : index
    %c0_19 = arith.constant 0 : index
    %27 = vector.load %arg17[%c2, %c0_19] : memref<16x8xf32, #tpu.memory_space<vmem>>, vector<1x8xf32>
    tpu.vector_store %arg17[%c2, %c0_19], %26 {strides = array<i32>} : memref<16x8xf32, #tpu.memory_space<vmem>>, vector<1x8xf32>,
    %c1_20 = arith.constant 1 : index
    %c1_21 = arith.constant 1 : index
    %28 = memref.load %arg1[%c1_20, %c1_21] : memref<2x8xi32, #tpu.memory_space<smem>>
    %29 = arith.index_cast %28 : i32 to index
    %c0_22 = arith.constant 0 : index
    %30 = vector.load %arg16[%29, %c0_22] : memref<16x8xf32, #tpu.memory_space<vmem>>, vector<1x8xf32>
    %c3 = arith.constant 3 : index
    %c0_23 = arith.constant 0 : index
    %31 = vector.load %arg17[%c3, %c0_23] : memref<16x8xf32, #tpu.memory_space<vmem>>, vector<1x8xf32>
    tpu.vector_store %arg17[%c3, %c0_23], %30 {strides = array<i32>} : memref<16x8xf32, #tpu.memory_space<vmem>>, vector<1x8xf32>,
    %c0_24 = arith.constant 0 : index
    %c2_25 = arith.constant 2 : index
    %32 = memref.load %arg1[%c0_24, %c2_25] : memref<2x8xi32, #tpu.memory_space<smem>>
    %33 = arith.index_cast %32 : i32 to index
    %c0_26 = arith.constant 0 : index
    %34 = vector.load %arg16[%33, %c0_26] : memref<16x8xf32, #tpu.memory_space<vmem>>, vector<1x8xf32>
    %c4 = arith.constant 4 : index
    %c0_27 = arith.constant 0 : index
    %35 = vector.load %arg17[%c4, %c0_27] : memref<16x8xf32, #tpu.memory_space<vmem>>, vector<1x8xf32>
    tpu.vector_store %arg17[%c4, %c0_27], %34 {strides = array<i32>} : memref<16x8xf32, #tpu.memory_space<vmem>>, vector<1x8xf32>,
    %c1_28 = arith.constant 1 : index
    %c2_29 = arith.constant 2 : index
    %36 = memref.load %arg1[%c1_28, %c2_29] : memref<2x8xi32, #tpu.memory_space<smem>>
    %37 = arith.index_cast %36 : i32 to index
    %c0_30 = arith.constant 0 : index
    %38 = vector.load %arg16[%37, %c0_30] : memref<16x8xf32, #tpu.memory_space<vmem>>, vector<1x8xf32>
    %c5 = arith.constant 5 : index
    %c0_31 = arith.constant 0 : index
    %39 = vector.load %arg17[%c5, %c0_31] : memref<16x8xf32, #tpu.memory_space<vmem>>, vector<1x8xf32>
    tpu.vector_store %arg17[%c5, %c0_31], %38 {strides = array<i32>} : memref<16x8xf32, #tpu.memory_space<vmem>>, vector<1x8xf32>,
    %c0_32 = arith.constant 0 : index
    %c3_33 = arith.constant 3 : index
    %40 = memref.load %arg1[%c0_32, %c3_33] : memref<2x8xi32, #tpu.memory_space<smem>>
    %41 = arith.index_cast %40 : i32 to index
    %c0_34 = arith.constant 0 : index
    %42 = vector.load %arg16[%41, %c0_34] : memref<16x8xf32, #tpu.memory_space<vmem>>, vector<1x8xf32>
    %c6 = arith.constant 6 : index
    %c0_35 = arith.constant 0 : index
    %43 = vector.load %arg17[%c6, %c0_35] : memref<16x8xf32, #tpu.memory_space<vmem>>, vector<1x8xf32>
    tpu.vector_store %arg17[%c6, %c0_35], %42 {strides = array<i32>} : memref<16x8xf32, #tpu.memory_space<vmem>>, vector<1x8xf32>,
    %c1_36 = arith.constant 1 : index
    %c3_37 = arith.constant 3 : index
    %44 = memref.load %arg1[%c1_36, %c3_37] : memref<2x8xi32, #tpu.memory_space<smem>>
    %45 = arith.index_cast %44 : i32 to index
    %c0_38 = arith.constant 0 : index
    %46 = vector.load %arg16[%45, %c0_38] : memref<16x8xf32, #tpu.memory_space<vmem>>, vector<1x8xf32>
    %c7 = arith.constant 7 : index
    %c0_39 = arith.constant 0 : index
    %47 = vector.load %arg17[%c7, %c0_39] : memref<16x8xf32, #tpu.memory_space<vmem>>, vector<1x8xf32>
    tpu.vector_store %arg17[%c7, %c0_39], %46 {strides = array<i32>} : memref<16x8xf32, #tpu.memory_space<vmem>>, vector<1x8xf32>,
    %c0_40 = arith.constant 0 : index
    %c4_41 = arith.constant 4 : index
    %48 = memref.load %arg1[%c0_40, %c4_41] : memref<2x8xi32, #tpu.memory_space<smem>>
    %49 = arith.index_cast %48 : i32 to index
    %c0_42 = arith.constant 0 : index
    %50 = vector.load %arg16[%49, %c0_42] : memref<16x8xf32, #tpu.memory_space<vmem>>, vector<1x8xf32>
    %c8 = arith.constant 8 : index
    %c0_43 = arith.constant 0 : index
    %51 = vector.load %arg17[%c8, %c0_43] : memref<16x8xf32, #tpu.memory_space<vmem>>, vector<1x8xf32>
    tpu.vector_store %arg17[%c8, %c0_43], %50 {strides = array<i32>} : memref<16x8xf32, #tpu.memory_space<vmem>>, vector<1x8xf32>,
    %c1_44 = arith.constant 1 : index
    %c4_45 = arith.constant 4 : index
    %52 = memref.load %arg1[%c1_44, %c4_45] : memref<2x8xi32, #tpu.memory_space<smem>>
    %53 = arith.index_cast %52 : i32 to index
    %c0_46 = arith.constant 0 : index
    %54 = vector.load %arg16[%53, %c0_46] : memref<16x8xf32, #tpu.memory_space<vmem>>, vector<1x8xf32>
    %c9 = arith.constant 9 : index
    %c0_47 = arith.constant 0 : index
    %55 = vector.load %arg17[%c9, %c0_47] : memref<16x8xf32, #tpu.memory_space<vmem>>, vector<1x8xf32>
    tpu.vector_store %arg17[%c9, %c0_47], %54 {strides = array<i32>} : memref<16x8xf32, #tpu.memory_space<vmem>>, vector<1x8xf32>,
    %c0_48 = arith.constant 0 : index
    %c5_49 = arith.constant 5 : index
    %56 = memref.load %arg1[%c0_48, %c5_49] : memref<2x8xi32, #tpu.memory_space<smem>>
    %57 = arith.index_cast %56 : i32 to index
    %c0_50 = arith.constant 0 : index
    %58 = vector.load %arg16[%57, %c0_50] : memref<16x8xf32, #tpu.memory_space<vmem>>, vector<1x8xf32>
    %c10 = arith.constant 10 : index
    %c0_51 = arith.constant 0 : index
    %59 = vector.load %arg17[%c10, %c0_51] : memref<16x8xf32, #tpu.memory_space<vmem>>, vector<1x8xf32>
    tpu.vector_store %arg17[%c10, %c0_51], %58 {strides = array<i32>} : memref<16x8xf32, #tpu.memory_space<vmem>>, vector<1x8xf32>,
    %c1_52 = arith.constant 1 : index
    %c5_53 = arith.constant 5 : index
    %60 = memref.load %arg1[%c1_52, %c5_53] : memref<2x8xi32, #tpu.memory_space<smem>>
    %61 = arith.index_cast %60 : i32 to index
    %c0_54 = arith.constant 0 : index
    %62 = vector.load %arg16[%61, %c0_54] : memref<16x8xf32, #tpu.memory_space<vmem>>, vector<1x8xf32>
    %c11 = arith.constant 11 : index
    %c0_55 = arith.constant 0 : index
    %63 = vector.load %arg17[%c11, %c0_55] : memref<16x8xf32, #tpu.memory_space<vmem>>, vector<1x8xf32>
    tpu.vector_store %arg17[%c11, %c0_55], %62 {strides = array<i32>} : memref<16x8xf32, #tpu.memory_space<vmem>>, vector<1x8xf32>,
    %c0_56 = arith.constant 0 : index
    %c6_57 = arith.constant 6 : index
    %64 = memref.load %arg1[%c0_56, %c6_57] : memref<2x8xi32, #tpu.memory_space<smem>>
    %65 = arith.index_cast %64 : i32 to index
    %c0_58 = arith.constant 0 : index
    %66 = vector.load %arg16[%65, %c0_58] : memref<16x8xf32, #tpu.memory_space<vmem>>, vector<1x8xf32>
    %c12 = arith.constant 12 : index
    %c0_59 = arith.constant 0 : index
    %67 = vector.load %arg17[%c12, %c0_59] : memref<16x8xf32, #tpu.memory_space<vmem>>, vector<1x8xf32>
    tpu.vector_store %arg17[%c12, %c0_59], %66 {strides = array<i32>} : memref<16x8xf32, #tpu.memory_space<vmem>>, vector<1x8xf32>,
    %c1_60 = arith.constant 1 : index
    %c6_61 = arith.constant 6 : index
    %68 = memref.load %arg1[%c1_60, %c6_61] : memref<2x8xi32, #tpu.memory_space<smem>>
    %69 = arith.index_cast %68 : i32 to index
    %c0_62 = arith.constant 0 : index
    %70 = vector.load %arg16[%69, %c0_62] : memref<16x8xf32, #tpu.memory_space<vmem>>, vector<1x8xf32>
    %c13 = arith.constant 13 : index
    %c0_63 = arith.constant 0 : index
    %71 = vector.load %arg17[%c13, %c0_63] : memref<16x8xf32, #tpu.memory_space<vmem>>, vector<1x8xf32>
    tpu.vector_store %arg17[%c13, %c0_63], %70 {strides = array<i32>} : memref<16x8xf32, #tpu.memory_space<vmem>>, vector<1x8xf32>,
    %c0_64 = arith.constant 0 : index
    %c7_65 = arith.constant 7 : index
    %72 = memref.load %arg1[%c0_64, %c7_65] : memref<2x8xi32, #tpu.memory_space<smem>>
    %73 = arith.index_cast %72 : i32 to index
    %c0_66 = arith.constant 0 : index
    %74 = vector.load %arg16[%73, %c0_66] : memref<16x8xf32, #tpu.memory_space<vmem>>, vector<1x8xf32>
    %c14 = arith.constant 14 : index
    %c0_67 = arith.constant 0 : index
    %75 = vector.load %arg17[%c14, %c0_67] : memref<16x8xf32, #tpu.memory_space<vmem>>, vector<1x8xf32>
    tpu.vector_store %arg17[%c14, %c0_67], %74 {strides = array<i32>} : memref<16x8xf32, #tpu.memory_space<vmem>>, vector<1x8xf32>,
    %c1_68 = arith.constant 1 : index
    %c7_69 = arith.constant 7 : index
    %76 = memref.load %arg1[%c1_68, %c7_69] : memref<2x8xi32, #tpu.memory_space<smem>>
    %77 = arith.index_cast %76 : i32 to index
    %c0_70 = arith.constant 0 : index
    %78 = vector.load %arg16[%77, %c0_70] : memref<16x8xf32, #tpu.memory_space<vmem>>, vector<1x8xf32>
    %c15 = arith.constant 15 : index
    %c0_71 = arith.constant 0 : index
    %79 = vector.load %arg17[%c15, %c0_71] : memref<16x8xf32, #tpu.memory_space<vmem>>, vector<1x8xf32>
    tpu.vector_store %arg17[%c15, %c0_71], %78 {strides = array<i32>} : memref<16x8xf32, #tpu.memory_space<vmem>>, vector<1x8xf32>,
    %c0_72 = arith.constant 0 : index
    %c0_73 = arith.constant 0 : index
    %80 = vector.load %arg17[%c0_72, %c0_73] : memref<16x8xf32, #tpu.memory_space<vmem>>, vector<16x8xf32>
    %c0_74 = arith.constant 0 : index
    %c0_75 = arith.constant 0 : index
    %81 = vector.load %arg5[%c0_74, %c0_75] : memref<8x96xf32, #tpu.memory_space<vmem>>, vector<8x96xf32>
    %cst_76 = arith.constant dense<0.000000e+00> : vector<16x96xf32>
    %82 = tpu.matmul %80, %81, %cst_76 {dimension_numbers = #tpu.dot_dimension_numbers<[1], [0], [0], [1], [0, 0, 1, 1], [], []>} : vector<16x8xf32>, vector<8x96xf32>, vector<16x96xf32> -> vector<16x96xf32>
    %c0_77 = arith.constant 0 : index
    %c0_78 = arith.constant 0 : index
    %83 = vector.load %arg7[%c0_77, %c0_78] : memref<1x96xf32, #tpu.memory_space<vmem>>, vector<1x96xf32>
    %84 = vector.broadcast %83 : vector<1x96xf32> to vector<16x96xf32>
    %85 = arith.addf %82, %84 : vector<16x96xf32>
    %cst_79 = arith.constant 0.000000e+00 : f32
    %86 = vector.broadcast %cst_79 : f32 to vector<2x32xf32>
    %87 = vector.extract_strided_slice %85 {offsets = [0, 0], sizes = [2, 96], strides = [1, 1]} : vector<16x96xf32> to vector<2x96xf32>
    %c0_80 = arith.constant 0 : index
    %c0_81 = arith.constant 0 : index
    %88 = vector.load %arg6[%c0_80, %c0_81] : memref<32x96xf32, #tpu.memory_space<vmem>>, vector<32x96xf32>
    %cst_82 = arith.constant dense<0.000000e+00> : vector<2x96xf32>
    %89 = tpu.matmul %86, %88, %cst_82 {dimension_numbers = #tpu.dot_dimension_numbers<[1], [0], [0], [1], [0, 0, 1, 1], [], []>} : vector<2x32xf32>, vector<32x96xf32>, vector<2x96xf32> -> vector<2x96xf32>
    %c0_83 = arith.constant 0 : index
    %c0_84 = arith.constant 0 : index
    %90 = vector.load %arg8[%c0_83, %c0_84] : memref<1x96xf32, #tpu.memory_space<vmem>>, vector<1x96xf32>
    %91 = vector.broadcast %90 : vector<1x96xf32> to vector<2x96xf32>
    %92 = arith.addf %89, %91 : vector<2x96xf32>
    %93 = vector.extract_strided_slice %87 {offsets = [0, 0], sizes = [2, 32], strides = [1, 1]} : vector<2x96xf32> to vector<2x32xf32>
    %94 = vector.extract_strided_slice %92 {offsets = [0, 0], sizes = [2, 32], strides = [1, 1]} : vector<2x96xf32> to vector<2x32xf32>
    %95 = arith.addf %93, %94 : vector<2x32xf32>
    %96 = arith.negf %95 : vector<2x32xf32>
    %97 = math.exp %96 : vector<2x32xf32>
    %cst_85 = arith.constant 1.000000e+00 : f32
    %98 = vector.broadcast %cst_85 : f32 to vector<2x32xf32>
    %99 = arith.addf %98, %97 : vector<2x32xf32>
    %100 = arith.divf %98, %99 : vector<2x32xf32>
    %101 = vector.extract_strided_slice %87 {offsets = [0, 32], sizes = [2, 32], strides = [1, 1]} : vector<2x96xf32> to vector<2x32xf32>
    %102 = vector.extract_strided_slice %92 {offsets = [0, 32], sizes = [2, 32], strides = [1, 1]} : vector<2x96xf32> to vector<2x32xf32>
    %103 = arith.addf %101, %102 : vector<2x32xf32>
    %104 = arith.negf %103 : vector<2x32xf32>
    %105 = math.exp %104 : vector<2x32xf32>
    %cst_86 = arith.constant 1.000000e+00 : f32
    %106 = vector.broadcast %cst_86 : f32 to vector<2x32xf32>
    %107 = arith.addf %106, %105 : vector<2x32xf32>
    %108 = arith.divf %106, %107 : vector<2x32xf32>
    %109 = vector.extract_strided_slice %87 {offsets = [0, 64], sizes = [2, 32], strides = [1, 1]} : vector<2x96xf32> to vector<2x32xf32>
    %110 = vector.extract_strided_slice %92 {offsets = [0, 64], sizes = [2, 32], strides = [1, 1]} : vector<2x96xf32> to vector<2x32xf32>
    %111 = arith.mulf %100, %110 : vector<2x32xf32>
    %112 = arith.addf %109, %111 : vector<2x32xf32>
    %113 = math.tanh %112 : vector<2x32xf32>
    %cst_87 = arith.constant 1.000000e+00 : f32
    %114 = vector.broadcast %cst_87 : f32 to vector<2x32xf32>
    %115 = arith.subf %114, %108 : vector<2x32xf32>
    %116 = arith.mulf %115, %113 : vector<2x32xf32>
    %117 = arith.mulf %108, %86 : vector<2x32xf32>
    %118 = arith.addf %116, %117 : vector<2x32xf32>
    %119 = vector.extract_strided_slice %85 {offsets = [2, 0], sizes = [2, 96], strides = [1, 1]} : vector<16x96xf32> to vector<2x96xf32>
    %c0_88 = arith.constant 0 : index
    %c0_89 = arith.constant 0 : index
    %120 = vector.load %arg6[%c0_88, %c0_89] : memref<32x96xf32, #tpu.memory_space<vmem>>, vector<32x96xf32>
    %cst_90 = arith.constant dense<0.000000e+00> : vector<2x96xf32>
    %121 = tpu.matmul %118, %120, %cst_90 {dimension_numbers = #tpu.dot_dimension_numbers<[1], [0], [0], [1], [0, 0, 1, 1], [], []>} : vector<2x32xf32>, vector<32x96xf32>, vector<2x96xf32> -> vector<2x96xf32>
    %c0_91 = arith.constant 0 : index
    %c0_92 = arith.constant 0 : index
    %122 = vector.load %arg8[%c0_91, %c0_92] : memref<1x96xf32, #tpu.memory_space<vmem>>, vector<1x96xf32>
    %123 = vector.broadcast %122 : vector<1x96xf32> to vector<2x96xf32>
    %124 = arith.addf %121, %123 : vector<2x96xf32>
    %125 = vector.extract_strided_slice %119 {offsets = [0, 0], sizes = [2, 32], strides = [1, 1]} : vector<2x96xf32> to vector<2x32xf32>
    %126 = vector.extract_strided_slice %124 {offsets = [0, 0], sizes = [2, 32], strides = [1, 1]} : vector<2x96xf32> to vector<2x32xf32>
    %127 = arith.addf %125, %126 : vector<2x32xf32>
    %128 = arith.negf %127 : vector<2x32xf32>
    %129 = math.exp %128 : vector<2x32xf32>
    %cst_93 = arith.constant 1.000000e+00 : f32
    %130 = vector.broadcast %cst_93 : f32 to vector<2x32xf32>
    %131 = arith.addf %130, %129 : vector<2x32xf32>
    %132 = arith.divf %130, %131 : vector<2x32xf32>
    %133 = vector.extract_strided_slice %119 {offsets = [0, 32], sizes = [2, 32], strides = [1, 1]} : vector<2x96xf32> to vector<2x32xf32>
    %134 = vector.extract_strided_slice %124 {offsets = [0, 32], sizes = [2, 32], strides = [1, 1]} : vector<2x96xf32> to vector<2x32xf32>
    %135 = arith.addf %133, %134 : vector<2x32xf32>
    %136 = arith.negf %135 : vector<2x32xf32>
    %137 = math.exp %136 : vector<2x32xf32>
    %cst_94 = arith.constant 1.000000e+00 : f32
    %138 = vector.broadcast %cst_94 : f32 to vector<2x32xf32>
    %139 = arith.addf %138, %137 : vector<2x32xf32>
    %140 = arith.divf %138, %139 : vector<2x32xf32>
    %141 = vector.extract_strided_slice %119 {offsets = [0, 64], sizes = [2, 32], strides = [1, 1]} : vector<2x96xf32> to vector<2x32xf32>
    %142 = vector.extract_strided_slice %124 {offsets = [0, 64], sizes = [2, 32], strides = [1, 1]} : vector<2x96xf32> to vector<2x32xf32>
    %143 = arith.mulf %132, %142 : vector<2x32xf32>
    %144 = arith.addf %141, %143 : vector<2x32xf32>
    %145 = math.tanh %144 : vector<2x32xf32>
    %cst_95 = arith.constant 1.000000e+00 : f32
    %146 = vector.broadcast %cst_95 : f32 to vector<2x32xf32>
    %147 = arith.subf %146, %140 : vector<2x32xf32>
    %148 = arith.mulf %147, %145 : vector<2x32xf32>
    %149 = arith.mulf %140, %118 : vector<2x32xf32>
    %150 = arith.addf %148, %149 : vector<2x32xf32>
    %151 = vector.extract_strided_slice %85 {offsets = [4, 0], sizes = [2, 96], strides = [1, 1]} : vector<16x96xf32> to vector<2x96xf32>
    %c0_96 = arith.constant 0 : index
    %c0_97 = arith.constant 0 : index
    %152 = vector.load %arg6[%c0_96, %c0_97] : memref<32x96xf32, #tpu.memory_space<vmem>>, vector<32x96xf32>
    %cst_98 = arith.constant dense<0.000000e+00> : vector<2x96xf32>
    %153 = tpu.matmul %150, %152, %cst_98 {dimension_numbers = #tpu.dot_dimension_numbers<[1], [0], [0], [1], [0, 0, 1, 1], [], []>} : vector<2x32xf32>, vector<32x96xf32>, vector<2x96xf32> -> vector<2x96xf32>
    %c0_99 = arith.constant 0 : index
    %c0_100 = arith.constant 0 : index
    %154 = vector.load %arg8[%c0_99, %c0_100] : memref<1x96xf32, #tpu.memory_space<vmem>>, vector<1x96xf32>
    %155 = vector.broadcast %154 : vector<1x96xf32> to vector<2x96xf32>
    %156 = arith.addf %153, %155 : vector<2x96xf32>
    %157 = vector.extract_strided_slice %151 {offsets = [0, 0], sizes = [2, 32], strides = [1, 1]} : vector<2x96xf32> to vector<2x32xf32>
    %158 = vector.extract_strided_slice %156 {offsets = [0, 0], sizes = [2, 32], strides = [1, 1]} : vector<2x96xf32> to vector<2x32xf32>
    %159 = arith.addf %157, %158 : vector<2x32xf32>
    %160 = arith.negf %159 : vector<2x32xf32>
    %161 = math.exp %160 : vector<2x32xf32>
    %cst_101 = arith.constant 1.000000e+00 : f32
    %162 = vector.broadcast %cst_101 : f32 to vector<2x32xf32>
    %163 = arith.addf %162, %161 : vector<2x32xf32>
    %164 = arith.divf %162, %163 : vector<2x32xf32>
    %165 = vector.extract_strided_slice %151 {offsets = [0, 32], sizes = [2, 32], strides = [1, 1]} : vector<2x96xf32> to vector<2x32xf32>
    %166 = vector.extract_strided_slice %156 {offsets = [0, 32], sizes = [2, 32], strides = [1, 1]} : vector<2x96xf32> to vector<2x32xf32>
    %167 = arith.addf %165, %166 : vector<2x32xf32>
    %168 = arith.negf %167 : vector<2x32xf32>
    %169 = math.exp %168 : vector<2x32xf32>
    %cst_102 = arith.constant 1.000000e+00 : f32
    %170 = vector.broadcast %cst_102 : f32 to vector<2x32xf32>
    %171 = arith.addf %170, %169 : vector<2x32xf32>
    %172 = arith.divf %170, %171 : vector<2x32xf32>
    %173 = vector.extract_strided_slice %151 {offsets = [0, 64], sizes = [2, 32], strides = [1, 1]} : vector<2x96xf32> to vector<2x32xf32>
    %174 = vector.extract_strided_slice %156 {offsets = [0, 64], sizes = [2, 32], strides = [1, 1]} : vector<2x96xf32> to vector<2x32xf32>
    %175 = arith.mulf %164, %174 : vector<2x32xf32>
    %176 = arith.addf %173, %175 : vector<2x32xf32>
    %177 = math.tanh %176 : vector<2x32xf32>
    %cst_103 = arith.constant 1.000000e+00 : f32
    %178 = vector.broadcast %cst_103 : f32 to vector<2x32xf32>
    %179 = arith.subf %178, %172 : vector<2x32xf32>
    %180 = arith.mulf %179, %177 : vector<2x32xf32>
    %181 = arith.mulf %172, %150 : vector<2x32xf32>
    %182 = arith.addf %180, %181 : vector<2x32xf32>
    %183 = vector.extract_strided_slice %85 {offsets = [6, 0], sizes = [2, 96], strides = [1, 1]} : vector<16x96xf32> to vector<2x96xf32>
    %c0_104 = arith.constant 0 : index
    %c0_105 = arith.constant 0 : index
    %184 = vector.load %arg6[%c0_104, %c0_105] : memref<32x96xf32, #tpu.memory_space<vmem>>, vector<32x96xf32>
    %cst_106 = arith.constant dense<0.000000e+00> : vector<2x96xf32>
    %185 = tpu.matmul %182, %184, %cst_106 {dimension_numbers = #tpu.dot_dimension_numbers<[1], [0], [0], [1], [0, 0, 1, 1], [], []>} : vector<2x32xf32>, vector<32x96xf32>, vector<2x96xf32> -> vector<2x96xf32>
    %c0_107 = arith.constant 0 : index
    %c0_108 = arith.constant 0 : index
    %186 = vector.load %arg8[%c0_107, %c0_108] : memref<1x96xf32, #tpu.memory_space<vmem>>, vector<1x96xf32>
    %187 = vector.broadcast %186 : vector<1x96xf32> to vector<2x96xf32>
    %188 = arith.addf %185, %187 : vector<2x96xf32>
    %189 = vector.extract_strided_slice %183 {offsets = [0, 0], sizes = [2, 32], strides = [1, 1]} : vector<2x96xf32> to vector<2x32xf32>
    %190 = vector.extract_strided_slice %188 {offsets = [0, 0], sizes = [2, 32], strides = [1, 1]} : vector<2x96xf32> to vector<2x32xf32>
    %191 = arith.addf %189, %190 : vector<2x32xf32>
    %192 = arith.negf %191 : vector<2x32xf32>
    %193 = math.exp %192 : vector<2x32xf32>
    %cst_109 = arith.constant 1.000000e+00 : f32
    %194 = vector.broadcast %cst_109 : f32 to vector<2x32xf32>
    %195 = arith.addf %194, %193 : vector<2x32xf32>
    %196 = arith.divf %194, %195 : vector<2x32xf32>
    %197 = vector.extract_strided_slice %183 {offsets = [0, 32], sizes = [2, 32], strides = [1, 1]} : vector<2x96xf32> to vector<2x32xf32>
    %198 = vector.extract_strided_slice %188 {offsets = [0, 32], sizes = [2, 32], strides = [1, 1]} : vector<2x96xf32> to vector<2x32xf32>
    %199 = arith.addf %197, %198 : vector<2x32xf32>
    %200 = arith.negf %199 : vector<2x32xf32>
    %201 = math.exp %200 : vector<2x32xf32>
    %cst_110 = arith.constant 1.000000e+00 : f32
    %202 = vector.broadcast %cst_110 : f32 to vector<2x32xf32>
    %203 = arith.addf %202, %201 : vector<2x32xf32>
    %204 = arith.divf %202, %203 : vector<2x32xf32>
    %205 = vector.extract_strided_slice %183 {offsets = [0, 64], sizes = [2, 32], strides = [1, 1]} : vector<2x96xf32> to vector<2x32xf32>
    %206 = vector.extract_strided_slice %188 {offsets = [0, 64], sizes = [2, 32], strides = [1, 1]} : vector<2x96xf32> to vector<2x32xf32>
    %207 = arith.mulf %196, %206 : vector<2x32xf32>
    %208 = arith.addf %205, %207 : vector<2x32xf32>
    %209 = math.tanh %208 : vector<2x32xf32>
    %cst_111 = arith.constant 1.000000e+00 : f32
    %210 = vector.broadcast %cst_111 : f32 to vector<2x32xf32>
    %211 = arith.subf %210, %204 : vector<2x32xf32>
    %212 = arith.mulf %211, %209 : vector<2x32xf32>
    %213 = arith.mulf %204, %182 : vector<2x32xf32>
    %214 = arith.addf %212, %213 : vector<2x32xf32>
    %215 = vector.extract_strided_slice %85 {offsets = [8, 0], sizes = [2, 96], strides = [1, 1]} : vector<16x96xf32> to vector<2x96xf32>
    %c0_112 = arith.constant 0 : index
    %c0_113 = arith.constant 0 : index
    %216 = vector.load %arg6[%c0_112, %c0_113] : memref<32x96xf32, #tpu.memory_space<vmem>>, vector<32x96xf32>
    %cst_114 = arith.constant dense<0.000000e+00> : vector<2x96xf32>
    %217 = tpu.matmul %214, %216, %cst_114 {dimension_numbers = #tpu.dot_dimension_numbers<[1], [0], [0], [1], [0, 0, 1, 1], [], []>} : vector<2x32xf32>, vector<32x96xf32>, vector<2x96xf32> -> vector<2x96xf32>
    %c0_115 = arith.constant 0 : index
    %c0_116 = arith.constant 0 : index
    %218 = vector.load %arg8[%c0_115, %c0_116] : memref<1x96xf32, #tpu.memory_space<vmem>>, vector<1x96xf32>
    %219 = vector.broadcast %218 : vector<1x96xf32> to vector<2x96xf32>
    %220 = arith.addf %217, %219 : vector<2x96xf32>
    %221 = vector.extract_strided_slice %215 {offsets = [0, 0], sizes = [2, 32], strides = [1, 1]} : vector<2x96xf32> to vector<2x32xf32>
    %222 = vector.extract_strided_slice %220 {offsets = [0, 0], sizes = [2, 32], strides = [1, 1]} : vector<2x96xf32> to vector<2x32xf32>
    %223 = arith.addf %221, %222 : vector<2x32xf32>
    %224 = arith.negf %223 : vector<2x32xf32>
    %225 = math.exp %224 : vector<2x32xf32>
    %cst_117 = arith.constant 1.000000e+00 : f32
    %226 = vector.broadcast %cst_117 : f32 to vector<2x32xf32>
    %227 = arith.addf %226, %225 : vector<2x32xf32>
    %228 = arith.divf %226, %227 : vector<2x32xf32>
    %229 = vector.extract_strided_slice %215 {offsets = [0, 32], sizes = [2, 32], strides = [1, 1]} : vector<2x96xf32> to vector<2x32xf32>
    %230 = vector.extract_strided_slice %220 {offsets = [0, 32], sizes = [2, 32], strides = [1, 1]} : vector<2x96xf32> to vector<2x32xf32>
    %231 = arith.addf %229, %230 : vector<2x32xf32>
    %232 = arith.negf %231 : vector<2x32xf32>
    %233 = math.exp %232 : vector<2x32xf32>
    %cst_118 = arith.constant 1.000000e+00 : f32
    %234 = vector.broadcast %cst_118 : f32 to vector<2x32xf32>
    %235 = arith.addf %234, %233 : vector<2x32xf32>
    %236 = arith.divf %234, %235 : vector<2x32xf32>
    %237 = vector.extract_strided_slice %215 {offsets = [0, 64], sizes = [2, 32], strides = [1, 1]} : vector<2x96xf32> to vector<2x32xf32>
    %238 = vector.extract_strided_slice %220 {offsets = [0, 64], sizes = [2, 32], strides = [1, 1]} : vector<2x96xf32> to vector<2x32xf32>
    %239 = arith.mulf %228, %238 : vector<2x32xf32>
    %240 = arith.addf %237, %239 : vector<2x32xf32>
    %241 = math.tanh %240 : vector<2x32xf32>
    %cst_119 = arith.constant 1.000000e+00 : f32
    %242 = vector.broadcast %cst_119 : f32 to vector<2x32xf32>
    %243 = arith.subf %242, %236 : vector<2x32xf32>
    %244 = arith.mulf %243, %241 : vector<2x32xf32>
    %245 = arith.mulf %236, %214 : vector<2x32xf32>
    %246 = arith.addf %244, %245 : vector<2x32xf32>
    %247 = vector.extract_strided_slice %85 {offsets = [10, 0], sizes = [2, 96], strides = [1, 1]} : vector<16x96xf32> to vector<2x96xf32>
    %c0_120 = arith.constant 0 : index
    %c0_121 = arith.constant 0 : index
    %248 = vector.load %arg6[%c0_120, %c0_121] : memref<32x96xf32, #tpu.memory_space<vmem>>, vector<32x96xf32>
    %cst_122 = arith.constant dense<0.000000e+00> : vector<2x96xf32>
    %249 = tpu.matmul %246, %248, %cst_122 {dimension_numbers = #tpu.dot_dimension_numbers<[1], [0], [0], [1], [0, 0, 1, 1], [], []>} : vector<2x32xf32>, vector<32x96xf32>, vector<2x96xf32> -> vector<2x96xf32>
    %c0_123 = arith.constant 0 : index
    %c0_124 = arith.constant 0 : index
    %250 = vector.load %arg8[%c0_123, %c0_124] : memref<1x96xf32, #tpu.memory_space<vmem>>, vector<1x96xf32>
    %251 = vector.broadcast %250 : vector<1x96xf32> to vector<2x96xf32>
    %252 = arith.addf %249, %251 : vector<2x96xf32>
    %253 = vector.extract_strided_slice %247 {offsets = [0, 0], sizes = [2, 32], strides = [1, 1]} : vector<2x96xf32> to vector<2x32xf32>
    %254 = vector.extract_strided_slice %252 {offsets = [0, 0], sizes = [2, 32], strides = [1, 1]} : vector<2x96xf32> to vector<2x32xf32>
    %255 = arith.addf %253, %254 : vector<2x32xf32>
    %256 = arith.negf %255 : vector<2x32xf32>
    %257 = math.exp %256 : vector<2x32xf32>
    %cst_125 = arith.constant 1.000000e+00 : f32
    %258 = vector.broadcast %cst_125 : f32 to vector<2x32xf32>
    %259 = arith.addf %258, %257 : vector<2x32xf32>
    %260 = arith.divf %258, %259 : vector<2x32xf32>
    %261 = vector.extract_strided_slice %247 {offsets = [0, 32], sizes = [2, 32], strides = [1, 1]} : vector<2x96xf32> to vector<2x32xf32>
    %262 = vector.extract_strided_slice %252 {offsets = [0, 32], sizes = [2, 32], strides = [1, 1]} : vector<2x96xf32> to vector<2x32xf32>
    %263 = arith.addf %261, %262 : vector<2x32xf32>
    %264 = arith.negf %263 : vector<2x32xf32>
    %265 = math.exp %264 : vector<2x32xf32>
    %cst_126 = arith.constant 1.000000e+00 : f32
    %266 = vector.broadcast %cst_126 : f32 to vector<2x32xf32>
    %267 = arith.addf %266, %265 : vector<2x32xf32>
    %268 = arith.divf %266, %267 : vector<2x32xf32>
    %269 = vector.extract_strided_slice %247 {offsets = [0, 64], sizes = [2, 32], strides = [1, 1]} : vector<2x96xf32> to vector<2x32xf32>
    %270 = vector.extract_strided_slice %252 {offsets = [0, 64], sizes = [2, 32], strides = [1, 1]} : vector<2x96xf32> to vector<2x32xf32>
    %271 = arith.mulf %260, %270 : vector<2x32xf32>
    %272 = arith.addf %269, %271 : vector<2x32xf32>
    %273 = math.tanh %272 : vector<2x32xf32>
    %cst_127 = arith.constant 1.000000e+00 : f32
    %274 = vector.broadcast %cst_127 : f32 to vector<2x32xf32>
    %275 = arith.subf %274, %268 : vector<2x32xf32>
    %276 = arith.mulf %275, %273 : vector<2x32xf32>
    %277 = arith.mulf %268, %246 : vector<2x32xf32>
    %278 = arith.addf %276, %277 : vector<2x32xf32>
    %279 = vector.extract_strided_slice %85 {offsets = [12, 0], sizes = [2, 96], strides = [1, 1]} : vector<16x96xf32> to vector<2x96xf32>
    %c0_128 = arith.constant 0 : index
    %c0_129 = arith.constant 0 : index
    %280 = vector.load %arg6[%c0_128, %c0_129] : memref<32x96xf32, #tpu.memory_space<vmem>>, vector<32x96xf32>
    %cst_130 = arith.constant dense<0.000000e+00> : vector<2x96xf32>
    %281 = tpu.matmul %278, %280, %cst_130 {dimension_numbers = #tpu.dot_dimension_numbers<[1], [0], [0], [1], [0, 0, 1, 1], [], []>} : vector<2x32xf32>, vector<32x96xf32>, vector<2x96xf32> -> vector<2x96xf32>
    %c0_131 = arith.constant 0 : index
    %c0_132 = arith.constant 0 : index
    %282 = vector.load %arg8[%c0_131, %c0_132] : memref<1x96xf32, #tpu.memory_space<vmem>>, vector<1x96xf32>
    %283 = vector.broadcast %282 : vector<1x96xf32> to vector<2x96xf32>
    %284 = arith.addf %281, %283 : vector<2x96xf32>
    %285 = vector.extract_strided_slice %279 {offsets = [0, 0], sizes = [2, 32], strides = [1, 1]} : vector<2x96xf32> to vector<2x32xf32>
    %286 = vector.extract_strided_slice %284 {offsets = [0, 0], sizes = [2, 32], strides = [1, 1]} : vector<2x96xf32> to vector<2x32xf32>
    %287 = arith.addf %285, %286 : vector<2x32xf32>
    %288 = arith.negf %287 : vector<2x32xf32>
    %289 = math.exp %288 : vector<2x32xf32>
    %cst_133 = arith.constant 1.000000e+00 : f32
    %290 = vector.broadcast %cst_133 : f32 to vector<2x32xf32>
    %291 = arith.addf %290, %289 : vector<2x32xf32>
    %292 = arith.divf %290, %291 : vector<2x32xf32>
    %293 = vector.extract_strided_slice %279 {offsets = [0, 32], sizes = [2, 32], strides = [1, 1]} : vector<2x96xf32> to vector<2x32xf32>
    %294 = vector.extract_strided_slice %284 {offsets = [0, 32], sizes = [2, 32], strides = [1, 1]} : vector<2x96xf32> to vector<2x32xf32>
    %295 = arith.addf %293, %294 : vector<2x32xf32>
    %296 = arith.negf %295 : vector<2x32xf32>
    %297 = math.exp %296 : vector<2x32xf32>
    %cst_134 = arith.constant 1.000000e+00 : f32
    %298 = vector.broadcast %cst_134 : f32 to vector<2x32xf32>
    %299 = arith.addf %298, %297 : vector<2x32xf32>
    %300 = arith.divf %298, %299 : vector<2x32xf32>
    %301 = vector.extract_strided_slice %279 {offsets = [0, 64], sizes = [2, 32], strides = [1, 1]} : vector<2x96xf32> to vector<2x32xf32>
    %302 = vector.extract_strided_slice %284 {offsets = [0, 64], sizes = [2, 32], strides = [1, 1]} : vector<2x96xf32> to vector<2x32xf32>
    %303 = arith.mulf %292, %302 : vector<2x32xf32>
    %304 = arith.addf %301, %303 : vector<2x32xf32>
    %305 = math.tanh %304 : vector<2x32xf32>
    %cst_135 = arith.constant 1.000000e+00 : f32
    %306 = vector.broadcast %cst_135 : f32 to vector<2x32xf32>
    %307 = arith.subf %306, %300 : vector<2x32xf32>
    %308 = arith.mulf %307, %305 : vector<2x32xf32>
    %309 = arith.mulf %300, %278 : vector<2x32xf32>
    %310 = arith.addf %308, %309 : vector<2x32xf32>
    %311 = vector.extract_strided_slice %85 {offsets = [14, 0], sizes = [2, 96], strides = [1, 1]} : vector<16x96xf32> to vector<2x96xf32>
    %c0_136 = arith.constant 0 : index
    %c0_137 = arith.constant 0 : index
    %312 = vector.load %arg6[%c0_136, %c0_137] : memref<32x96xf32, #tpu.memory_space<vmem>>, vector<32x96xf32>
    %cst_138 = arith.constant dense<0.000000e+00> : vector<2x96xf32>
    %313 = tpu.matmul %310, %312, %cst_138 {dimension_numbers = #tpu.dot_dimension_numbers<[1], [0], [0], [1], [0, 0, 1, 1], [], []>} : vector<2x32xf32>, vector<32x96xf32>, vector<2x96xf32> -> vector<2x96xf32>
    %c0_139 = arith.constant 0 : index
    %c0_140 = arith.constant 0 : index
    %314 = vector.load %arg8[%c0_139, %c0_140] : memref<1x96xf32, #tpu.memory_space<vmem>>, vector<1x96xf32>
    %315 = vector.broadcast %314 : vector<1x96xf32> to vector<2x96xf32>
    %316 = arith.addf %313, %315 : vector<2x96xf32>
    %317 = vector.extract_strided_slice %311 {offsets = [0, 0], sizes = [2, 32], strides = [1, 1]} : vector<2x96xf32> to vector<2x32xf32>
    %318 = vector.extract_strided_slice %316 {offsets = [0, 0], sizes = [2, 32], strides = [1, 1]} : vector<2x96xf32> to vector<2x32xf32>
    %319 = arith.addf %317, %318 : vector<2x32xf32>
    %320 = arith.negf %319 : vector<2x32xf32>
    %321 = math.exp %320 : vector<2x32xf32>
    %cst_141 = arith.constant 1.000000e+00 : f32
    %322 = vector.broadcast %cst_141 : f32 to vector<2x32xf32>
    %323 = arith.addf %322, %321 : vector<2x32xf32>
    %324 = arith.divf %322, %323 : vector<2x32xf32>
    %325 = vector.extract_strided_slice %311 {offsets = [0, 32], sizes = [2, 32], strides = [1, 1]} : vector<2x96xf32> to vector<2x32xf32>
    %326 = vector.extract_strided_slice %316 {offsets = [0, 32], sizes = [2, 32], strides = [1, 1]} : vector<2x96xf32> to vector<2x32xf32>
    %327 = arith.addf %325, %326 : vector<2x32xf32>
    %328 = arith.negf %327 : vector<2x32xf32>
    %329 = math.exp %328 : vector<2x32xf32>
    %cst_142 = arith.constant 1.000000e+00 : f32
    %330 = vector.broadcast %cst_142 : f32 to vector<2x32xf32>
    %331 = arith.addf %330, %329 : vector<2x32xf32>
    %332 = arith.divf %330, %331 : vector<2x32xf32>
    %333 = vector.extract_strided_slice %311 {offsets = [0, 64], sizes = [2, 32], strides = [1, 1]} : vector<2x96xf32> to vector<2x32xf32>
    %334 = vector.extract_strided_slice %316 {offsets = [0, 64], sizes = [2, 32], strides = [1, 1]} : vector<2x96xf32> to vector<2x32xf32>
    %335 = arith.mulf %324, %334 : vector<2x32xf32>
    %336 = arith.addf %333, %335 : vector<2x32xf32>
    %337 = math.tanh %336 : vector<2x32xf32>
    %cst_143 = arith.constant 1.000000e+00 : f32
    %338 = vector.broadcast %cst_143 : f32 to vector<2x32xf32>
    %339 = arith.subf %338, %332 : vector<2x32xf32>
    %340 = arith.mulf %339, %337 : vector<2x32xf32>
    %341 = arith.mulf %332, %310 : vector<2x32xf32>
    %342 = arith.addf %340, %341 : vector<2x32xf32>
    %c0_144 = arith.constant 0 : index
    %c0_145 = arith.constant 0 : index
    %343 = vector.load %arg4[%c0_144, %c0_145] : memref<16x8xf32, #tpu.memory_space<vmem>>, vector<16x8xf32>
    %344 = arith.mulf %343, %343 : vector<16x8xf32>
    %cst_146 = arith.constant dense<0.000000e+00> : vector<16xf32>
    %345 = vector.multi_reduction <add>, %344, %cst_146 [1] : vector<16x8xf32> to vector<16xf32>
    %346 = vector.shape_cast %345 : vector<16xf32> to vector<16x1xf32>
    %347 = math.sqrt %346 : vector<16x1xf32>
    %cst_147 = arith.constant 1.000000e+00 : f32
    %348 = vector.broadcast %cst_147 : f32 to vector<16x1xf32>
    %349 = arith.cmpf ogt, %347, %348 : vector<16x1xf32>
    %cst_148 = arith.constant 1.000000e-07 : f32
    %350 = vector.broadcast %cst_148 : f32 to vector<16x1xf32>
    %351 = arith.addf %347, %350 : vector<16x1xf32>
    %cst_149 = arith.constant 1.000000e+00 : f32
    %352 = vector.broadcast %cst_149 : f32 to vector<16x1xf32>
    %353 = arith.divf %352, %351 : vector<16x1xf32>
    %cst_150 = arith.constant 1.000000e+00 : f32
    %354 = vector.broadcast %cst_150 : f32 to vector<16x1xf32>
    %355 = arith.select %349, %353, %354 : vector<16x1xi1>, vector<16x1xf32>
    %356 = vector.broadcast %355 : vector<16x1xf32> to vector<16x8xf32>
    %357 = arith.mulf %343, %356 : vector<16x8xf32>
    %c0_151 = arith.constant 0 : index
    %c0_152 = arith.constant 0 : index
    %358 = vector.load %arg16[%c0_151, %c0_152] : memref<16x8xf32, #tpu.memory_space<vmem>>, vector<16x8xf32>
    tpu.vector_store %arg16[%c0_151, %c0_152], %357 {strides = array<i32>} : memref<16x8xf32, #tpu.memory_space<vmem>>, vector<16x8xf32>,
    %c0_153 = arith.constant 0 : index
    %c0_154 = arith.constant 0 : index
    %359 = memref.load %arg2[%c0_153, %c0_154] : memref<2x8xi32, #tpu.memory_space<smem>>
    %360 = arith.index_cast %359 : i32 to index
    %c0_155 = arith.constant 0 : index
    %361 = vector.load %arg16[%360, %c0_155] : memref<16x8xf32, #tpu.memory_space<vmem>>, vector<1x8xf32>
    %c0_156 = arith.constant 0 : index
    %c0_157 = arith.constant 0 : index
    %362 = vector.load %arg17[%c0_156, %c0_157] : memref<16x8xf32, #tpu.memory_space<vmem>>, vector<1x8xf32>
    tpu.vector_store %arg17[%c0_156, %c0_157], %361 {strides = array<i32>} : memref<16x8xf32, #tpu.memory_space<vmem>>, vector<1x8xf32>,
    %c1_158 = arith.constant 1 : index
    %c0_159 = arith.constant 0 : index
    %363 = memref.load %arg2[%c1_158, %c0_159] : memref<2x8xi32, #tpu.memory_space<smem>>
    %364 = arith.index_cast %363 : i32 to index
    %c0_160 = arith.constant 0 : index
    %365 = vector.load %arg16[%364, %c0_160] : memref<16x8xf32, #tpu.memory_space<vmem>>, vector<1x8xf32>
    %c1_161 = arith.constant 1 : index
    %c0_162 = arith.constant 0 : index
    %366 = vector.load %arg17[%c1_161, %c0_162] : memref<16x8xf32, #tpu.memory_space<vmem>>, vector<1x8xf32>
    tpu.vector_store %arg17[%c1_161, %c0_162], %365 {strides = array<i32>} : memref<16x8xf32, #tpu.memory_space<vmem>>, vector<1x8xf32>,
    %c0_163 = arith.constant 0 : index
    %c1_164 = arith.constant 1 : index
    %367 = memref.load %arg2[%c0_163, %c1_164] : memref<2x8xi32, #tpu.memory_space<smem>>
    %368 = arith.index_cast %367 : i32 to index
    %c0_165 = arith.constant 0 : index
    %369 = vector.load %arg16[%368, %c0_165] : memref<16x8xf32, #tpu.memory_space<vmem>>, vector<1x8xf32>
    %c2_166 = arith.constant 2 : index
    %c0_167 = arith.constant 0 : index
    %370 = vector.load %arg17[%c2_166, %c0_167] : memref<16x8xf32, #tpu.memory_space<vmem>>, vector<1x8xf32>
    tpu.vector_store %arg17[%c2_166, %c0_167], %369 {strides = array<i32>} : memref<16x8xf32, #tpu.memory_space<vmem>>, vector<1x8xf32>,
    %c1_168 = arith.constant 1 : index
    %c1_169 = arith.constant 1 : index
    %371 = memref.load %arg2[%c1_168, %c1_169] : memref<2x8xi32, #tpu.memory_space<smem>>
    %372 = arith.index_cast %371 : i32 to index
    %c0_170 = arith.constant 0 : index
    %373 = vector.load %arg16[%372, %c0_170] : memref<16x8xf32, #tpu.memory_space<vmem>>, vector<1x8xf32>
    %c3_171 = arith.constant 3 : index
    %c0_172 = arith.constant 0 : index
    %374 = vector.load %arg17[%c3_171, %c0_172] : memref<16x8xf32, #tpu.memory_space<vmem>>, vector<1x8xf32>
    tpu.vector_store %arg17[%c3_171, %c0_172], %373 {strides = array<i32>} : memref<16x8xf32, #tpu.memory_space<vmem>>, vector<1x8xf32>,
    %c0_173 = arith.constant 0 : index
    %c2_174 = arith.constant 2 : index
    %375 = memref.load %arg2[%c0_173, %c2_174] : memref<2x8xi32, #tpu.memory_space<smem>>
    %376 = arith.index_cast %375 : i32 to index
    %c0_175 = arith.constant 0 : index
    %377 = vector.load %arg16[%376, %c0_175] : memref<16x8xf32, #tpu.memory_space<vmem>>, vector<1x8xf32>
    %c4_176 = arith.constant 4 : index
    %c0_177 = arith.constant 0 : index
    %378 = vector.load %arg17[%c4_176, %c0_177] : memref<16x8xf32, #tpu.memory_space<vmem>>, vector<1x8xf32>
    tpu.vector_store %arg17[%c4_176, %c0_177], %377 {strides = array<i32>} : memref<16x8xf32, #tpu.memory_space<vmem>>, vector<1x8xf32>,
    %c1_178 = arith.constant 1 : index
    %c2_179 = arith.constant 2 : index
    %379 = memref.load %arg2[%c1_178, %c2_179] : memref<2x8xi32, #tpu.memory_space<smem>>
    %380 = arith.index_cast %379 : i32 to index
    %c0_180 = arith.constant 0 : index
    %381 = vector.load %arg16[%380, %c0_180] : memref<16x8xf32, #tpu.memory_space<vmem>>, vector<1x8xf32>
    %c5_181 = arith.constant 5 : index
    %c0_182 = arith.constant 0 : index
    %382 = vector.load %arg17[%c5_181, %c0_182] : memref<16x8xf32, #tpu.memory_space<vmem>>, vector<1x8xf32>
    tpu.vector_store %arg17[%c5_181, %c0_182], %381 {strides = array<i32>} : memref<16x8xf32, #tpu.memory_space<vmem>>, vector<1x8xf32>,
    %c0_183 = arith.constant 0 : index
    %c3_184 = arith.constant 3 : index
    %383 = memref.load %arg2[%c0_183, %c3_184] : memref<2x8xi32, #tpu.memory_space<smem>>
    %384 = arith.index_cast %383 : i32 to index
    %c0_185 = arith.constant 0 : index
    %385 = vector.load %arg16[%384, %c0_185] : memref<16x8xf32, #tpu.memory_space<vmem>>, vector<1x8xf32>
    %c6_186 = arith.constant 6 : index
    %c0_187 = arith.constant 0 : index
    %386 = vector.load %arg17[%c6_186, %c0_187] : memref<16x8xf32, #tpu.memory_space<vmem>>, vector<1x8xf32>
    tpu.vector_store %arg17[%c6_186, %c0_187], %385 {strides = array<i32>} : memref<16x8xf32, #tpu.memory_space<vmem>>, vector<1x8xf32>,
    %c1_188 = arith.constant 1 : index
    %c3_189 = arith.constant 3 : index
    %387 = memref.load %arg2[%c1_188, %c3_189] : memref<2x8xi32, #tpu.memory_space<smem>>
    %388 = arith.index_cast %387 : i32 to index
    %c0_190 = arith.constant 0 : index
    %389 = vector.load %arg16[%388, %c0_190] : memref<16x8xf32, #tpu.memory_space<vmem>>, vector<1x8xf32>
    %c7_191 = arith.constant 7 : index
    %c0_192 = arith.constant 0 : index
    %390 = vector.load %arg17[%c7_191, %c0_192] : memref<16x8xf32, #tpu.memory_space<vmem>>, vector<1x8xf32>
    tpu.vector_store %arg17[%c7_191, %c0_192], %389 {strides = array<i32>} : memref<16x8xf32, #tpu.memory_space<vmem>>, vector<1x8xf32>,
    %c0_193 = arith.constant 0 : index
    %c4_194 = arith.constant 4 : index
    %391 = memref.load %arg2[%c0_193, %c4_194] : memref<2x8xi32, #tpu.memory_space<smem>>
    %392 = arith.index_cast %391 : i32 to index
    %c0_195 = arith.constant 0 : index
    %393 = vector.load %arg16[%392, %c0_195] : memref<16x8xf32, #tpu.memory_space<vmem>>, vector<1x8xf32>
    %c8_196 = arith.constant 8 : index
    %c0_197 = arith.constant 0 : index
    %394 = vector.load %arg17[%c8_196, %c0_197] : memref<16x8xf32, #tpu.memory_space<vmem>>, vector<1x8xf32>
    tpu.vector_store %arg17[%c8_196, %c0_197], %393 {strides = array<i32>} : memref<16x8xf32, #tpu.memory_space<vmem>>, vector<1x8xf32>,
    %c1_198 = arith.constant 1 : index
    %c4_199 = arith.constant 4 : index
    %395 = memref.load %arg2[%c1_198, %c4_199] : memref<2x8xi32, #tpu.memory_space<smem>>
    %396 = arith.index_cast %395 : i32 to index
    %c0_200 = arith.constant 0 : index
    %397 = vector.load %arg16[%396, %c0_200] : memref<16x8xf32, #tpu.memory_space<vmem>>, vector<1x8xf32>
    %c9_201 = arith.constant 9 : index
    %c0_202 = arith.constant 0 : index
    %398 = vector.load %arg17[%c9_201, %c0_202] : memref<16x8xf32, #tpu.memory_space<vmem>>, vector<1x8xf32>
    tpu.vector_store %arg17[%c9_201, %c0_202], %397 {strides = array<i32>} : memref<16x8xf32, #tpu.memory_space<vmem>>, vector<1x8xf32>,
    %c0_203 = arith.constant 0 : index
    %c5_204 = arith.constant 5 : index
    %399 = memref.load %arg2[%c0_203, %c5_204] : memref<2x8xi32, #tpu.memory_space<smem>>
    %400 = arith.index_cast %399 : i32 to index
    %c0_205 = arith.constant 0 : index
    %401 = vector.load %arg16[%400, %c0_205] : memref<16x8xf32, #tpu.memory_space<vmem>>, vector<1x8xf32>
    %c10_206 = arith.constant 10 : index
    %c0_207 = arith.constant 0 : index
    %402 = vector.load %arg17[%c10_206, %c0_207] : memref<16x8xf32, #tpu.memory_space<vmem>>, vector<1x8xf32>
    tpu.vector_store %arg17[%c10_206, %c0_207], %401 {strides = array<i32>} : memref<16x8xf32, #tpu.memory_space<vmem>>, vector<1x8xf32>,
    %c1_208 = arith.constant 1 : index
    %c5_209 = arith.constant 5 : index
    %403 = memref.load %arg2[%c1_208, %c5_209] : memref<2x8xi32, #tpu.memory_space<smem>>
    %404 = arith.index_cast %403 : i32 to index
    %c0_210 = arith.constant 0 : index
    %405 = vector.load %arg16[%404, %c0_210] : memref<16x8xf32, #tpu.memory_space<vmem>>, vector<1x8xf32>
    %c11_211 = arith.constant 11 : index
    %c0_212 = arith.constant 0 : index
    %406 = vector.load %arg17[%c11_211, %c0_212] : memref<16x8xf32, #tpu.memory_space<vmem>>, vector<1x8xf32>
    tpu.vector_store %arg17[%c11_211, %c0_212], %405 {strides = array<i32>} : memref<16x8xf32, #tpu.memory_space<vmem>>, vector<1x8xf32>,
    %c0_213 = arith.constant 0 : index
    %c6_214 = arith.constant 6 : index
    %407 = memref.load %arg2[%c0_213, %c6_214] : memref<2x8xi32, #tpu.memory_space<smem>>
    %408 = arith.index_cast %407 : i32 to index
    %c0_215 = arith.constant 0 : index
    %409 = vector.load %arg16[%408, %c0_215] : memref<16x8xf32, #tpu.memory_space<vmem>>, vector<1x8xf32>
    %c12_216 = arith.constant 12 : index
    %c0_217 = arith.constant 0 : index
    %410 = vector.load %arg17[%c12_216, %c0_217] : memref<16x8xf32, #tpu.memory_space<vmem>>, vector<1x8xf32>
    tpu.vector_store %arg17[%c12_216, %c0_217], %409 {strides = array<i32>} : memref<16x8xf32, #tpu.memory_space<vmem>>, vector<1x8xf32>,
    %c1_218 = arith.constant 1 : index
    %c6_219 = arith.constant 6 : index
    %411 = memref.load %arg2[%c1_218, %c6_219] : memref<2x8xi32, #tpu.memory_space<smem>>
    %412 = arith.index_cast %411 : i32 to index
    %c0_220 = arith.constant 0 : index
    %413 = vector.load %arg16[%412, %c0_220] : memref<16x8xf32, #tpu.memory_space<vmem>>, vector<1x8xf32>
    %c13_221 = arith.constant 13 : index
    %c0_222 = arith.constant 0 : index
    %414 = vector.load %arg17[%c13_221, %c0_222] : memref<16x8xf32, #tpu.memory_space<vmem>>, vector<1x8xf32>
    tpu.vector_store %arg17[%c13_221, %c0_222], %413 {strides = array<i32>} : memref<16x8xf32, #tpu.memory_space<vmem>>, vector<1x8xf32>,
    %c0_223 = arith.constant 0 : index
    %c7_224 = arith.constant 7 : index
    %415 = memref.load %arg2[%c0_223, %c7_224] : memref<2x8xi32, #tpu.memory_space<smem>>
    %416 = arith.index_cast %415 : i32 to index
    %c0_225 = arith.constant 0 : index
    %417 = vector.load %arg16[%416, %c0_225] : memref<16x8xf32, #tpu.memory_space<vmem>>, vector<1x8xf32>
    %c14_226 = arith.constant 14 : index
    %c0_227 = arith.constant 0 : index
    %418 = vector.load %arg17[%c14_226, %c0_227] : memref<16x8xf32, #tpu.memory_space<vmem>>, vector<1x8xf32>
    tpu.vector_store %arg17[%c14_226, %c0_227], %417 {strides = array<i32>} : memref<16x8xf32, #tpu.memory_space<vmem>>, vector<1x8xf32>,
    %c1_228 = arith.constant 1 : index
    %c7_229 = arith.constant 7 : index
    %419 = memref.load %arg2[%c1_228, %c7_229] : memref<2x8xi32, #tpu.memory_space<smem>>
    %420 = arith.index_cast %419 : i32 to index
    %c0_230 = arith.constant 0 : index
    %421 = vector.load %arg16[%420, %c0_230] : memref<16x8xf32, #tpu.memory_space<vmem>>, vector<1x8xf32>
    %c15_231 = arith.constant 15 : index
    %c0_232 = arith.constant 0 : index
    %422 = vector.load %arg17[%c15_231, %c0_232] : memref<16x8xf32, #tpu.memory_space<vmem>>, vector<1x8xf32>
    tpu.vector_store %arg17[%c15_231, %c0_232], %421 {strides = array<i32>} : memref<16x8xf32, #tpu.memory_space<vmem>>, vector<1x8xf32>,
    %c0_233 = arith.constant 0 : index
    %c0_234 = arith.constant 0 : index
    %423 = vector.load %arg17[%c0_233, %c0_234] : memref<16x8xf32, #tpu.memory_space<vmem>>, vector<16x8xf32>
    %c0_235 = arith.constant 0 : index
    %c0_236 = arith.constant 0 : index
    %424 = vector.load %arg9[%c0_235, %c0_236] : memref<8x96xf32, #tpu.memory_space<vmem>>, vector<8x96xf32>
    %cst_237 = arith.constant dense<0.000000e+00> : vector<16x96xf32>
    %425 = tpu.matmul %423, %424, %cst_237 {dimension_numbers = #tpu.dot_dimension_numbers<[1], [0], [0], [1], [0, 0, 1, 1], [], []>} : vector<16x8xf32>, vector<8x96xf32>, vector<16x96xf32> -> vector<16x96xf32>
    %c0_238 = arith.constant 0 : index
    %c0_239 = arith.constant 0 : index
    %426 = vector.load %arg11[%c0_238, %c0_239] : memref<1x96xf32, #tpu.memory_space<vmem>>, vector<1x96xf32>
    %427 = vector.broadcast %426 : vector<1x96xf32> to vector<16x96xf32>
    %428 = arith.addf %425, %427 : vector<16x96xf32>
    %429 = vector.extract_strided_slice %428 {offsets = [0, 0], sizes = [2, 96], strides = [1, 1]} : vector<16x96xf32> to vector<2x96xf32>
    %c0_240 = arith.constant 0 : index
    %c0_241 = arith.constant 0 : index
    %430 = vector.load %arg10[%c0_240, %c0_241] : memref<32x96xf32, #tpu.memory_space<vmem>>, vector<32x96xf32>
    %cst_242 = arith.constant dense<0.000000e+00> : vector<2x96xf32>
    %431 = tpu.matmul %342, %430, %cst_242 {dimension_numbers = #tpu.dot_dimension_numbers<[1], [0], [0], [1], [0, 0, 1, 1], [], []>} : vector<2x32xf32>, vector<32x96xf32>, vector<2x96xf32> -> vector<2x96xf32>
    %c0_243 = arith.constant 0 : index
    %c0_244 = arith.constant 0 : index
    %432 = vector.load %arg12[%c0_243, %c0_244] : memref<1x96xf32, #tpu.memory_space<vmem>>, vector<1x96xf32>
    %433 = vector.broadcast %432 : vector<1x96xf32> to vector<2x96xf32>
    %434 = arith.addf %431, %433 : vector<2x96xf32>
    %435 = vector.extract_strided_slice %429 {offsets = [0, 0], sizes = [2, 32], strides = [1, 1]} : vector<2x96xf32> to vector<2x32xf32>
    %436 = vector.extract_strided_slice %434 {offsets = [0, 0], sizes = [2, 32], strides = [1, 1]} : vector<2x96xf32> to vector<2x32xf32>
    %437 = arith.addf %435, %436 : vector<2x32xf32>
    %438 = arith.negf %437 : vector<2x32xf32>
    %439 = math.exp %438 : vector<2x32xf32>
    %cst_245 = arith.constant 1.000000e+00 : f32
    %440 = vector.broadcast %cst_245 : f32 to vector<2x32xf32>
    %441 = arith.addf %440, %439 : vector<2x32xf32>
    %442 = arith.divf %440, %441 : vector<2x32xf32>
    %443 = vector.extract_strided_slice %429 {offsets = [0, 32], sizes = [2, 32], strides = [1, 1]} : vector<2x96xf32> to vector<2x32xf32>
    %444 = vector.extract_strided_slice %434 {offsets = [0, 32], sizes = [2, 32], strides = [1, 1]} : vector<2x96xf32> to vector<2x32xf32>
    %445 = arith.addf %443, %444 : vector<2x32xf32>
    %446 = arith.negf %445 : vector<2x32xf32>
    %447 = math.exp %446 : vector<2x32xf32>
    %cst_246 = arith.constant 1.000000e+00 : f32
    %448 = vector.broadcast %cst_246 : f32 to vector<2x32xf32>
    %449 = arith.addf %448, %447 : vector<2x32xf32>
    %450 = arith.divf %448, %449 : vector<2x32xf32>
    %451 = vector.extract_strided_slice %429 {offsets = [0, 64], sizes = [2, 32], strides = [1, 1]} : vector<2x96xf32> to vector<2x32xf32>
    %452 = vector.extract_strided_slice %434 {offsets = [0, 64], sizes = [2, 32], strides = [1, 1]} : vector<2x96xf32> to vector<2x32xf32>
    %453 = arith.mulf %442, %452 : vector<2x32xf32>
    %454 = arith.addf %451, %453 : vector<2x32xf32>
    %455 = math.tanh %454 : vector<2x32xf32>
    %cst_247 = arith.constant 1.000000e+00 : f32
    %456 = vector.broadcast %cst_247 : f32 to vector<2x32xf32>
    %457 = arith.subf %456, %450 : vector<2x32xf32>
    %458 = arith.mulf %457, %455 : vector<2x32xf32>
    %459 = arith.mulf %450, %342 : vector<2x32xf32>
    %460 = arith.addf %458, %459 : vector<2x32xf32>
    %c0_248 = arith.constant 0 : index
    %c0_249 = arith.constant 0 : index
    %461 = vector.load %arg18[%c0_248, %c0_249] : memref<2x256xf32, #tpu.memory_space<vmem>>, vector<2x32xf32>
    tpu.vector_store %arg18[%c0_248, %c0_249], %460 {strides = array<i32>} : memref<2x256xf32, #tpu.memory_space<vmem>>, vector<2x32xf32>,
    %462 = vector.extract_strided_slice %428 {offsets = [2, 0], sizes = [2, 96], strides = [1, 1]} : vector<16x96xf32> to vector<2x96xf32>
    %c0_250 = arith.constant 0 : index
    %c0_251 = arith.constant 0 : index
    %463 = vector.load %arg10[%c0_250, %c0_251] : memref<32x96xf32, #tpu.memory_space<vmem>>, vector<32x96xf32>
    %cst_252 = arith.constant dense<0.000000e+00> : vector<2x96xf32>
    %464 = tpu.matmul %460, %463, %cst_252 {dimension_numbers = #tpu.dot_dimension_numbers<[1], [0], [0], [1], [0, 0, 1, 1], [], []>} : vector<2x32xf32>, vector<32x96xf32>, vector<2x96xf32> -> vector<2x96xf32>
    %c0_253 = arith.constant 0 : index
    %c0_254 = arith.constant 0 : index
    %465 = vector.load %arg12[%c0_253, %c0_254] : memref<1x96xf32, #tpu.memory_space<vmem>>, vector<1x96xf32>
    %466 = vector.broadcast %465 : vector<1x96xf32> to vector<2x96xf32>
    %467 = arith.addf %464, %466 : vector<2x96xf32>
    %468 = vector.extract_strided_slice %462 {offsets = [0, 0], sizes = [2, 32], strides = [1, 1]} : vector<2x96xf32> to vector<2x32xf32>
    %469 = vector.extract_strided_slice %467 {offsets = [0, 0], sizes = [2, 32], strides = [1, 1]} : vector<2x96xf32> to vector<2x32xf32>
    %470 = arith.addf %468, %469 : vector<2x32xf32>
    %471 = arith.negf %470 : vector<2x32xf32>
    %472 = math.exp %471 : vector<2x32xf32>
    %cst_255 = arith.constant 1.000000e+00 : f32
    %473 = vector.broadcast %cst_255 : f32 to vector<2x32xf32>
    %474 = arith.addf %473, %472 : vector<2x32xf32>
    %475 = arith.divf %473, %474 : vector<2x32xf32>
    %476 = vector.extract_strided_slice %462 {offsets = [0, 32], sizes = [2, 32], strides = [1, 1]} : vector<2x96xf32> to vector<2x32xf32>
    %477 = vector.extract_strided_slice %467 {offsets = [0, 32], sizes = [2, 32], strides = [1, 1]} : vector<2x96xf32> to vector<2x32xf32>
    %478 = arith.addf %476, %477 : vector<2x32xf32>
    %479 = arith.negf %478 : vector<2x32xf32>
    %480 = math.exp %479 : vector<2x32xf32>
    %cst_256 = arith.constant 1.000000e+00 : f32
    %481 = vector.broadcast %cst_256 : f32 to vector<2x32xf32>
    %482 = arith.addf %481, %480 : vector<2x32xf32>
    %483 = arith.divf %481, %482 : vector<2x32xf32>
    %484 = vector.extract_strided_slice %462 {offsets = [0, 64], sizes = [2, 32], strides = [1, 1]} : vector<2x96xf32> to vector<2x32xf32>
    %485 = vector.extract_strided_slice %467 {offsets = [0, 64], sizes = [2, 32], strides = [1, 1]} : vector<2x96xf32> to vector<2x32xf32>
    %486 = arith.mulf %475, %485 : vector<2x32xf32>
    %487 = arith.addf %484, %486 : vector<2x32xf32>
    %488 = math.tanh %487 : vector<2x32xf32>
    %cst_257 = arith.constant 1.000000e+00 : f32
    %489 = vector.broadcast %cst_257 : f32 to vector<2x32xf32>
    %490 = arith.subf %489, %483 : vector<2x32xf32>
    %491 = arith.mulf %490, %488 : vector<2x32xf32>
    %492 = arith.mulf %483, %460 : vector<2x32xf32>
    %493 = arith.addf %491, %492 : vector<2x32xf32>
    %c0_258 = arith.constant 0 : index
    %c32 = arith.constant 32 : index
    %494 = vector.load %arg18[%c0_258, %c32] : memref<2x256xf32, #tpu.memory_space<vmem>>, vector<2x32xf32>
    tpu.vector_store %arg18[%c0_258, %c32], %493 {strides = array<i32>} : memref<2x256xf32, #tpu.memory_space<vmem>>, vector<2x32xf32>,
    %495 = vector.extract_strided_slice %428 {offsets = [4, 0], sizes = [2, 96], strides = [1, 1]} : vector<16x96xf32> to vector<2x96xf32>
    %c0_259 = arith.constant 0 : index
    %c0_260 = arith.constant 0 : index
    %496 = vector.load %arg10[%c0_259, %c0_260] : memref<32x96xf32, #tpu.memory_space<vmem>>, vector<32x96xf32>
    %cst_261 = arith.constant dense<0.000000e+00> : vector<2x96xf32>
    %497 = tpu.matmul %493, %496, %cst_261 {dimension_numbers = #tpu.dot_dimension_numbers<[1], [0], [0], [1], [0, 0, 1, 1], [], []>} : vector<2x32xf32>, vector<32x96xf32>, vector<2x96xf32> -> vector<2x96xf32>
    %c0_262 = arith.constant 0 : index
    %c0_263 = arith.constant 0 : index
    %498 = vector.load %arg12[%c0_262, %c0_263] : memref<1x96xf32, #tpu.memory_space<vmem>>, vector<1x96xf32>
    %499 = vector.broadcast %498 : vector<1x96xf32> to vector<2x96xf32>
    %500 = arith.addf %497, %499 : vector<2x96xf32>
    %501 = vector.extract_strided_slice %495 {offsets = [0, 0], sizes = [2, 32], strides = [1, 1]} : vector<2x96xf32> to vector<2x32xf32>
    %502 = vector.extract_strided_slice %500 {offsets = [0, 0], sizes = [2, 32], strides = [1, 1]} : vector<2x96xf32> to vector<2x32xf32>
    %503 = arith.addf %501, %502 : vector<2x32xf32>
    %504 = arith.negf %503 : vector<2x32xf32>
    %505 = math.exp %504 : vector<2x32xf32>
    %cst_264 = arith.constant 1.000000e+00 : f32
    %506 = vector.broadcast %cst_264 : f32 to vector<2x32xf32>
    %507 = arith.addf %506, %505 : vector<2x32xf32>
    %508 = arith.divf %506, %507 : vector<2x32xf32>
    %509 = vector.extract_strided_slice %495 {offsets = [0, 32], sizes = [2, 32], strides = [1, 1]} : vector<2x96xf32> to vector<2x32xf32>
    %510 = vector.extract_strided_slice %500 {offsets = [0, 32], sizes = [2, 32], strides = [1, 1]} : vector<2x96xf32> to vector<2x32xf32>
    %511 = arith.addf %509, %510 : vector<2x32xf32>
    %512 = arith.negf %511 : vector<2x32xf32>
    %513 = math.exp %512 : vector<2x32xf32>
    %cst_265 = arith.constant 1.000000e+00 : f32
    %514 = vector.broadcast %cst_265 : f32 to vector<2x32xf32>
    %515 = arith.addf %514, %513 : vector<2x32xf32>
    %516 = arith.divf %514, %515 : vector<2x32xf32>
    %517 = vector.extract_strided_slice %495 {offsets = [0, 64], sizes = [2, 32], strides = [1, 1]} : vector<2x96xf32> to vector<2x32xf32>
    %518 = vector.extract_strided_slice %500 {offsets = [0, 64], sizes = [2, 32], strides = [1, 1]} : vector<2x96xf32> to vector<2x32xf32>
    %519 = arith.mulf %508, %518 : vector<2x32xf32>
    %520 = arith.addf %517, %519 : vector<2x32xf32>
    %521 = math.tanh %520 : vector<2x32xf32>
    %cst_266 = arith.constant 1.000000e+00 : f32
    %522 = vector.broadcast %cst_266 : f32 to vector<2x32xf32>
    %523 = arith.subf %522, %516 : vector<2x32xf32>
    %524 = arith.mulf %523, %521 : vector<2x32xf32>
    %525 = arith.mulf %516, %493 : vector<2x32xf32>
    %526 = arith.addf %524, %525 : vector<2x32xf32>
    %c0_267 = arith.constant 0 : index
    %c64 = arith.constant 64 : index
    %527 = vector.load %arg18[%c0_267, %c64] : memref<2x256xf32, #tpu.memory_space<vmem>>, vector<2x32xf32>
    tpu.vector_store %arg18[%c0_267, %c64], %526 {strides = array<i32>} : memref<2x256xf32, #tpu.memory_space<vmem>>, vector<2x32xf32>,
    %528 = vector.extract_strided_slice %428 {offsets = [6, 0], sizes = [2, 96], strides = [1, 1]} : vector<16x96xf32> to vector<2x96xf32>
    %c0_268 = arith.constant 0 : index
    %c0_269 = arith.constant 0 : index
    %529 = vector.load %arg10[%c0_268, %c0_269] : memref<32x96xf32, #tpu.memory_space<vmem>>, vector<32x96xf32>
    %cst_270 = arith.constant dense<0.000000e+00> : vector<2x96xf32>
    %530 = tpu.matmul %526, %529, %cst_270 {dimension_numbers = #tpu.dot_dimension_numbers<[1], [0], [0], [1], [0, 0, 1, 1], [], []>} : vector<2x32xf32>, vector<32x96xf32>, vector<2x96xf32> -> vector<2x96xf32>
    %c0_271 = arith.constant 0 : index
    %c0_272 = arith.constant 0 : index
    %531 = vector.load %arg12[%c0_271, %c0_272] : memref<1x96xf32, #tpu.memory_space<vmem>>, vector<1x96xf32>
    %532 = vector.broadcast %531 : vector<1x96xf32> to vector<2x96xf32>
    %533 = arith.addf %530, %532 : vector<2x96xf32>
    %534 = vector.extract_strided_slice %528 {offsets = [0, 0], sizes = [2, 32], strides = [1, 1]} : vector<2x96xf32> to vector<2x32xf32>
    %535 = vector.extract_strided_slice %533 {offsets = [0, 0], sizes = [2, 32], strides = [1, 1]} : vector<2x96xf32> to vector<2x32xf32>
    %536 = arith.addf %534, %535 : vector<2x32xf32>
    %537 = arith.negf %536 : vector<2x32xf32>
    %538 = math.exp %537 : vector<2x32xf32>
    %cst_273 = arith.constant 1.000000e+00 : f32
    %539 = vector.broadcast %cst_273 : f32 to vector<2x32xf32>
    %540 = arith.addf %539, %538 : vector<2x32xf32>
    %541 = arith.divf %539, %540 : vector<2x32xf32>
    %542 = vector.extract_strided_slice %528 {offsets = [0, 32], sizes = [2, 32], strides = [1, 1]} : vector<2x96xf32> to vector<2x32xf32>
    %543 = vector.extract_strided_slice %533 {offsets = [0, 32], sizes = [2, 32], strides = [1, 1]} : vector<2x96xf32> to vector<2x32xf32>
    %544 = arith.addf %542, %543 : vector<2x32xf32>
    %545 = arith.negf %544 : vector<2x32xf32>
    %546 = math.exp %545 : vector<2x32xf32>
    %cst_274 = arith.constant 1.000000e+00 : f32
    %547 = vector.broadcast %cst_274 : f32 to vector<2x32xf32>
    %548 = arith.addf %547, %546 : vector<2x32xf32>
    %549 = arith.divf %547, %548 : vector<2x32xf32>
    %550 = vector.extract_strided_slice %528 {offsets = [0, 64], sizes = [2, 32], strides = [1, 1]} : vector<2x96xf32> to vector<2x32xf32>
    %551 = vector.extract_strided_slice %533 {offsets = [0, 64], sizes = [2, 32], strides = [1, 1]} : vector<2x96xf32> to vector<2x32xf32>
    %552 = arith.mulf %541, %551 : vector<2x32xf32>
    %553 = arith.addf %550, %552 : vector<2x32xf32>
    %554 = math.tanh %553 : vector<2x32xf32>
    %cst_275 = arith.constant 1.000000e+00 : f32
    %555 = vector.broadcast %cst_275 : f32 to vector<2x32xf32>
    %556 = arith.subf %555, %549 : vector<2x32xf32>
    %557 = arith.mulf %556, %554 : vector<2x32xf32>
    %558 = arith.mulf %549, %526 : vector<2x32xf32>
    %559 = arith.addf %557, %558 : vector<2x32xf32>
    %c0_276 = arith.constant 0 : index
    %c96 = arith.constant 96 : index
    %560 = vector.load %arg18[%c0_276, %c96] : memref<2x256xf32, #tpu.memory_space<vmem>>, vector<2x32xf32>
    tpu.vector_store %arg18[%c0_276, %c96], %559 {strides = array<i32>} : memref<2x256xf32, #tpu.memory_space<vmem>>, vector<2x32xf32>,
    %561 = vector.extract_strided_slice %428 {offsets = [8, 0], sizes = [2, 96], strides = [1, 1]} : vector<16x96xf32> to vector<2x96xf32>
    %c0_277 = arith.constant 0 : index
    %c0_278 = arith.constant 0 : index
    %562 = vector.load %arg10[%c0_277, %c0_278] : memref<32x96xf32, #tpu.memory_space<vmem>>, vector<32x96xf32>
    %cst_279 = arith.constant dense<0.000000e+00> : vector<2x96xf32>
    %563 = tpu.matmul %559, %562, %cst_279 {dimension_numbers = #tpu.dot_dimension_numbers<[1], [0], [0], [1], [0, 0, 1, 1], [], []>} : vector<2x32xf32>, vector<32x96xf32>, vector<2x96xf32> -> vector<2x96xf32>
    %c0_280 = arith.constant 0 : index
    %c0_281 = arith.constant 0 : index
    %564 = vector.load %arg12[%c0_280, %c0_281] : memref<1x96xf32, #tpu.memory_space<vmem>>, vector<1x96xf32>
    %565 = vector.broadcast %564 : vector<1x96xf32> to vector<2x96xf32>
    %566 = arith.addf %563, %565 : vector<2x96xf32>
    %567 = vector.extract_strided_slice %561 {offsets = [0, 0], sizes = [2, 32], strides = [1, 1]} : vector<2x96xf32> to vector<2x32xf32>
    %568 = vector.extract_strided_slice %566 {offsets = [0, 0], sizes = [2, 32], strides = [1, 1]} : vector<2x96xf32> to vector<2x32xf32>
    %569 = arith.addf %567, %568 : vector<2x32xf32>
    %570 = arith.negf %569 : vector<2x32xf32>
    %571 = math.exp %570 : vector<2x32xf32>
    %cst_282 = arith.constant 1.000000e+00 : f32
    %572 = vector.broadcast %cst_282 : f32 to vector<2x32xf32>
    %573 = arith.addf %572, %571 : vector<2x32xf32>
    %574 = arith.divf %572, %573 : vector<2x32xf32>
    %575 = vector.extract_strided_slice %561 {offsets = [0, 32], sizes = [2, 32], strides = [1, 1]} : vector<2x96xf32> to vector<2x32xf32>
    %576 = vector.extract_strided_slice %566 {offsets = [0, 32], sizes = [2, 32], strides = [1, 1]} : vector<2x96xf32> to vector<2x32xf32>
    %577 = arith.addf %575, %576 : vector<2x32xf32>
    %578 = arith.negf %577 : vector<2x32xf32>
    %579 = math.exp %578 : vector<2x32xf32>
    %cst_283 = arith.constant 1.000000e+00 : f32
    %580 = vector.broadcast %cst_283 : f32 to vector<2x32xf32>
    %581 = arith.addf %580, %579 : vector<2x32xf32>
    %582 = arith.divf %580, %581 : vector<2x32xf32>
    %583 = vector.extract_strided_slice %561 {offsets = [0, 64], sizes = [2, 32], strides = [1, 1]} : vector<2x96xf32> to vector<2x32xf32>
    %584 = vector.extract_strided_slice %566 {offsets = [0, 64], sizes = [2, 32], strides = [1, 1]} : vector<2x96xf32> to vector<2x32xf32>
    %585 = arith.mulf %574, %584 : vector<2x32xf32>
    %586 = arith.addf %583, %585 : vector<2x32xf32>
    %587 = math.tanh %586 : vector<2x32xf32>
    %cst_284 = arith.constant 1.000000e+00 : f32
    %588 = vector.broadcast %cst_284 : f32 to vector<2x32xf32>
    %589 = arith.subf %588, %582 : vector<2x32xf32>
    %590 = arith.mulf %589, %587 : vector<2x32xf32>
    %591 = arith.mulf %582, %559 : vector<2x32xf32>
    %592 = arith.addf %590, %591 : vector<2x32xf32>
    %c0_285 = arith.constant 0 : index
    %c128 = arith.constant 128 : index
    %593 = vector.load %arg18[%c0_285, %c128] : memref<2x256xf32, #tpu.memory_space<vmem>>, vector<2x32xf32>
    tpu.vector_store %arg18[%c0_285, %c128], %592 {strides = array<i32>} : memref<2x256xf32, #tpu.memory_space<vmem>>, vector<2x32xf32>,
    %594 = vector.extract_strided_slice %428 {offsets = [10, 0], sizes = [2, 96], strides = [1, 1]} : vector<16x96xf32> to vector<2x96xf32>
    %c0_286 = arith.constant 0 : index
    %c0_287 = arith.constant 0 : index
    %595 = vector.load %arg10[%c0_286, %c0_287] : memref<32x96xf32, #tpu.memory_space<vmem>>, vector<32x96xf32>
    %cst_288 = arith.constant dense<0.000000e+00> : vector<2x96xf32>
    %596 = tpu.matmul %592, %595, %cst_288 {dimension_numbers = #tpu.dot_dimension_numbers<[1], [0], [0], [1], [0, 0, 1, 1], [], []>} : vector<2x32xf32>, vector<32x96xf32>, vector<2x96xf32> -> vector<2x96xf32>
    %c0_289 = arith.constant 0 : index
    %c0_290 = arith.constant 0 : index
    %597 = vector.load %arg12[%c0_289, %c0_290] : memref<1x96xf32, #tpu.memory_space<vmem>>, vector<1x96xf32>
    %598 = vector.broadcast %597 : vector<1x96xf32> to vector<2x96xf32>
    %599 = arith.addf %596, %598 : vector<2x96xf32>
    %600 = vector.extract_strided_slice %594 {offsets = [0, 0], sizes = [2, 32], strides = [1, 1]} : vector<2x96xf32> to vector<2x32xf32>
    %601 = vector.extract_strided_slice %599 {offsets = [0, 0], sizes = [2, 32], strides = [1, 1]} : vector<2x96xf32> to vector<2x32xf32>
    %602 = arith.addf %600, %601 : vector<2x32xf32>
    %603 = arith.negf %602 : vector<2x32xf32>
    %604 = math.exp %603 : vector<2x32xf32>
    %cst_291 = arith.constant 1.000000e+00 : f32
    %605 = vector.broadcast %cst_291 : f32 to vector<2x32xf32>
    %606 = arith.addf %605, %604 : vector<2x32xf32>
    %607 = arith.divf %605, %606 : vector<2x32xf32>
    %608 = vector.extract_strided_slice %594 {offsets = [0, 32], sizes = [2, 32], strides = [1, 1]} : vector<2x96xf32> to vector<2x32xf32>
    %609 = vector.extract_strided_slice %599 {offsets = [0, 32], sizes = [2, 32], strides = [1, 1]} : vector<2x96xf32> to vector<2x32xf32>
    %610 = arith.addf %608, %609 : vector<2x32xf32>
    %611 = arith.negf %610 : vector<2x32xf32>
    %612 = math.exp %611 : vector<2x32xf32>
    %cst_292 = arith.constant 1.000000e+00 : f32
    %613 = vector.broadcast %cst_292 : f32 to vector<2x32xf32>
    %614 = arith.addf %613, %612 : vector<2x32xf32>
    %615 = arith.divf %613, %614 : vector<2x32xf32>
    %616 = vector.extract_strided_slice %594 {offsets = [0, 64], sizes = [2, 32], strides = [1, 1]} : vector<2x96xf32> to vector<2x32xf32>
    %617 = vector.extract_strided_slice %599 {offsets = [0, 64], sizes = [2, 32], strides = [1, 1]} : vector<2x96xf32> to vector<2x32xf32>
    %618 = arith.mulf %607, %617 : vector<2x32xf32>
    %619 = arith.addf %616, %618 : vector<2x32xf32>
    %620 = math.tanh %619 : vector<2x32xf32>
    %cst_293 = arith.constant 1.000000e+00 : f32
    %621 = vector.broadcast %cst_293 : f32 to vector<2x32xf32>
    %622 = arith.subf %621, %615 : vector<2x32xf32>
    %623 = arith.mulf %622, %620 : vector<2x32xf32>
    %624 = arith.mulf %615, %592 : vector<2x32xf32>
    %625 = arith.addf %623, %624 : vector<2x32xf32>
    %c0_294 = arith.constant 0 : index
    %c160 = arith.constant 160 : index
    %626 = vector.load %arg18[%c0_294, %c160] : memref<2x256xf32, #tpu.memory_space<vmem>>, vector<2x32xf32>
    tpu.vector_store %arg18[%c0_294, %c160], %625 {strides = array<i32>} : memref<2x256xf32, #tpu.memory_space<vmem>>, vector<2x32xf32>,
    %627 = vector.extract_strided_slice %428 {offsets = [12, 0], sizes = [2, 96], strides = [1, 1]} : vector<16x96xf32> to vector<2x96xf32>
    %c0_295 = arith.constant 0 : index
    %c0_296 = arith.constant 0 : index
    %628 = vector.load %arg10[%c0_295, %c0_296] : memref<32x96xf32, #tpu.memory_space<vmem>>, vector<32x96xf32>
    %cst_297 = arith.constant dense<0.000000e+00> : vector<2x96xf32>
    %629 = tpu.matmul %625, %628, %cst_297 {dimension_numbers = #tpu.dot_dimension_numbers<[1], [0], [0], [1], [0, 0, 1, 1], [], []>} : vector<2x32xf32>, vector<32x96xf32>, vector<2x96xf32> -> vector<2x96xf32>
    %c0_298 = arith.constant 0 : index
    %c0_299 = arith.constant 0 : index
    %630 = vector.load %arg12[%c0_298, %c0_299] : memref<1x96xf32, #tpu.memory_space<vmem>>, vector<1x96xf32>
    %631 = vector.broadcast %630 : vector<1x96xf32> to vector<2x96xf32>
    %632 = arith.addf %629, %631 : vector<2x96xf32>
    %633 = vector.extract_strided_slice %627 {offsets = [0, 0], sizes = [2, 32], strides = [1, 1]} : vector<2x96xf32> to vector<2x32xf32>
    %634 = vector.extract_strided_slice %632 {offsets = [0, 0], sizes = [2, 32], strides = [1, 1]} : vector<2x96xf32> to vector<2x32xf32>
    %635 = arith.addf %633, %634 : vector<2x32xf32>
    %636 = arith.negf %635 : vector<2x32xf32>
    %637 = math.exp %636 : vector<2x32xf32>
    %cst_300 = arith.constant 1.000000e+00 : f32
    %638 = vector.broadcast %cst_300 : f32 to vector<2x32xf32>
    %639 = arith.addf %638, %637 : vector<2x32xf32>
    %640 = arith.divf %638, %639 : vector<2x32xf32>
    %641 = vector.extract_strided_slice %627 {offsets = [0, 32], sizes = [2, 32], strides = [1, 1]} : vector<2x96xf32> to vector<2x32xf32>
    %642 = vector.extract_strided_slice %632 {offsets = [0, 32], sizes = [2, 32], strides = [1, 1]} : vector<2x96xf32> to vector<2x32xf32>
    %643 = arith.addf %641, %642 : vector<2x32xf32>
    %644 = arith.negf %643 : vector<2x32xf32>
    %645 = math.exp %644 : vector<2x32xf32>
    %cst_301 = arith.constant 1.000000e+00 : f32
    %646 = vector.broadcast %cst_301 : f32 to vector<2x32xf32>
    %647 = arith.addf %646, %645 : vector<2x32xf32>
    %648 = arith.divf %646, %647 : vector<2x32xf32>
    %649 = vector.extract_strided_slice %627 {offsets = [0, 64], sizes = [2, 32], strides = [1, 1]} : vector<2x96xf32> to vector<2x32xf32>
    %650 = vector.extract_strided_slice %632 {offsets = [0, 64], sizes = [2, 32], strides = [1, 1]} : vector<2x96xf32> to vector<2x32xf32>
    %651 = arith.mulf %640, %650 : vector<2x32xf32>
    %652 = arith.addf %649, %651 : vector<2x32xf32>
    %653 = math.tanh %652 : vector<2x32xf32>
    %cst_302 = arith.constant 1.000000e+00 : f32
    %654 = vector.broadcast %cst_302 : f32 to vector<2x32xf32>
    %655 = arith.subf %654, %648 : vector<2x32xf32>
    %656 = arith.mulf %655, %653 : vector<2x32xf32>
    %657 = arith.mulf %648, %625 : vector<2x32xf32>
    %658 = arith.addf %656, %657 : vector<2x32xf32>
    %c0_303 = arith.constant 0 : index
    %c192 = arith.constant 192 : index
    %659 = vector.load %arg18[%c0_303, %c192] : memref<2x256xf32, #tpu.memory_space<vmem>>, vector<2x32xf32>
    tpu.vector_store %arg18[%c0_303, %c192], %658 {strides = array<i32>} : memref<2x256xf32, #tpu.memory_space<vmem>>, vector<2x32xf32>,
    %660 = vector.extract_strided_slice %428 {offsets = [14, 0], sizes = [2, 96], strides = [1, 1]} : vector<16x96xf32> to vector<2x96xf32>
    %c0_304 = arith.constant 0 : index
    %c0_305 = arith.constant 0 : index
    %661 = vector.load %arg10[%c0_304, %c0_305] : memref<32x96xf32, #tpu.memory_space<vmem>>, vector<32x96xf32>
    %cst_306 = arith.constant dense<0.000000e+00> : vector<2x96xf32>
    %662 = tpu.matmul %658, %661, %cst_306 {dimension_numbers = #tpu.dot_dimension_numbers<[1], [0], [0], [1], [0, 0, 1, 1], [], []>} : vector<2x32xf32>, vector<32x96xf32>, vector<2x96xf32> -> vector<2x96xf32>
    %c0_307 = arith.constant 0 : index
    %c0_308 = arith.constant 0 : index
    %663 = vector.load %arg12[%c0_307, %c0_308] : memref<1x96xf32, #tpu.memory_space<vmem>>, vector<1x96xf32>
    %664 = vector.broadcast %663 : vector<1x96xf32> to vector<2x96xf32>
    %665 = arith.addf %662, %664 : vector<2x96xf32>
    %666 = vector.extract_strided_slice %660 {offsets = [0, 0], sizes = [2, 32], strides = [1, 1]} : vector<2x96xf32> to vector<2x32xf32>
    %667 = vector.extract_strided_slice %665 {offsets = [0, 0], sizes = [2, 32], strides = [1, 1]} : vector<2x96xf32> to vector<2x32xf32>
    %668 = arith.addf %666, %667 : vector<2x32xf32>
    %669 = arith.negf %668 : vector<2x32xf32>
    %670 = math.exp %669 : vector<2x32xf32>
    %cst_309 = arith.constant 1.000000e+00 : f32
    %671 = vector.broadcast %cst_309 : f32 to vector<2x32xf32>
    %672 = arith.addf %671, %670 : vector<2x32xf32>
    %673 = arith.divf %671, %672 : vector<2x32xf32>
    %674 = vector.extract_strided_slice %660 {offsets = [0, 32], sizes = [2, 32], strides = [1, 1]} : vector<2x96xf32> to vector<2x32xf32>
    %675 = vector.extract_strided_slice %665 {offsets = [0, 32], sizes = [2, 32], strides = [1, 1]} : vector<2x96xf32> to vector<2x32xf32>
    %676 = arith.addf %674, %675 : vector<2x32xf32>
    %677 = arith.negf %676 : vector<2x32xf32>
    %678 = math.exp %677 : vector<2x32xf32>
    %cst_310 = arith.constant 1.000000e+00 : f32
    %679 = vector.broadcast %cst_310 : f32 to vector<2x32xf32>
    %680 = arith.addf %679, %678 : vector<2x32xf32>
    %681 = arith.divf %679, %680 : vector<2x32xf32>
    %682 = vector.extract_strided_slice %660 {offsets = [0, 64], sizes = [2, 32], strides = [1, 1]} : vector<2x96xf32> to vector<2x32xf32>
    %683 = vector.extract_strided_slice %665 {offsets = [0, 64], sizes = [2, 32], strides = [1, 1]} : vector<2x96xf32> to vector<2x32xf32>
    %684 = arith.mulf %673, %683 : vector<2x32xf32>
    %685 = arith.addf %682, %684 : vector<2x32xf32>
    %686 = math.tanh %685 : vector<2x32xf32>
    %cst_311 = arith.constant 1.000000e+00 : f32
    %687 = vector.broadcast %cst_311 : f32 to vector<2x32xf32>
    %688 = arith.subf %687, %681 : vector<2x32xf32>
    %689 = arith.mulf %688, %686 : vector<2x32xf32>
    %690 = arith.mulf %681, %658 : vector<2x32xf32>
    %691 = arith.addf %689, %690 : vector<2x32xf32>
    %c0_312 = arith.constant 0 : index
    %c224 = arith.constant 224 : index
    %692 = vector.load %arg18[%c0_312, %c224] : memref<2x256xf32, #tpu.memory_space<vmem>>, vector<2x32xf32>
    tpu.vector_store %arg18[%c0_312, %c224], %691 {strides = array<i32>} : memref<2x256xf32, #tpu.memory_space<vmem>>, vector<2x32xf32>,
    %c0_313 = arith.constant 0 : index
    %c0_314 = arith.constant 0 : index
    %693 = vector.load %arg18[%c0_313, %c0_314] : memref<2x256xf32, #tpu.memory_space<vmem>>, vector<2x256xf32>
    %c0_315 = arith.constant 0 : index
    %c0_316 = arith.constant 0 : index
    %694 = vector.load %arg13[%c0_315, %c0_316] : memref<256x10xf32, #tpu.memory_space<vmem>>, vector<256x10xf32>
    %cst_317 = arith.constant dense<0.000000e+00> : vector<2x10xf32>
    %695 = tpu.matmul %693, %694, %cst_317 {dimension_numbers = #tpu.dot_dimension_numbers<[1], [0], [0], [1], [0, 0, 1, 1], [], []>} : vector<2x256xf32>, vector<256x10xf32>, vector<2x10xf32> -> vector<2x10xf32>
    %c0_318 = arith.constant 0 : index
    %c0_319 = arith.constant 0 : index
    %696 = vector.load %arg14[%c0_318, %c0_319] : memref<1x10xf32, #tpu.memory_space<vmem>>, vector<1x10xf32>
    %697 = vector.broadcast %696 : vector<1x10xf32> to vector<2x10xf32>
    %698 = arith.addf %695, %697 : vector<2x10xf32>
    %c0_320 = arith.constant 0 : index
    %c0_321 = arith.constant 0 : index
    %699 = vector.load %arg15[%c0_320, %c0_321] : memref<2x10xf32, #tpu.memory_space<vmem>>, vector<2x10xf32>
    tpu.vector_store %arg15[%c0_320, %c0_321], %698 {strides = array<i32>} : memref<2x10xf32, #tpu.memory_space<vmem>>, vector<2x10xf32>,
    return
  }
  func.func @transform_0(%arg0: i32, %arg1: memref<2x8xi32, #tpu.memory_space<smem>>, %arg2: memref<2x8xi32, #tpu.memory_space<smem>>) -> (i32, i32) {
    %c0_i32 = arith.constant 0 : i32
    %c0_i32_0 = arith.constant 0 : i32
    %c0_i32_1 = arith.constant 0 : i32
    return %c0_i32, %c0_i32_0 : i32, i32
  }
  func.func @transform_1(%arg0: i32, %arg1: memref<2x8xi32, #tpu.memory_space<smem>>, %arg2: memref<2x8xi32, #tpu.memory_space<smem>>) -> (i32, i32) {
    %c0_i32 = arith.constant 0 : i32
    %c0_i32_0 = arith.constant 0 : i32
    %c0_i32_1 = arith.constant 0 : i32
    return %c0_i32, %c0_i32_0 : i32, i32
  }
  func.func @transform_2(%arg0: i32, %arg1: memref<2x8xi32, #tpu.memory_space<smem>>, %arg2: memref<2x8xi32, #tpu.memory_space<smem>>) -> (i32, i32) {
    %c0_i32 = arith.constant 0 : i32
    %c0_i32_0 = arith.constant 0 : i32
    %c0_i32_1 = arith.constant 0 : i32
    return %c0_i32, %c0_i32_0 : i32, i32
  }
  func.func @transform_3(%arg0: i32, %arg1: memref<2x8xi32, #tpu.memory_space<smem>>, %arg2: memref<2x8xi32, #tpu.memory_space<smem>>) -> (i32, i32) {
    %c0_i32 = arith.constant 0 : i32
    %c0_i32_0 = arith.constant 0 : i32
    %c0_i32_1 = arith.constant 0 : i32
    return %c0_i32, %c0_i32_0 : i32, i32
  }
  func.func @transform_4(%arg0: i32, %arg1: memref<2x8xi32, #tpu.memory_space<smem>>, %arg2: memref<2x8xi32, #tpu.memory_space<smem>>) -> (i32, i32) {
    %c0_i32 = arith.constant 0 : i32
    %c0_i32_0 = arith.constant 0 : i32
    %c0_i32_1 = arith.constant 0 : i32
    return %c0_i32, %c0_i32_0 : i32, i32
  }
  func.func @transform_5(%arg0: i32, %arg1: memref<2x8xi32, #tpu.memory_space<smem>>, %arg2: memref<2x8xi32, #tpu.memory_space<smem>>) -> (i32, i32) {
    %c0_i32 = arith.constant 0 : i32
    %c0_i32_0 = arith.constant 0 : i32
    %c0_i32_1 = arith.constant 0 : i32
    return %c0_i32, %c0_i32_0 : i32, i32
  }
  func.func @transform_6(%arg0: i32, %arg1: memref<2x8xi32, #tpu.memory_space<smem>>, %arg2: memref<2x8xi32, #tpu.memory_space<smem>>) -> (i32, i32) {
    %c0_i32 = arith.constant 0 : i32
    %c0_i32_0 = arith.constant 0 : i32
    %c0_i32_1 = arith.constant 0 : i32
    return %c0_i32, %c0_i32_0 : i32, i32
  }
  func.func @transform_7(%arg0: i32, %arg1: memref<2x8xi32, #tpu.memory_space<smem>>, %arg2: memref<2x8xi32, #tpu.memory_space<smem>>) -> (i32, i32) {
    %c0_i32 = arith.constant 0 : i32
    %c0_i32_0 = arith.constant 0 : i32
    %c0_i32_1 = arith.constant 0 : i32
    return %c0_i32, %c0_i32_0 : i32, i32
  }
  func.func @transform_8(%arg0: i32, %arg1: memref<2x8xi32, #tpu.memory_space<smem>>, %arg2: memref<2x8xi32, #tpu.memory_space<smem>>) -> (i32, i32) {
    %c0_i32 = arith.constant 0 : i32
    %c0_i32_0 = arith.constant 0 : i32
    %c0_i32_1 = arith.constant 0 : i32
    return %c0_i32, %c0_i32_0 : i32, i32
  }
  func.func @transform_9(%arg0: i32, %arg1: memref<2x8xi32, #tpu.memory_space<smem>>, %arg2: memref<2x8xi32, #tpu.memory_space<smem>>) -> (i32, i32) {
    %c0_i32 = arith.constant 0 : i32
    %c0_i32_0 = arith.constant 0 : i32
    %c0_i32_1 = arith.constant 0 : i32
    return %c0_i32, %c0_i32_0 : i32, i32
  }
  func.func @transform_10(%arg0: i32, %arg1: memref<2x8xi32, #tpu.memory_space<smem>>, %arg2: memref<2x8xi32, #tpu.memory_space<smem>>) -> (i32, i32) {
    %c0_i32 = arith.constant 0 : i32
    %c0_i32_0 = arith.constant 0 : i32
    %c0_i32_1 = arith.constant 0 : i32
    return %c0_i32, %c0_i32_0 : i32, i32
  }
  func.func @transform_11(%arg0: i32, %arg1: memref<2x8xi32, #tpu.memory_space<smem>>, %arg2: memref<2x8xi32, #tpu.memory_space<smem>>) -> (i32, i32) {
    %c0_i32 = arith.constant 0 : i32
    %c0_i32_0 = arith.constant 0 : i32
    %c0_i32_1 = arith.constant 0 : i32
    return %c0_i32, %c0_i32_0 : i32, i32
  }
  func.func @transform_12(%arg0: i32, %arg1: memref<2x8xi32, #tpu.memory_space<smem>>, %arg2: memref<2x8xi32, #tpu.memory_space<smem>>) -> (i32, i32) {
    %c0_i32 = arith.constant 0 : i32
    %c0_i32_0 = arith.constant 0 : i32
    %c0_i32_1 = arith.constant 0 : i32
    return %c0_i32, %c0_i32_0 : i32, i32
  }
}

</mosaic_0001>

<llo_original>
// kernel: tpu_custom_call.1
$region0: #{tpu_custom_call.1}
  #allocation0 [shape = 'u32[]', space=smem, size = 0x4, offset = 0x4, fixed_abs, tag = 'smem constant byte address 0x4 - core index']
  #allocation1 [shape = 'u32[72,128]{1,0:T(1,128)}', space=vmem, size = 0x9000, scoped, tag = 'internal scratch']
  #allocation2 [shape = 'f32[16,8]{1,0:T(8,128)}', space=vmem, size = 0x2000, scoped, tag = 'scratch operand']
  #allocation3 [shape = 'f32[16,8]{1,0:T(8,128)}', space=vmem, size = 0x2000, scoped, tag = 'scratch operand']
  #allocation4 [shape = 'f32[2,256]{1,0:T(2,128)}', space=vmem, size = 0x800, scoped, tag = 'scratch operand']
  #allocation5 [shape = 's32[1]{0}', space=sflag, size = 0x4, scoped, tag = 'scoped memory for tpu_custom_call.1']
  #allocation6 [shape = 'u8[1024]{0}', space=smem, size = 0x400, scoped, tag = 'prefetched SMEM operand 0']
  #allocation7 [shape = 'u8[1024]{0}', space=smem, size = 0x400, scoped, tag = 'prefetched SMEM operand 1']
  %s0 = inlined_call_operand.vmem [shape: s32[2,8], index: 0, kind: input, shape index: {}]
  %s1 = inlined_call_operand.vmem [shape: s32[2,8], index: 1, kind: input, shape index: {}]
  %s2 = inlined_call_operand.vmem [shape: f32[16,8], index: 2, kind: input, shape index: {}]
  %s3 = inlined_call_operand.vmem [shape: f32[16,8], index: 3, kind: input, shape index: {}]
  %s4 = inlined_call_operand.vmem [shape: f32[8,96], index: 4, kind: input, shape index: {}]
  %s5 = inlined_call_operand.vmem [shape: f32[32,96], index: 5, kind: input, shape index: {}]
  %s6 = inlined_call_operand.vmem [shape: f32[1,96], index: 6, kind: input, shape index: {}]
  %s7 = inlined_call_operand.vmem [shape: f32[1,96], index: 7, kind: input, shape index: {}]
  %s8 = inlined_call_operand.vmem [shape: f32[8,96], index: 8, kind: input, shape index: {}]
  %s9 = inlined_call_operand.vmem [shape: f32[32,96], index: 9, kind: input, shape index: {}]
  %s10 = inlined_call_operand.vmem [shape: f32[1,96], index: 10, kind: input, shape index: {}]
  %s11 = inlined_call_operand.vmem [shape: f32[1,96], index: 11, kind: input, shape index: {}]
  %s12 = inlined_call_operand.vmem [shape: f32[256,10], index: 12, kind: input, shape index: {}]
  %s13 = inlined_call_operand.vmem [shape: f32[1,10], index: 13, kind: input, shape index: {}]
  %s14 = inlined_call_operand.hbm [shape: f32[2,10], index: 14, kind: output, shape index: {}]
  %s15 = sld [smem:[#allocation0]]
  $region58: #{tpu_custom_call.1} parent=0
    _
  %s17 = ssub.s32 1, %s15
  %s18 = scalar_select 0, %s17, %s15
  %s20 = sshll.u32 %s0, 4
  %s21 = int_to_ptr.vmem [resolvable:$true] %s20
  %23 = dma.vmem_to_smem %s21, 32, [#allocation6], [#allocation5]
  %s25 = sshll.u32 %s1, 4
  %s26 = int_to_ptr.vmem [resolvable:$true] %s25
  %28 = dma.vmem_to_smem %s26, 32, [#allocation7], [#allocation5]
  %30 = dma.done [#allocation5], 64
  %31 = sfence
  $region1: #{tpu_custom_call.1} parent=0
    #allocation8 [shape = 'u8[1024]{0}', space=vmem, size = 0x400, scoped, tag = 'output window, operand 0, single buffered']
    #allocation9 [shape = 's32[1]{0}', space=sflag, size = 0x4, scoped, tag = 'scoped memory for tpu_custom_call.1']
    %32 = vsyncpa [#allocation9], 0
    // Predicated region
    $region2: #{tpu_custom_call.1} parent=1 // pred_check
      _
    $region3: #{tpu_custom_call.1} parent=1 // pred_check_branch
      %34 = sbr.rel (0) target = $region5
    $region4: #{tpu_custom_call.1} parent=1 // pred_region
      _
    $region5: #{tpu_custom_call.1} parent=1 // pred_fallthru
      _
    // Predicated region
    $region6: #{tpu_custom_call.1} parent=1 // pred_check
      _
    $region7: #{tpu_custom_call.1} parent=1 // pred_check_branch
      %36 = sbr.rel (0) target = $region9
    $region8: #{tpu_custom_call.1} parent=1 // pred_region
      _
    $region9: #{tpu_custom_call.1} parent=1 // pred_fallthru
      _
    // Predicated region
    $region10: #{tpu_custom_call.1} parent=1 // pred_check
      _
    $region11: #{tpu_custom_call.1} parent=1 // pred_check_branch
      %38 = sbr.rel (0) target = $region13
    $region12: #{tpu_custom_call.1} parent=1 // pred_region
      _
    $region13: #{tpu_custom_call.1} parent=1 // pred_fallthru
      _
    // Predicated region
    $region14: #{tpu_custom_call.1} parent=1 // pred_check
      _
    $region15: #{tpu_custom_call.1} parent=1 // pred_check_branch
      %40 = sbr.rel (0) target = $region17
    $region16: #{tpu_custom_call.1} parent=1 // pred_region
      _
    $region17: #{tpu_custom_call.1} parent=1 // pred_fallthru
      _
    // Predicated region
    $region18: #{tpu_custom_call.1} parent=1 // pred_check
      _
    $region19: #{tpu_custom_call.1} parent=1 // pred_check_branch
      %42 = sbr.rel (0) target = $region21
    $region20: #{tpu_custom_call.1} parent=1 // pred_region
      _
    $region21: #{tpu_custom_call.1} parent=1 // pred_fallthru
      _
    // Predicated region
    $region22: #{tpu_custom_call.1} parent=1 // pred_check
      _
    $region23: #{tpu_custom_call.1} parent=1 // pred_check_branch
      %44 = sbr.rel (0) target = $region25
    $region24: #{tpu_custom_call.1} parent=1 // pred_region
      _
    $region25: #{tpu_custom_call.1} parent=1 // pred_fallthru
      _
    // Predicated region
    $region26: #{tpu_custom_call.1} parent=1 // pred_check
      _
    $region27: #{tpu_custom_call.1} parent=1 // pred_check_branch
      %46 = sbr.rel (0) target = $region29
    $region28: #{tpu_custom_call.1} parent=1 // pred_region
      _
    $region29: #{tpu_custom_call.1} parent=1 // pred_fallthru
      _
    // Predicated region
    $region30: #{tpu_custom_call.1} parent=1 // pred_check
      _
    $region31: #{tpu_custom_call.1} parent=1 // pred_check_branch
      %48 = sbr.rel (0) target = $region33
    $region32: #{tpu_custom_call.1} parent=1 // pred_region
      _
    $region33: #{tpu_custom_call.1} parent=1 // pred_fallthru
      _
    // Predicated region
    $region34: #{tpu_custom_call.1} parent=1 // pred_check
      _
    $region35: #{tpu_custom_call.1} parent=1 // pred_check_branch
      %50 = sbr.rel (0) target = $region37
    $region36: #{tpu_custom_call.1} parent=1 // pred_region
      _
    $region37: #{tpu_custom_call.1} parent=1 // pred_fallthru
      _
    // Predicated region
    $region38: #{tpu_custom_call.1} parent=1 // pred_check
      _
    $region39: #{tpu_custom_call.1} parent=1 // pred_check_branch
      %52 = sbr.rel (0) target = $region41
    $region40: #{tpu_custom_call.1} parent=1 // pred_region
      _
    $region41: #{tpu_custom_call.1} parent=1 // pred_fallthru
      _
    // Predicated region
    $region42: #{tpu_custom_call.1} parent=1 // pred_check
      _
    $region43: #{tpu_custom_call.1} parent=1 // pred_check_branch
      %54 = sbr.rel (0) target = $region45
    $region44: #{tpu_custom_call.1} parent=1 // pred_region
      _
    $region45: #{tpu_custom_call.1} parent=1 // pred_fallthru
      _
    // Predicated region
    $region46: #{tpu_custom_call.1} parent=1 // pred_check
      _
    $region47: #{tpu_custom_call.1} parent=1 // pred_check_branch
      %56 = sbr.rel (0) target = $region49
    $region48: #{tpu_custom_call.1} parent=1 // pred_region
      _
    $region49: #{tpu_custom_call.1} parent=1 // pred_fallthru
      _
    %v57 = vld [vmem:[%s2] sm:$0xff]
    %v58 = vld [vmem:[%s2 + $0x8] sm:$0xff]
    %v59 = vmul.f32 %v57, %v57
    %v60 = vmul.f32 %v58, %v58
    %vm61 = vcmask 64512
    %v62 = vsel %vm61, %v59, 0.0
    %63 = vadd.xlane.f32.xlu0 %v62
    %v64 = vpop.xlane.xlu0 %63
    %v65 = vsel %vm61, %v60, 0.0
    %66 = vadd.xlane.f32.xlu0 %v65
    %v67 = vpop.xlane.xlu0 %66
    %v68 = vrsqrt.pop %v64
    %v69 = vmul.f32 %v68, %v64
    %v70 = vmul.f32 %v69, %v68
    %v71 = vmul.f32 0.5, %v70
    %v72 = vsub.f32 1.5, %v71
    %v73 = vmul.f32 %v68, %v72
    %v74 = vmul.f32 %v64, %v73
    %vm75 = vcmp.eq.f32.partialorder %v64, inf
    %v76 = vsel %vm75, %v64, %v74
    %vm77 = vcmp.eq.f32.partialorder %v64, 0.0
    %v78 = vand.u32 %v64, 2147483648
    %v79 = vsel %vm77, %v78, %v76
    %v80 = vrsqrt.pop %v67
    %v81 = vmul.f32 %v80, %v67
    %v82 = vmul.f32 %v81, %v80
    %v83 = vmul.f32 0.5, %v82
    %v84 = vsub.f32 1.5, %v83
    %v85 = vmul.f32 %v80, %v84
    %v86 = vmul.f32 %v67, %v85
    %vm87 = vcmp.eq.f32.partialorder %v67, inf
    %v88 = vsel %vm87, %v67, %v86
    %vm89 = vcmp.eq.f32.partialorder %v67, 0.0
    %v90 = vand.u32 %v67, 2147483648
    %v91 = vsel %vm89, %v90, %v88
    %vm92 = vcmp.gt.f32.partialorder %v79, 1.0
    %vm93 = vcmp.gt.f32.partialorder %v91, 1.0
    %v94 = vadd.f32 %v79, 1e-07
    %v95 = vadd.f32 %v91, 1e-07
    %v96 = vrcp.pop %v94
    %v97 = vmul.f32 %v94, %v96
    %v98 = vsub.f32 1.0, %v97
    %v99 = vmul.f32 %v96, %v98
    %v100 = vadd.f32 %v96, %v99
    %vm101 = vweird.f32 %v94
    %vm102 = vweird.f32 %v96
    %vm103 = vmor %vm101, %vm102
    %v104 = vsel %vm103, %v96, %v100
    %v105 = vand.u32 2147483647, %v94
    %vm106 = vcmp.eq.f32.partialorder %v105, 8.507059e+37
    %v107 = vand.u32 %v94, 2147483648
    %v108 = vor.u32 1.1754944e-38, %v107
    %v109 = vsel %vm106, %v108, %v104
    %v110 = vmul.f32 1.0, %v109
    %v111 = vrcp.pop %v95
    %v112 = vmul.f32 %v95, %v111
    %v113 = vsub.f32 1.0, %v112
    %v114 = vmul.f32 %v111, %v113
    %v115 = vadd.f32 %v111, %v114
    %vm116 = vweird.f32 %v95
    %vm117 = vweird.f32 %v111
    %vm118 = vmor %vm116, %vm117
    %v119 = vsel %vm118, %v111, %v115
    %v120 = vand.u32 2147483647, %v95
    %vm121 = vcmp.eq.f32.partialorder %v120, 8.507059e+37
    %v122 = vand.u32 %v95, 2147483648
    %v123 = vor.u32 1.1754944e-38, %v122
    %v124 = vsel %vm121, %v123, %v119
    %v125 = vmul.f32 1.0, %v124
    %v126 = vsel %vm92, %v110, 1.0
    %v127 = vsel %vm93, %v125, 1.0
    %v128 = vmul.f32 %v57, %v126
    %v129 = vmul.f32 %v58, %v127
    %130 = vst.msk [vmem:[#allocation2] sm:$0xff] %vm61, %v128
    %131 = vst.msk [vmem:[#allocation2 + $0x8] sm:$0xff] %vm61, %v129
    %s132 = sld [smem:[#allocation6]]
    %s133 = scalar_lea.vmem [#allocation2], %s132
    %v134 = vld [vmem:[%s133] sm:$0x1]
    %vm135 = vcmask 57344
    %136 = vst.msk [vmem:[#allocation3] sm:$0x1] %vm135, %v134
    %s137 = sld [smem:[#allocation6 + $0x80]]
    %s138 = scalar_lea.vmem [#allocation2], %s137
    %v139 = vld [vmem:[%s138] sm:$0x1]
    %140 = vst.msk [vmem:[#allocation3 + $0x1] sm:$0x1] %vm135, %v139
    %s141 = sld [smem:[#allocation6 + $0x1]]
    %s142 = scalar_lea.vmem [#allocation2], %s141
    %v143 = vld [vmem:[%s142] sm:$0x1]
    %144 = vst.msk [vmem:[#allocation3 + $0x2] sm:$0x1] %vm135, %v143
    %s145 = sld [smem:[#allocation6 + $0x81]]
    %s146 = scalar_lea.vmem [#allocation2], %s145
    %v147 = vld [vmem:[%s146] sm:$0x1]
    %148 = vst.msk [vmem:[#allocation3 + $0x3] sm:$0x1] %vm135, %v147
    %s149 = sld [smem:[#allocation6 + $0x2]]
    %s150 = scalar_lea.vmem [#allocation2], %s149
    %v151 = vld [vmem:[%s150] sm:$0x1]
    %152 = vst.msk [vmem:[#allocation3 + $0x4] sm:$0x1] %vm135, %v151
    %s153 = sld [smem:[#allocation6 + $0x82]]
    %s154 = scalar_lea.vmem [#allocation2], %s153
    %v155 = vld [vmem:[%s154] sm:$0x1]
    %156 = vst.msk [vmem:[#allocation3 + $0x5] sm:$0x1] %vm135, %v155
    %s157 = sld [smem:[#allocation6 + $0x3]]
    %s158 = scalar_lea.vmem [#allocation2], %s157
    %v159 = vld [vmem:[%s158] sm:$0x1]
    %160 = vst.msk [vmem:[#allocation3 + $0x6] sm:$0x1] %vm135, %v159
    %s161 = sld [smem:[#allocation6 + $0x83]]
    %s162 = scalar_lea.vmem [#allocation2], %s161
    %v163 = vld [vmem:[%s162] sm:$0x1]
    %164 = vst.msk [vmem:[#allocation3 + $0x7] sm:$0x1] %vm135, %v163
    %s165 = sld [smem:[#allocation6 + $0x4]]
    %s166 = scalar_lea.vmem [#allocation2], %s165
    %v167 = vld [vmem:[%s166] sm:$0x1]
    %168 = vst.msk [vmem:[#allocation3 + $0x8] sm:$0x1] %vm135, %v167
    %s169 = sld [smem:[#allocation6 + $0x84]]
    %s170 = scalar_lea.vmem [#allocation2], %s169
    %v171 = vld [vmem:[%s170] sm:$0x1]
    %172 = vst.msk [vmem:[#allocation3 + $0x9] sm:$0x1] %vm135, %v171
    %s173 = sld [smem:[#allocation6 + $0x5]]
    %s174 = scalar_lea.vmem [#allocation2], %s173
    %v175 = vld [vmem:[%s174] sm:$0x1]
    %176 = vst.msk [vmem:[#allocation3 + $0xa] sm:$0x1] %vm135, %v175
    %s177 = sld [smem:[#allocation6 + $0x85]]
    %s178 = scalar_lea.vmem [#allocation2], %s177
    %v179 = vld [vmem:[%s178] sm:$0x1]
    %180 = vst.msk [vmem:[#allocation3 + $0xb] sm:$0x1] %vm135, %v179
    %s181 = sld [smem:[#allocation6 + $0x6]]
    %s182 = scalar_lea.vmem [#allocation2], %s181
    %v183 = vld [vmem:[%s182] sm:$0x1]
    %184 = vst.msk [vmem:[#allocation3 + $0xc] sm:$0x1] %vm135, %v183
    %s185 = sld [smem:[#allocation6 + $0x86]]
    %s186 = scalar_lea.vmem [#allocation2], %s185
    %v187 = vld [vmem:[%s186] sm:$0x1]
    %188 = vst.msk [vmem:[#allocation3 + $0xd] sm:$0x1] %vm135, %v187
    %s189 = sld [smem:[#allocation6 + $0x7]]
    %s190 = scalar_lea.vmem [#allocation2], %s189
    %v191 = vld [vmem:[%s190] sm:$0x1]
    %192 = vst.msk [vmem:[#allocation3 + $0xe] sm:$0x1] %vm135, %v191
    %s193 = sld [smem:[#allocation6 + $0x87]]
    %s194 = scalar_lea.vmem [#allocation2], %s193
    %v195 = vld [vmem:[%s194] sm:$0x1]
    %196 = vst.msk [vmem:[#allocation3 + $0xf] sm:$0x1] %vm135, %v195
    %v197 = vld [vmem:[#allocation3] sm:$0xff]
    %v198 = vld [vmem:[#allocation3 + $0x8] sm:$0xff]
    %v199 = vld [vmem:[%s4] sm:$0xff]
    %v200 = vld [vmem:[%s6] sm:$0x1]
    %v202 = vperm.slane %v200, 0
    %v205 = vsel %vm61, %v197, 0
    %v208 = vsel %vm61, %v198, 0
    %210 = vmatpush.msra.mxu0 0.0
    %211 = vmatpush.msra.mxu0 0.0
    %212 = vmatpush.msra.mxu0 0.0
    %213 = vmatpush.msra.mxu0 0.0
    %214 = vmatpush.msra.mxu0 0.0
    %215 = vmatpush.msra.mxu0 0.0
    %216 = vmatpush.msra.mxu0 0.0
    %217 = vmatpush.msra.mxu0 0.0
    %218 = vmatpush.msra.mxu0 0.0
    %219 = vmatpush.msra.mxu0 0.0
    %220 = vmatpush.msra.mxu0 0.0
    %221 = vmatpush.msra.mxu0 0.0
    %222 = vmatpush.msra.mxu0 0.0
    %223 = vmatpush.msra.mxu0 0.0
    %224 = vmatpush.msra.mxu0 0.0
    %225 = vmatpush.msra.mxu0 %v199
    %226 = vmatmul.f32.gmra.mxu0 %v205
    %v227 = vpop.f32.mrf.mxu0
    %v228 = vadd.f32 %v202, %v227
    %229 = vmatmul.f32.gmra.mxu0 %v208
    %v230 = vpop.f32.mrf.mxu0
    %v231 = vadd.f32 %v202, %v230
    %232 = vdwg.mxu0
    %v233 = vld [vmem:[%s5] sm:$0xff]
    %v234 = vld [vmem:[%s5 + $0x8] sm:$0xff]
    %v235 = vld [vmem:[%s5 + $0x10] sm:$0xff]
    %v236 = vld [vmem:[%s5 + $0x18] sm:$0xff]
    %v237 = vld [vmem:[%s7] sm:$0x1]
    %v239 = vperm.slane %v237, 0
    %vm241 = vcmask 261120
    %v243 = vsel %vm241, 0.0, 0
    %245 = vmatpush.msra.mxu0 0.0
    %246 = vmatpush.msra.mxu0 0.0
    %247 = vmatpush.msra.mxu0 0.0
    %248 = vmatpush.msra.mxu0 0.0
    %249 = vmatpush.msra.mxu0 0.0
    %250 = vmatpush.msra.mxu0 0.0
    %251 = vmatpush.msra.mxu0 0.0
    %252 = vmatpush.msra.mxu0 0.0
    %253 = vmatpush.msra.mxu0 0.0
    %254 = vmatpush.msra.mxu0 0.0
    %255 = vmatpush.msra.mxu0 0.0
    %256 = vmatpush.msra.mxu0 0.0
    %257 = vmatpush.msra.mxu0 %v236
    %258 = vmatpush.msra.mxu0 %v235
    %259 = vmatpush.msra.mxu0 %v234
    %260 = vmatpush.msra.mxu0 %v233
    %261 = vmatmul.f32.gmra.mxu0 %v243
    %v262 = vpop.f32.mrf.mxu0
    %v263 = vadd.f32 %v239, %v262
    %264 = vdwg.mxu0
    %v265 = vadd.f32 %v228, %v263
    %v266 = vxor.u32 %v265, 2147483648
    %v267 = vmul.f32 %v266, 1.442695
    %v268 = vpow.pop %v267
    %v269 = vadd.f32 %v268, 1.0
    %v270 = vrcp.pop %v269
    %v271 = vmul.f32 %v269, %v270
    %v272 = vsub.f32 1.0, %v271
    %v273 = vmul.f32 %v270, %v272
    %v274 = vadd.f32 %v270, %v273
    %vm275 = vweird.f32 %v269
    %vm276 = vweird.f32 %v270
    %vm277 = vmor %vm275, %vm276
    %v278 = vsel %vm277, %v270, %v274
    %v279 = vand.u32 2147483647, %v269
    %vm280 = vcmp.eq.f32.partialorder %v279, 8.507059e+37
    %v281 = vand.u32 %v269, 2147483648
    %v282 = vor.u32 1.1754944e-38, %v281
    %v283 = vsel %vm280, %v282, %v278
    %v284 = vmul.f32 1.0, %v283
    %286 = vrot.lane.b32.xlu0 %v263, 64
    %v287 = vpop.permute.xlu0 %286
    %v289 = vmul.f32 %v284, %v287
    %291 = vrot.lane.b32.xlu0 %v289, 64
    %v292 = vpop.permute.xlu0 %291
    %v294 = vadd.f32 %v228, %v292
    %v295 = vtanh.pop %v294
    %v296 = vsub.f32 1.0, %v284
    %298 = vrot.lane.b32.xlu0 %v295, 96
    %v299 = vpop.permute.xlu0 %298
    %v301 = vmul.f32 %v296, %v299
    %v302 = vmul.f32 %v284, 0.0
    %v303 = vadd.f32 %v301, %v302
    %305 = vrot.lane.b32.xlu0 %v303, 96
    %v306 = vpop.permute.xlu0 %305
    %v307 = vsel %vm241, %v306, 0
    %309 = vmatpush.msra.mxu0 0.0
    %310 = vmatpush.msra.mxu0 0.0
    %311 = vmatpush.msra.mxu0 0.0
    %312 = vmatpush.msra.mxu0 0.0
    %313 = vmatpush.msra.mxu0 0.0
    %314 = vmatpush.msra.mxu0 0.0
    %315 = vmatpush.msra.mxu0 0.0
    %316 = vmatpush.msra.mxu0 0.0
    %317 = vmatpush.msra.mxu0 0.0
    %318 = vmatpush.msra.mxu0 0.0
    %319 = vmatpush.msra.mxu0 0.0
    %320 = vmatpush.msra.mxu0 0.0
    %321 = vmatpush.msra.mxu0 %v236
    %322 = vmatpush.msra.mxu0 %v235
    %323 = vmatpush.msra.mxu0 %v234
    %324 = vmatpush.msra.mxu0 %v233
    %325 = vmatmul.f32.gmra.mxu0 %v307
    %v326 = vpop.f32.mrf.mxu0
    %v327 = vadd.f32 %v239, %v326
    %328 = vdwg.mxu0
    %v330 = vrot.slane %v327, 6
    %v332 = vadd.f32 %v228, %v330
    %v333 = vxor.u32 %v332, 2147483648
    %v334 = vmul.f32 %v333, 1.442695
    %v335 = vpow.pop %v334
    %v336 = vadd.f32 %v335, 1.0
    %v337 = vrcp.pop %v336
    %v338 = vmul.f32 %v336, %v337
    %v339 = vsub.f32 1.0, %v338
    %v340 = vmul.f32 %v337, %v339
    %v341 = vadd.f32 %v337, %v340
    %vm342 = vweird.f32 %v336
    %vm343 = vweird.f32 %v337
    %vm344 = vmor %vm342, %vm343
    %v345 = vsel %vm344, %v337, %v341
    %v346 = vand.u32 2147483647, %v336
    %vm347 = vcmp.eq.f32.partialorder %v346, 8.507059e+37
    %v348 = vand.u32 %v336, 2147483648
    %v349 = vor.u32 1.1754944e-38, %v348
    %v350 = vsel %vm347, %v349, %v345
    %v351 = vmul.f32 1.0, %v350
    %352 = vrot.lane.b32.xlu0 %v330, 64
    %v353 = vpop.permute.xlu0 %352
    %v355 = vmul.f32 %v351, %v353
    %357 = vrot.lane.b32.xlu0 %v355, 64
    %v358 = vpop.permute.xlu0 %357
    %v360 = vadd.f32 %v228, %v358
    %v361 = vtanh.pop %v360
    %v362 = vsub.f32 1.0, %v351
    %364 = vrot.lane.b32.xlu0 %v361, 96
    %v365 = vpop.permute.xlu0 %364
    %v367 = vmul.f32 %v362, %v365
    %v368 = vrot.slane %v303, 6
    %v370 = vmul.f32 %v351, %v368
    %v371 = vadd.f32 %v367, %v370
    %v373 = vrot.slane %v371, 2
    %374 = vrot.lane.b32.xlu0 %v373, 96
    %v375 = vpop.permute.xlu0 %374
    %v376 = vsel %vm241, %v375, 0
    %378 = vmatpush.msra.mxu0 0.0
    %379 = vmatpush.msra.mxu0 0.0
    %380 = vmatpush.msra.mxu0 0.0
    %381 = vmatpush.msra.mxu0 0.0
    %382 = vmatpush.msra.mxu0 0.0
    %383 = vmatpush.msra.mxu0 0.0
    %384 = vmatpush.msra.mxu0 0.0
    %385 = vmatpush.msra.mxu0 0.0
    %386 = vmatpush.msra.mxu0 0.0
    %387 = vmatpush.msra.mxu0 0.0
    %388 = vmatpush.msra.mxu0 0.0
    %389 = vmatpush.msra.mxu0 0.0
    %390 = vmatpush.msra.mxu0 %v236
    %391 = vmatpush.msra.mxu0 %v235
    %392 = vmatpush.msra.mxu0 %v234
    %393 = vmatpush.msra.mxu0 %v233
    %394 = vmatmul.f32.gmra.mxu0 %v376
    %v395 = vpop.f32.mrf.mxu0
    %v396 = vadd.f32 %v239, %v395
    %397 = vdwg.mxu0
    %v399 = vrot.slane %v396, 4
    %v401 = vadd.f32 %v228, %v399
    %v402 = vxor.u32 %v401, 2147483648
    %v403 = vmul.f32 %v402, 1.442695
    %v404 = vpow.pop %v403
    %v405 = vadd.f32 %v404, 1.0
    %v406 = vrcp.pop %v405
    %v407 = vmul.f32 %v405, %v406
    %v408 = vsub.f32 1.0, %v407
    %v409 = vmul.f32 %v406, %v408
    %v410 = vadd.f32 %v406, %v409
    %vm411 = vweird.f32 %v405
    %vm412 = vweird.f32 %v406
    %vm413 = vmor %vm411, %vm412
    %v414 = vsel %vm413, %v406, %v410
    %v415 = vand.u32 2147483647, %v405
    %vm416 = vcmp.eq.f32.partialorder %v415, 8.507059e+37
    %v417 = vand.u32 %v405, 2147483648
    %v418 = vor.u32 1.1754944e-38, %v417
    %v419 = vsel %vm416, %v418, %v414
    %v420 = vmul.f32 1.0, %v419
    %421 = vrot.lane.b32.xlu0 %v399, 64
    %v422 = vpop.permute.xlu0 %421
    %v424 = vmul.f32 %v420, %v422
    %426 = vrot.lane.b32.xlu0 %v424, 64
    %v427 = vpop.permute.xlu0 %426
    %v429 = vadd.f32 %v228, %v427
    %v430 = vtanh.pop %v429
    %v431 = vsub.f32 1.0, %v420
    %433 = vrot.lane.b32.xlu0 %v430, 96
    %v434 = vpop.permute.xlu0 %433
    %v436 = vmul.f32 %v431, %v434
    %v437 = vrot.slane %v371, 6
    %v439 = vmul.f32 %v420, %v437
    %v440 = vadd.f32 %v436, %v439
    %v442 = vrot.slane %v440, 4
    %443 = vrot.lane.b32.xlu0 %v442, 96
    %v444 = vpop.permute.xlu0 %443
    %v445 = vsel %vm241, %v444, 0
    %447 = vmatpush.msra.mxu0 0.0
    %448 = vmatpush.msra.mxu0 0.0
    %449 = vmatpush.msra.mxu0 0.0
    %450 = vmatpush.msra.mxu0 0.0
    %451 = vmatpush.msra.mxu0 0.0
    %452 = vmatpush.msra.mxu0 0.0
    %453 = vmatpush.msra.mxu0 0.0
    %454 = vmatpush.msra.mxu0 0.0
    %455 = vmatpush.msra.mxu0 0.0
    %456 = vmatpush.msra.mxu0 0.0
    %457 = vmatpush.msra.mxu0 0.0
    %458 = vmatpush.msra.mxu0 0.0
    %459 = vmatpush.msra.mxu0 %v236
    %460 = vmatpush.msra.mxu0 %v235
    %461 = vmatpush.msra.mxu0 %v234
    %462 = vmatpush.msra.mxu0 %v233
    %463 = vmatmul.f32.gmra.mxu0 %v445
    %v464 = vpop.f32.mrf.mxu0
    %v465 = vadd.f32 %v239, %v464
    %466 = vdwg.mxu0
    %v468 = vrot.slane %v465, 2
    %v470 = vadd.f32 %v228, %v468
    %v471 = vxor.u32 %v470, 2147483648
    %v472 = vmul.f32 %v471, 1.442695
    %v473 = vpow.pop %v472
    %v474 = vadd.f32 %v473, 1.0
    %v475 = vrcp.pop %v474
    %v476 = vmul.f32 %v474, %v475
    %v477 = vsub.f32 1.0, %v476
    %v478 = vmul.f32 %v475, %v477
    %v479 = vadd.f32 %v475, %v478
    %vm480 = vweird.f32 %v474
    %vm481 = vweird.f32 %v475
    %vm482 = vmor %vm480, %vm481
    %v483 = vsel %vm482, %v475, %v479
    %v484 = vand.u32 2147483647, %v474
    %vm485 = vcmp.eq.f32.partialorder %v484, 8.507059e+37
    %v486 = vand.u32 %v474, 2147483648
    %v487 = vor.u32 1.1754944e-38, %v486
    %v488 = vsel %vm485, %v487, %v483
    %v489 = vmul.f32 1.0, %v488
    %490 = vrot.lane.b32.xlu0 %v468, 64
    %v491 = vpop.permute.xlu0 %490
    %v493 = vmul.f32 %v489, %v491
    %495 = vrot.lane.b32.xlu0 %v493, 64
    %v496 = vpop.permute.xlu0 %495
    %v498 = vadd.f32 %v228, %v496
    %v499 = vtanh.pop %v498
    %v500 = vsub.f32 1.0, %v489
    %502 = vrot.lane.b32.xlu0 %v499, 96
    %v503 = vpop.permute.xlu0 %502
    %v505 = vmul.f32 %v500, %v503
    %v506 = vrot.slane %v440, 6
    %v508 = vmul.f32 %v489, %v506
    %v509 = vadd.f32 %v505, %v508
    %v511 = vrot.slane %v509, 6
    %512 = vrot.lane.b32.xlu0 %v511, 96
    %v513 = vpop.permute.xlu0 %512
    %v514 = vsel %vm241, %v513, 0
    %516 = vmatpush.msra.mxu0 0.0
    %517 = vmatpush.msra.mxu0 0.0
    %518 = vmatpush.msra.mxu0 0.0
    %519 = vmatpush.msra.mxu0 0.0
    %520 = vmatpush.msra.mxu0 0.0
    %521 = vmatpush.msra.mxu0 0.0
    %522 = vmatpush.msra.mxu0 0.0
    %523 = vmatpush.msra.mxu0 0.0
    %524 = vmatpush.msra.mxu0 0.0
    %525 = vmatpush.msra.mxu0 0.0
    %526 = vmatpush.msra.mxu0 0.0
    %527 = vmatpush.msra.mxu0 0.0
    %528 = vmatpush.msra.mxu0 %v236
    %529 = vmatpush.msra.mxu0 %v235
    %530 = vmatpush.msra.mxu0 %v234
    %531 = vmatpush.msra.mxu0 %v233
    %532 = vmatmul.f32.gmra.mxu0 %v514
    %v533 = vpop.f32.mrf.mxu0
    %v534 = vadd.f32 %v239, %v533
    %535 = vdwg.mxu0
    %v536 = vadd.f32 %v231, %v534
    %v537 = vxor.u32 %v536, 2147483648
    %v538 = vmul.f32 %v537, 1.442695
    %v539 = vpow.pop %v538
    %v540 = vadd.f32 %v539, 1.0
    %v541 = vrcp.pop %v540
    %v542 = vmul.f32 %v540, %v541
    %v543 = vsub.f32 1.0, %v542
    %v544 = vmul.f32 %v541, %v543
    %v545 = vadd.f32 %v541, %v544
    %vm546 = vweird.f32 %v540
    %vm547 = vweird.f32 %v541
    %vm548 = vmor %vm546, %vm547
    %v549 = vsel %vm548, %v541, %v545
    %v550 = vand.u32 2147483647, %v540
    %vm551 = vcmp.eq.f32.partialorder %v550, 8.507059e+37
    %v552 = vand.u32 %v540, 2147483648
    %v553 = vor.u32 1.1754944e-38, %v552
    %v554 = vsel %vm551, %v553, %v549
    %v555 = vmul.f32 1.0, %v554
    %557 = vrot.lane.b32.xlu0 %v534, 64
    %v558 = vpop.permute.xlu0 %557
    %v560 = vmul.f32 %v555, %v558
    %562 = vrot.lane.b32.xlu0 %v560, 64
    %v563 = vpop.permute.xlu0 %562
    %v565 = vadd.f32 %v231, %v563
    %v566 = vtanh.pop %v565
    %v567 = vsub.f32 1.0, %v555
    %569 = vrot.lane.b32.xlu0 %v566, 96
    %v570 = vpop.permute.xlu0 %569
    %v572 = vmul.f32 %v567, %v570
    %v574 = vmul.f32 %v555, %v511
    %v575 = vadd.f32 %v572, %v574
    %577 = vrot.lane.b32.xlu0 %v575, 96
    %v578 = vpop.permute.xlu0 %577
    %v579 = vsel %vm241, %v578, 0
    %581 = vmatpush.msra.mxu0 0.0
    %582 = vmatpush.msra.mxu0 0.0
    %583 = vmatpush.msra.mxu0 0.0
    %584 = vmatpush.msra.mxu0 0.0
    %585 = vmatpush.msra.mxu0 0.0
    %586 = vmatpush.msra.mxu0 0.0
    %587 = vmatpush.msra.mxu0 0.0
    %588 = vmatpush.msra.mxu0 0.0
    %589 = vmatpush.msra.mxu0 0.0
    %590 = vmatpush.msra.mxu0 0.0
    %591 = vmatpush.msra.mxu0 0.0
    %592 = vmatpush.msra.mxu0 0.0
    %593 = vmatpush.msra.mxu0 %v236
    %594 = vmatpush.msra.mxu0 %v235
    %595 = vmatpush.msra.mxu0 %v234
    %596 = vmatpush.msra.mxu0 %v233
    %597 = vmatmul.f32.gmra.mxu0 %v579
    %v598 = vpop.f32.mrf.mxu0
    %v599 = vadd.f32 %v239, %v598
    %600 = vdwg.mxu0
    %v602 = vrot.slane %v599, 6
    %v604 = vadd.f32 %v231, %v602
    %v605 = vxor.u32 %v604, 2147483648
    %v606 = vmul.f32 %v605, 1.442695
    %v607 = vpow.pop %v606
    %v608 = vadd.f32 %v607, 1.0
    %v609 = vrcp.pop %v608
    %v610 = vmul.f32 %v608, %v609
    %v611 = vsub.f32 1.0, %v610
    %v612 = vmul.f32 %v609, %v611
    %v613 = vadd.f32 %v609, %v612
    %vm614 = vweird.f32 %v608
    %vm615 = vweird.f32 %v609
    %vm616 = vmor %vm614, %vm615
    %v617 = vsel %vm616, %v609, %v613
    %v618 = vand.u32 2147483647, %v608
    %vm619 = vcmp.eq.f32.partialorder %v618, 8.507059e+37
    %v620 = vand.u32 %v608, 2147483648
    %v621 = vor.u32 1.1754944e-38, %v620
    %v622 = vsel %vm619, %v621, %v617
    %v623 = vmul.f32 1.0, %v622
    %624 = vrot.lane.b32.xlu0 %v602, 64
    %v625 = vpop.permute.xlu0 %624
    %v627 = vmul.f32 %v623, %v625
    %629 = vrot.lane.b32.xlu0 %v627, 64
    %v630 = vpop.permute.xlu0 %629
    %v632 = vadd.f32 %v231, %v630
    %v633 = vtanh.pop %v632
    %v634 = vsub.f32 1.0, %v623
    %636 = vrot.lane.b32.xlu0 %v633, 96
    %v637 = vpop.permute.xlu0 %636
    %v639 = vmul.f32 %v634, %v637
    %v640 = vrot.slane %v575, 6
    %v642 = vmul.f32 %v623, %v640
    %v643 = vadd.f32 %v639, %v642
    %v645 = vrot.slane %v643, 2
    %646 = vrot.lane.b32.xlu0 %v645, 96
    %v647 = vpop.permute.xlu0 %646
    %v648 = vsel %vm241, %v647, 0
    %650 = vmatpush.msra.mxu0 0.0
    %651 = vmatpush.msra.mxu0 0.0
    %652 = vmatpush.msra.mxu0 0.0
    %653 = vmatpush.msra.mxu0 0.0
    %654 = vmatpush.msra.mxu0 0.0
    %655 = vmatpush.msra.mxu0 0.0
    %656 = vmatpush.msra.mxu0 0.0
    %657 = vmatpush.msra.mxu0 0.0
    %658 = vmatpush.msra.mxu0 0.0
    %659 = vmatpush.msra.mxu0 0.0
    %660 = vmatpush.msra.mxu0 0.0
    %661 = vmatpush.msra.mxu0 0.0
    %662 = vmatpush.msra.mxu0 %v236
    %663 = vmatpush.msra.mxu0 %v235
    %664 = vmatpush.msra.mxu0 %v234
    %665 = vmatpush.msra.mxu0 %v233
    %666 = vmatmul.f32.gmra.mxu0 %v648
    %v667 = vpop.f32.mrf.mxu0
    %v668 = vadd.f32 %v239, %v667
    %669 = vdwg.mxu0
    %v671 = vrot.slane %v668, 4
    %v673 = vadd.f32 %v231, %v671
    %v674 = vxor.u32 %v673, 2147483648
    %v675 = vmul.f32 %v674, 1.442695
    %v676 = vpow.pop %v675
    %v677 = vadd.f32 %v676, 1.0
    %v678 = vrcp.pop %v677
    %v679 = vmul.f32 %v677, %v678
    %v680 = vsub.f32 1.0, %v679
    %v681 = vmul.f32 %v678, %v680
    %v682 = vadd.f32 %v678, %v681
    %vm683 = vweird.f32 %v677
    %vm684 = vweird.f32 %v678
    %vm685 = vmor %vm683, %vm684
    %v686 = vsel %vm685, %v678, %v682
    %v687 = vand.u32 2147483647, %v677
    %vm688 = vcmp.eq.f32.partialorder %v687, 8.507059e+37
    %v689 = vand.u32 %v677, 2147483648
    %v690 = vor.u32 1.1754944e-38, %v689
    %v691 = vsel %vm688, %v690, %v686
    %v692 = vmul.f32 1.0, %v691
    %693 = vrot.lane.b32.xlu0 %v671, 64
    %v694 = vpop.permute.xlu0 %693
    %v696 = vmul.f32 %v692, %v694
    %698 = vrot.lane.b32.xlu0 %v696, 64
    %v699 = vpop.permute.xlu0 %698
    %v701 = vadd.f32 %v231, %v699
    %v702 = vtanh.pop %v701
    %v703 = vsub.f32 1.0, %v692
    %705 = vrot.lane.b32.xlu0 %v702, 96
    %v706 = vpop.permute.xlu0 %705
    %v708 = vmul.f32 %v703, %v706
    %v709 = vrot.slane %v643, 6
    %v711 = vmul.f32 %v692, %v709
    %v712 = vadd.f32 %v708, %v711
    %v714 = vrot.slane %v712, 4
    %715 = vrot.lane.b32.xlu0 %v714, 96
    %v716 = vpop.permute.xlu0 %715
    %v717 = vsel %vm241, %v716, 0
    %719 = vmatpush.msra.mxu0 0.0
    %720 = vmatpush.msra.mxu0 0.0
    %721 = vmatpush.msra.mxu0 0.0
    %722 = vmatpush.msra.mxu0 0.0
    %723 = vmatpush.msra.mxu0 0.0
    %724 = vmatpush.msra.mxu0 0.0
    %725 = vmatpush.msra.mxu0 0.0
    %726 = vmatpush.msra.mxu0 0.0
    %727 = vmatpush.msra.mxu0 0.0
    %728 = vmatpush.msra.mxu0 0.0
    %729 = vmatpush.msra.mxu0 0.0
    %730 = vmatpush.msra.mxu0 0.0
    %731 = vmatpush.msra.mxu0 %v236
    %732 = vmatpush.msra.mxu0 %v235
    %733 = vmatpush.msra.mxu0 %v234
    %734 = vmatpush.msra.mxu0 %v233
    %735 = vmatmul.f32.gmra.mxu0 %v717
    %v736 = vpop.f32.mrf.mxu0
    %v737 = vadd.f32 %v239, %v736
    %738 = vdwg.mxu0
    %v740 = vrot.slane %v737, 2
    %v742 = vadd.f32 %v231, %v740
    %v743 = vxor.u32 %v742, 2147483648
    %v744 = vmul.f32 %v743, 1.442695
    %v745 = vpow.pop %v744
    %v746 = vadd.f32 %v745, 1.0
    %v747 = vrcp.pop %v746
    %v748 = vmul.f32 %v746, %v747
    %v749 = vsub.f32 1.0, %v748
    %v750 = vmul.f32 %v747, %v749
    %v751 = vadd.f32 %v747, %v750
    %vm752 = vweird.f32 %v746
    %vm753 = vweird.f32 %v747
    %vm754 = vmor %vm752, %vm753
    %v755 = vsel %vm754, %v747, %v751
    %v756 = vand.u32 2147483647, %v746
    %vm757 = vcmp.eq.f32.partialorder %v756, 8.507059e+37
    %v758 = vand.u32 %v746, 2147483648
    %v759 = vor.u32 1.1754944e-38, %v758
    %v760 = vsel %vm757, %v759, %v755
    %v761 = vmul.f32 1.0, %v760
    %762 = vrot.lane.b32.xlu0 %v740, 64
    %v763 = vpop.permute.xlu0 %762
    %v765 = vmul.f32 %v761, %v763
    %767 = vrot.lane.b32.xlu0 %v765, 64
    %v768 = vpop.permute.xlu0 %767
    %v770 = vadd.f32 %v231, %v768
    %v771 = vtanh.pop %v770
    %v772 = vsub.f32 1.0, %v761
    %774 = vrot.lane.b32.xlu0 %v771, 96
    %v775 = vpop.permute.xlu0 %774
    %v777 = vmul.f32 %v772, %v775
    %v778 = vrot.slane %v712, 6
    %v780 = vmul.f32 %v761, %v778
    %v781 = vadd.f32 %v777, %v780
    %v782 = vld [vmem:[%s3] sm:$0xff]
    %v783 = vld [vmem:[%s3 + $0x8] sm:$0xff]
    %v784 = vmul.f32 %v782, %v782
    %v785 = vmul.f32 %v783, %v783
    %v786 = vsel %vm61, %v784, 0.0
    %787 = vadd.xlane.f32.xlu0 %v786
    %v788 = vpop.xlane.xlu0 %787
    %v789 = vsel %vm61, %v785, 0.0
    %790 = vadd.xlane.f32.xlu0 %v789
    %v791 = vpop.xlane.xlu0 %790
    %v792 = vrsqrt.pop %v788
    %v793 = vmul.f32 %v792, %v788
    %v794 = vmul.f32 %v793, %v792
    %v795 = vmul.f32 0.5, %v794
    %v796 = vsub.f32 1.5, %v795
    %v797 = vmul.f32 %v792, %v796
    %v798 = vmul.f32 %v788, %v797
    %vm799 = vcmp.eq.f32.partialorder %v788, inf
    %v800 = vsel %vm799, %v788, %v798
    %vm801 = vcmp.eq.f32.partialorder %v788, 0.0
    %v802 = vand.u32 %v788, 2147483648
    %v803 = vsel %vm801, %v802, %v800
    %v804 = vrsqrt.pop %v791
    %v805 = vmul.f32 %v804, %v791
    %v806 = vmul.f32 %v805, %v804
    %v807 = vmul.f32 0.5, %v806
    %v808 = vsub.f32 1.5, %v807
    %v809 = vmul.f32 %v804, %v808
    %v810 = vmul.f32 %v791, %v809
    %vm811 = vcmp.eq.f32.partialorder %v791, inf
    %v812 = vsel %vm811, %v791, %v810
    %vm813 = vcmp.eq.f32.partialorder %v791, 0.0
    %v814 = vand.u32 %v791, 2147483648
    %v815 = vsel %vm813, %v814, %v812
    %vm816 = vcmp.gt.f32.partialorder %v803, 1.0
    %vm817 = vcmp.gt.f32.partialorder %v815, 1.0
    %v818 = vadd.f32 %v803, 1e-07
    %v819 = vadd.f32 %v815, 1e-07
    %v820 = vrcp.pop %v818
    %v821 = vmul.f32 %v818, %v820
    %v822 = vsub.f32 1.0, %v821
    %v823 = vmul.f32 %v820, %v822
    %v824 = vadd.f32 %v820, %v823
    %vm825 = vweird.f32 %v818
    %vm826 = vweird.f32 %v820
    %vm827 = vmor %vm825, %vm826
    %v828 = vsel %vm827, %v820, %v824
    %v829 = vand.u32 2147483647, %v818
    %vm830 = vcmp.eq.f32.partialorder %v829, 8.507059e+37
    %v831 = vand.u32 %v818, 2147483648
    %v832 = vor.u32 1.1754944e-38, %v831
    %v833 = vsel %vm830, %v832, %v828
    %v834 = vmul.f32 1.0, %v833
    %v835 = vrcp.pop %v819
    %v836 = vmul.f32 %v819, %v835
    %v837 = vsub.f32 1.0, %v836
    %v838 = vmul.f32 %v835, %v837
    %v839 = vadd.f32 %v835, %v838
    %vm840 = vweird.f32 %v819
    %vm841 = vweird.f32 %v835
    %vm842 = vmor %vm840, %vm841
    %v843 = vsel %vm842, %v835, %v839
    %v844 = vand.u32 2147483647, %v819
    %vm845 = vcmp.eq.f32.partialorder %v844, 8.507059e+37
    %v846 = vand.u32 %v819, 2147483648
    %v847 = vor.u32 1.1754944e-38, %v846
    %v848 = vsel %vm845, %v847, %v843
    %v849 = vmul.f32 1.0, %v848
    %v850 = vsel %vm816, %v834, 1.0
    %v851 = vsel %vm817, %v849, 1.0
    %v852 = vmul.f32 %v782, %v850
    %v853 = vmul.f32 %v783, %v851
    %854 = vst.msk [vmem:[#allocation2] sm:$0xff] %vm61, %v852
    %855 = vst.msk [vmem:[#allocation2 + $0x8] sm:$0xff] %vm61, %v853
    %s856 = sld [smem:[#allocation7]]
    %s857 = scalar_lea.vmem [#allocation2], %s856
    %v858 = vld [vmem:[%s857] sm:$0x1]
    %859 = vst.msk [vmem:[#allocation3] sm:$0x1] %vm135, %v858
    %s860 = sld [smem:[#allocation7 + $0x80]]
    %s861 = scalar_lea.vmem [#allocation2], %s860
    %v862 = vld [vmem:[%s861] sm:$0x1]
    %863 = vst.msk [vmem:[#allocation3 + $0x1] sm:$0x1] %vm135, %v862
    %s864 = sld [smem:[#allocation7 + $0x1]]
    %s865 = scalar_lea.vmem [#allocation2], %s864
    %v866 = vld [vmem:[%s865] sm:$0x1]
    %867 = vst.msk [vmem:[#allocation3 + $0x2] sm:$0x1] %vm135, %v866
    %s868 = sld [smem:[#allocation7 + $0x81]]
    %s869 = scalar_lea.vmem [#allocation2], %s868
    %v870 = vld [vmem:[%s869] sm:$0x1]
    %871 = vst.msk [vmem:[#allocation3 + $0x3] sm:$0x1] %vm135, %v870
    %s872 = sld [smem:[#allocation7 + $0x2]]
    %s873 = scalar_lea.vmem [#allocation2], %s872
    %v874 = vld [vmem:[%s873] sm:$0x1]
    %875 = vst.msk [vmem:[#allocation3 + $0x4] sm:$0x1] %vm135, %v874
    %s876 = sld [smem:[#allocation7 + $0x82]]
    %s877 = scalar_lea.vmem [#allocation2], %s876
    %v878 = vld [vmem:[%s877] sm:$0x1]
    %879 = vst.msk [vmem:[#allocation3 + $0x5] sm:$0x1] %vm135, %v878
    %s880 = sld [smem:[#allocation7 + $0x3]]
    %s881 = scalar_lea.vmem [#allocation2], %s880
    %v882 = vld [vmem:[%s881] sm:$0x1]
    %883 = vst.msk [vmem:[#allocation3 + $0x6] sm:$0x1] %vm135, %v882
    %s884 = sld [smem:[#allocation7 + $0x83]]
    %s885 = scalar_lea.vmem [#allocation2], %s884
    %v886 = vld [vmem:[%s885] sm:$0x1]
    %887 = vst.msk [vmem:[#allocation3 + $0x7] sm:$0x1] %vm135, %v886
    %s888 = sld [smem:[#allocation7 + $0x4]]
    %s889 = scalar_lea.vmem [#allocation2], %s888
    %v890 = vld [vmem:[%s889] sm:$0x1]
    %891 = vst.msk [vmem:[#allocation3 + $0x8] sm:$0x1] %vm135, %v890
    %s892 = sld [smem:[#allocation7 + $0x84]]
    %s893 = scalar_lea.vmem [#allocation2], %s892
    %v894 = vld [vmem:[%s893] sm:$0x1]
    %895 = vst.msk [vmem:[#allocation3 + $0x9] sm:$0x1] %vm135, %v894
    %s896 = sld [smem:[#allocation7 + $0x5]]
    %s897 = scalar_lea.vmem [#allocation2], %s896
    %v898 = vld [vmem:[%s897] sm:$0x1]
    %899 = vst.msk [vmem:[#allocation3 + $0xa] sm:$0x1] %vm135, %v898
    %s900 = sld [smem:[#allocation7 + $0x85]]
    %s901 = scalar_lea.vmem [#allocation2], %s900
    %v902 = vld [vmem:[%s901] sm:$0x1]
    %903 = vst.msk [vmem:[#allocation3 + $0xb] sm:$0x1] %vm135, %v902
    %s904 = sld [smem:[#allocation7 + $0x6]]
    %s905 = scalar_lea.vmem [#allocation2], %s904
    %v906 = vld [vmem:[%s905] sm:$0x1]
    %907 = vst.msk [vmem:[#allocation3 + $0xc] sm:$0x1] %vm135, %v906
    %s908 = sld [smem:[#allocation7 + $0x86]]
    %s909 = scalar_lea.vmem [#allocation2], %s908
    %v910 = vld [vmem:[%s909] sm:$0x1]
    %911 = vst.msk [vmem:[#allocation3 + $0xd] sm:$0x1] %vm135, %v910
    %s912 = sld [smem:[#allocation7 + $0x7]]
    %s913 = scalar_lea.vmem [#allocation2], %s912
    %v914 = vld [vmem:[%s913] sm:$0x1]
    %915 = vst.msk [vmem:[#allocation3 + $0xe] sm:$0x1] %vm135, %v914
    %s916 = sld [smem:[#allocation7 + $0x87]]
    %s917 = scalar_lea.vmem [#allocation2], %s916
    %v918 = vld [vmem:[%s917] sm:$0x1]
    %919 = vst.msk [vmem:[#allocation3 + $0xf] sm:$0x1] %vm135, %v918
    %v920 = vld [vmem:[#allocation3] sm:$0xff]
    %v921 = vld [vmem:[#allocation3 + $0x8] sm:$0xff]
    %v922 = vld [vmem:[%s8] sm:$0xff]
    %v923 = vld [vmem:[%s10] sm:$0x1]
    %v925 = vperm.slane %v923, 0
    %v928 = vsel %vm61, %v920, 0
    %v931 = vsel %vm61, %v921, 0
    %933 = vmatpush.msra.mxu0 0.0
    %934 = vmatpush.msra.mxu0 0.0
    %935 = vmatpush.msra.mxu0 0.0
    %936 = vmatpush.msra.mxu0 0.0
    %937 = vmatpush.msra.mxu0 0.0
    %938 = vmatpush.msra.mxu0 0.0
    %939 = vmatpush.msra.mxu0 0.0
    %940 = vmatpush.msra.mxu0 0.0
    %941 = vmatpush.msra.mxu0 0.0
    %942 = vmatpush.msra.mxu0 0.0
    %943 = vmatpush.msra.mxu0 0.0
    %944 = vmatpush.msra.mxu0 0.0
    %945 = vmatpush.msra.mxu0 0.0
    %946 = vmatpush.msra.mxu0 0.0
    %947 = vmatpush.msra.mxu0 0.0
    %948 = vmatpush.msra.mxu0 %v922
    %949 = vmatmul.f32.gmra.mxu0 %v928
    %v950 = vpop.f32.mrf.mxu0
    %v951 = vadd.f32 %v925, %v950
    %952 = vmatmul.f32.gmra.mxu0 %v931
    %v953 = vpop.f32.mrf.mxu0
    %v954 = vadd.f32 %v925, %v953
    %955 = vdwg.mxu0
    %v956 = vld [vmem:[%s9] sm:$0xff]
    %v957 = vld [vmem:[%s9 + $0x8] sm:$0xff]
    %v958 = vld [vmem:[%s9 + $0x10] sm:$0xff]
    %v959 = vld [vmem:[%s9 + $0x18] sm:$0xff]
    %v960 = vld [vmem:[%s11] sm:$0x1]
    %v962 = vperm.slane %v960, 0
    %v965 = vrot.slane %v781, 6
    %966 = vrot.lane.b32.xlu0 %v965, 96
    %v967 = vpop.permute.xlu0 %966
    %v968 = vsel %vm241, %v967, 0
    %970 = vmatpush.msra.mxu0 0.0
    %971 = vmatpush.msra.mxu0 0.0
    %972 = vmatpush.msra.mxu0 0.0
    %973 = vmatpush.msra.mxu0 0.0
    %974 = vmatpush.msra.mxu0 0.0
    %975 = vmatpush.msra.mxu0 0.0
    %976 = vmatpush.msra.mxu0 0.0
    %977 = vmatpush.msra.mxu0 0.0
    %978 = vmatpush.msra.mxu0 0.0
    %979 = vmatpush.msra.mxu0 0.0
    %980 = vmatpush.msra.mxu0 0.0
    %981 = vmatpush.msra.mxu0 0.0
    %982 = vmatpush.msra.mxu0 %v959
    %983 = vmatpush.msra.mxu0 %v958
    %984 = vmatpush.msra.mxu0 %v957
    %985 = vmatpush.msra.mxu0 %v956
    %986 = vmatmul.f32.gmra.mxu0 %v968
    %v987 = vpop.f32.mrf.mxu0
    %v988 = vadd.f32 %v962, %v987
    %989 = vdwg.mxu0
    %v990 = vadd.f32 %v951, %v988
    %v991 = vxor.u32 %v990, 2147483648
    %v992 = vmul.f32 %v991, 1.442695
    %v993 = vpow.pop %v992
    %v994 = vadd.f32 %v993, 1.0
    %v995 = vrcp.pop %v994
    %v996 = vmul.f32 %v994, %v995
    %v997 = vsub.f32 1.0, %v996
    %v998 = vmul.f32 %v995, %v997
    %v999 = vadd.f32 %v995, %v998
    %vm1000 = vweird.f32 %v994
    %vm1001 = vweird.f32 %v995
    %vm1002 = vmor %vm1000, %vm1001
    %v1003 = vsel %vm1002, %v995, %v999
    %v1004 = vand.u32 2147483647, %v994
    %vm1005 = vcmp.eq.f32.partialorder %v1004, 8.507059e+37
    %v1006 = vand.u32 %v994, 2147483648
    %v1007 = vor.u32 1.1754944e-38, %v1006
    %v1008 = vsel %vm1005, %v1007, %v1003
    %v1009 = vmul.f32 1.0, %v1008
    %1011 = vrot.lane.b32.xlu0 %v988, 64
    %v1012 = vpop.permute.xlu0 %1011
    %v1014 = vmul.f32 %v1009, %v1012
    %1016 = vrot.lane.b32.xlu0 %v1014, 64
    %v1017 = vpop.permute.xlu0 %1016
    %v1019 = vadd.f32 %v951, %v1017
    %v1020 = vtanh.pop %v1019
    %v1021 = vsub.f32 1.0, %v1009
    %1023 = vrot.lane.b32.xlu0 %v1020, 96
    %v1024 = vpop.permute.xlu0 %1023
    %v1026 = vmul.f32 %v1021, %v1024
    %v1028 = vmul.f32 %v1009, %v965
    %v1029 = vadd.f32 %v1026, %v1028
    %1031 = vrot.lane.b32.xlu0 %v1029, 96
    %v1032 = vpop.permute.xlu0 %1031
    %vm1034 = vcmask 254976
    %1035 = vst.msk [vmem:[#allocation4] sm:$0x3] %vm1034, %v1032
    %v1036 = vld [vmem:[%s9] sm:$0xff]
    %v1037 = vld [vmem:[%s9 + $0x8] sm:$0xff]
    %v1038 = vld [vmem:[%s9 + $0x10] sm:$0xff]
    %v1039 = vld [vmem:[%s9 + $0x18] sm:$0xff]
    %v1040 = vld [vmem:[%s11] sm:$0x1]
    %v1042 = vperm.slane %v1040, 0
    %v1044 = vsel %vm241, %v1032, 0
    %1046 = vmatpush.msra.mxu0 0.0
    %1047 = vmatpush.msra.mxu0 0.0
    %1048 = vmatpush.msra.mxu0 0.0
    %1049 = vmatpush.msra.mxu0 0.0
    %1050 = vmatpush.msra.mxu0 0.0
    %1051 = vmatpush.msra.mxu0 0.0
    %1052 = vmatpush.msra.mxu0 0.0
    %1053 = vmatpush.msra.mxu0 0.0
    %1054 = vmatpush.msra.mxu0 0.0
    %1055 = vmatpush.msra.mxu0 0.0
    %1056 = vmatpush.msra.mxu0 0.0
    %1057 = vmatpush.msra.mxu0 0.0
    %1058 = vmatpush.msra.mxu0 %v1039
    %1059 = vmatpush.msra.mxu0 %v1038
    %1060 = vmatpush.msra.mxu0 %v1037
    %1061 = vmatpush.msra.mxu0 %v1036
    %1062 = vmatmul.f32.gmra.mxu0 %v1044
    %v1063 = vpop.f32.mrf.mxu0
    %v1064 = vadd.f32 %v1042, %v1063
    %1065 = vdwg.mxu0
    %v1067 = vrot.slane %v1064, 6
    %v1069 = vadd.f32 %v951, %v1067
    %v1070 = vxor.u32 %v1069, 2147483648
    %v1071 = vmul.f32 %v1070, 1.442695
    %v1072 = vpow.pop %v1071
    %v1073 = vadd.f32 %v1072, 1.0
    %v1074 = vrcp.pop %v1073
    %v1075 = vmul.f32 %v1073, %v1074
    %v1076 = vsub.f32 1.0, %v1075
    %v1077 = vmul.f32 %v1074, %v1076
    %v1078 = vadd.f32 %v1074, %v1077
    %vm1079 = vweird.f32 %v1073
    %vm1080 = vweird.f32 %v1074
    %vm1081 = vmor %vm1079, %vm1080
    %v1082 = vsel %vm1081, %v1074, %v1078
    %v1083 = vand.u32 2147483647, %v1073
    %vm1084 = vcmp.eq.f32.partialorder %v1083, 8.507059e+37
    %v1085 = vand.u32 %v1073, 2147483648
    %v1086 = vor.u32 1.1754944e-38, %v1085
    %v1087 = vsel %vm1084, %v1086, %v1082
    %v1088 = vmul.f32 1.0, %v1087
    %1089 = vrot.lane.b32.xlu0 %v1067, 64
    %v1090 = vpop.permute.xlu0 %1089
    %v1092 = vmul.f32 %v1088, %v1090
    %1094 = vrot.lane.b32.xlu0 %v1092, 64
    %v1095 = vpop.permute.xlu0 %1094
    %v1097 = vadd.f32 %v951, %v1095
    %v1098 = vtanh.pop %v1097
    %v1099 = vsub.f32 1.0, %v1088
    %1101 = vrot.lane.b32.xlu0 %v1098, 96
    %v1102 = vpop.permute.xlu0 %1101
    %v1104 = vmul.f32 %v1099, %v1102
    %v1105 = vrot.slane %v1029, 6
    %v1107 = vmul.f32 %v1088, %v1105
    %v1108 = vadd.f32 %v1104, %v1107
    %1110 = vst.sshfl [vmem:[#allocation1] sm:$0xff pattern:$0x73625140] %v1108
    %s1111 = scalar_lea.vmem [#allocation1], 1
    %v1112 = vld [vmem:[%s1111] ss:$4 sm:$0xff]
    %vm1114 = vcmask 517376
    %1115 = vst.msk [vmem:[#allocation4] sm:$0x3] %vm1114, %v1112
    %v1116 = vld [vmem:[%s9] sm:$0xff]
    %v1117 = vld [vmem:[%s9 + $0x8] sm:$0xff]
    %v1118 = vld [vmem:[%s9 + $0x10] sm:$0xff]
    %v1119 = vld [vmem:[%s9 + $0x18] sm:$0xff]
    %v1120 = vld [vmem:[%s11] sm:$0x1]
    %v1122 = vperm.slane %v1120, 0
    %v1124 = vrot.slane %v1108, 2
    %1125 = vrot.lane.b32.xlu0 %v1124, 96
    %v1126 = vpop.permute.xlu0 %1125
    %v1127 = vsel %vm241, %v1126, 0
    %1129 = vmatpush.msra.mxu0 0.0
    %1130 = vmatpush.msra.mxu0 0.0
    %1131 = vmatpush.msra.mxu0 0.0
    %1132 = vmatpush.msra.mxu0 0.0
    %1133 = vmatpush.msra.mxu0 0.0
    %1134 = vmatpush.msra.mxu0 0.0
    %1135 = vmatpush.msra.mxu0 0.0
    %1136 = vmatpush.msra.mxu0 0.0
    %1137 = vmatpush.msra.mxu0 0.0
    %1138 = vmatpush.msra.mxu0 0.0
    %1139 = vmatpush.msra.mxu0 0.0
    %1140 = vmatpush.msra.mxu0 0.0
    %1141 = vmatpush.msra.mxu0 %v1119
    %1142 = vmatpush.msra.mxu0 %v1118
    %1143 = vmatpush.msra.mxu0 %v1117
    %1144 = vmatpush.msra.mxu0 %v1116
    %1145 = vmatmul.f32.gmra.mxu0 %v1127
    %v1146 = vpop.f32.mrf.mxu0
    %v1147 = vadd.f32 %v1122, %v1146
    %1148 = vdwg.mxu0
    %v1150 = vrot.slane %v1147, 4
    %v1152 = vadd.f32 %v951, %v1150
    %v1153 = vxor.u32 %v1152, 2147483648
    %v1154 = vmul.f32 %v1153, 1.442695
    %v1155 = vpow.pop %v1154
    %v1156 = vadd.f32 %v1155, 1.0
    %v1157 = vrcp.pop %v1156
    %v1158 = vmul.f32 %v1156, %v1157
    %v1159 = vsub.f32 1.0, %v1158
    %v1160 = vmul.f32 %v1157, %v1159
    %v1161 = vadd.f32 %v1157, %v1160
    %vm1162 = vweird.f32 %v1156
    %vm1163 = vweird.f32 %v1157
    %vm1164 = vmor %vm1162, %vm1163
    %v1165 = vsel %vm1164, %v1157, %v1161
    %v1166 = vand.u32 2147483647, %v1156
    %vm1167 = vcmp.eq.f32.partialorder %v1166, 8.507059e+37
    %v1168 = vand.u32 %v1156, 2147483648
    %v1169 = vor.u32 1.1754944e-38, %v1168
    %v1170 = vsel %vm1167, %v1169, %v1165
    %v1171 = vmul.f32 1.0, %v1170
    %1172 = vrot.lane.b32.xlu0 %v1150, 64
    %v1173 = vpop.permute.xlu0 %1172
    %v1175 = vmul.f32 %v1171, %v1173
    %1177 = vrot.lane.b32.xlu0 %v1175, 64
    %v1178 = vpop.permute.xlu0 %1177
    %v1180 = vadd.f32 %v951, %v1178
    %v1181 = vtanh.pop %v1180
    %v1182 = vsub.f32 1.0, %v1171
    %1184 = vrot.lane.b32.xlu0 %v1181, 96
    %v1185 = vpop.permute.xlu0 %1184
    %v1187 = vmul.f32 %v1182, %v1185
    %v1188 = vrot.slane %v1108, 6
    %v1190 = vmul.f32 %v1171, %v1188
    %v1191 = vadd.f32 %v1187, %v1190
    %1193 = vst.sshfl [vmem:[#allocation1] sm:$0xff pattern:$0x73625140] %v1191
    %s1194 = scalar_lea.vmem [#allocation1], 2
    %v1195 = vld [vmem:[%s1194] ss:$4 sm:$0xff]
    %1196 = vrot.lane.b32.xlu0 %v1195, 32
    %v1197 = vpop.permute.xlu0 %1196
    %vm1199 = vcmask 779776
    %1200 = vst.msk [vmem:[#allocation4] sm:$0x3] %vm1199, %v1197
    %v1201 = vld [vmem:[%s9] sm:$0xff]
    %v1202 = vld [vmem:[%s9 + $0x8] sm:$0xff]
    %v1203 = vld [vmem:[%s9 + $0x10] sm:$0xff]
    %v1204 = vld [vmem:[%s9 + $0x18] sm:$0xff]
    %v1205 = vld [vmem:[%s11] sm:$0x1]
    %v1207 = vperm.slane %v1205, 0
    %v1209 = vrot.slane %v1191, 4
    %1210 = vrot.lane.b32.xlu0 %v1209, 96
    %v1211 = vpop.permute.xlu0 %1210
    %v1212 = vsel %vm241, %v1211, 0
    %1214 = vmatpush.msra.mxu0 0.0
    %1215 = vmatpush.msra.mxu0 0.0
    %1216 = vmatpush.msra.mxu0 0.0
    %1217 = vmatpush.msra.mxu0 0.0
    %1218 = vmatpush.msra.mxu0 0.0
    %1219 = vmatpush.msra.mxu0 0.0
    %1220 = vmatpush.msra.mxu0 0.0
    %1221 = vmatpush.msra.mxu0 0.0
    %1222 = vmatpush.msra.mxu0 0.0
    %1223 = vmatpush.msra.mxu0 0.0
    %1224 = vmatpush.msra.mxu0 0.0
    %1225 = vmatpush.msra.mxu0 0.0
    %1226 = vmatpush.msra.mxu0 %v1204
    %1227 = vmatpush.msra.mxu0 %v1203
    %1228 = vmatpush.msra.mxu0 %v1202
    %1229 = vmatpush.msra.mxu0 %v1201
    %1230 = vmatmul.f32.gmra.mxu0 %v1212
    %v1231 = vpop.f32.mrf.mxu0
    %v1232 = vadd.f32 %v1207, %v1231
    %1233 = vdwg.mxu0
    %v1235 = vrot.slane %v1232, 2
    %v1237 = vadd.f32 %v951, %v1235
    %v1238 = vxor.u32 %v1237, 2147483648
    %v1239 = vmul.f32 %v1238, 1.442695
    %v1240 = vpow.pop %v1239
    %v1241 = vadd.f32 %v1240, 1.0
    %v1242 = vrcp.pop %v1241
    %v1243 = vmul.f32 %v1241, %v1242
    %v1244 = vsub.f32 1.0, %v1243
    %v1245 = vmul.f32 %v1242, %v1244
    %v1246 = vadd.f32 %v1242, %v1245
    %vm1247 = vweird.f32 %v1241
    %vm1248 = vweird.f32 %v1242
    %vm1249 = vmor %vm1247, %vm1248
    %v1250 = vsel %vm1249, %v1242, %v1246
    %v1251 = vand.u32 2147483647, %v1241
    %vm1252 = vcmp.eq.f32.partialorder %v1251, 8.507059e+37
    %v1253 = vand.u32 %v1241, 2147483648
    %v1254 = vor.u32 1.1754944e-38, %v1253
    %v1255 = vsel %vm1252, %v1254, %v1250
    %v1256 = vmul.f32 1.0, %v1255
    %1257 = vrot.lane.b32.xlu0 %v1235, 64
    %v1258 = vpop.permute.xlu0 %1257
    %v1260 = vmul.f32 %v1256, %v1258
    %1262 = vrot.lane.b32.xlu0 %v1260, 64
    %v1263 = vpop.permute.xlu0 %1262
    %v1265 = vadd.f32 %v951, %v1263
    %v1266 = vtanh.pop %v1265
    %v1267 = vsub.f32 1.0, %v1256
    %1269 = vrot.lane.b32.xlu0 %v1266, 96
    %v1270 = vpop.permute.xlu0 %1269
    %v1272 = vmul.f32 %v1267, %v1270
    %v1273 = vrot.slane %v1191, 6
    %v1275 = vmul.f32 %v1256, %v1273
    %v1276 = vadd.f32 %v1272, %v1275
    %1278 = vst.sshfl [vmem:[#allocation1] sm:$0xff pattern:$0x73625140] %v1276
    %s1279 = scalar_lea.vmem [#allocation1], 3
    %v1280 = vld [vmem:[%s1279] ss:$4 sm:$0xff]
    %1281 = vrot.lane.b32.xlu0 %v1280, 64
    %v1282 = vpop.permute.xlu0 %1281
    %vm1284 = vcmask 1042176
    %1285 = vst.msk [vmem:[#allocation4] sm:$0x3] %vm1284, %v1282
    %v1286 = vld [vmem:[%s9] sm:$0xff]
    %v1287 = vld [vmem:[%s9 + $0x8] sm:$0xff]
    %v1288 = vld [vmem:[%s9 + $0x10] sm:$0xff]
    %v1289 = vld [vmem:[%s9 + $0x18] sm:$0xff]
    %v1290 = vld [vmem:[%s11] sm:$0x1]
    %v1292 = vperm.slane %v1290, 0
    %v1294 = vrot.slane %v1276, 6
    %1295 = vrot.lane.b32.xlu0 %v1294, 96
    %v1296 = vpop.permute.xlu0 %1295
    %v1297 = vsel %vm241, %v1296, 0
    %1299 = vmatpush.msra.mxu0 0.0
    %1300 = vmatpush.msra.mxu0 0.0
    %1301 = vmatpush.msra.mxu0 0.0
    %1302 = vmatpush.msra.mxu0 0.0
    %1303 = vmatpush.msra.mxu0 0.0
    %1304 = vmatpush.msra.mxu0 0.0
    %1305 = vmatpush.msra.mxu0 0.0
    %1306 = vmatpush.msra.mxu0 0.0
    %1307 = vmatpush.msra.mxu0 0.0
    %1308 = vmatpush.msra.mxu0 0.0
    %1309 = vmatpush.msra.mxu0 0.0
    %1310 = vmatpush.msra.mxu0 0.0
    %1311 = vmatpush.msra.mxu0 %v1289
    %1312 = vmatpush.msra.mxu0 %v1288
    %1313 = vmatpush.msra.mxu0 %v1287
    %1314 = vmatpush.msra.mxu0 %v1286
    %1315 = vmatmul.f32.gmra.mxu0 %v1297
    %v1316 = vpop.f32.mrf.mxu0
    %v1317 = vadd.f32 %v1292, %v1316
    %1318 = vdwg.mxu0
    %v1319 = vadd.f32 %v954, %v1317
    %v1320 = vxor.u32 %v1319, 2147483648
    %v1321 = vmul.f32 %v1320, 1.442695
    %v1322 = vpow.pop %v1321
    %v1323 = vadd.f32 %v1322, 1.0
    %v1324 = vrcp.pop %v1323
    %v1325 = vmul.f32 %v1323, %v1324
    %v1326 = vsub.f32 1.0, %v1325
    %v1327 = vmul.f32 %v1324, %v1326
    %v1328 = vadd.f32 %v1324, %v1327
    %vm1329 = vweird.f32 %v1323
    %vm1330 = vweird.f32 %v1324
    %vm1331 = vmor %vm1329, %vm1330
    %v1332 = vsel %vm1331, %v1324, %v1328
    %v1333 = vand.u32 2147483647, %v1323
    %vm1334 = vcmp.eq.f32.partialorder %v1333, 8.507059e+37
    %v1335 = vand.u32 %v1323, 2147483648
    %v1336 = vor.u32 1.1754944e-38, %v1335
    %v1337 = vsel %vm1334, %v1336, %v1332
    %v1338 = vmul.f32 1.0, %v1337
    %1340 = vrot.lane.b32.xlu0 %v1317, 64
    %v1341 = vpop.permute.xlu0 %1340
    %v1343 = vmul.f32 %v1338, %v1341
    %1345 = vrot.lane.b32.xlu0 %v1343, 64
    %v1346 = vpop.permute.xlu0 %1345
    %v1348 = vadd.f32 %v954, %v1346
    %v1349 = vtanh.pop %v1348
    %v1350 = vsub.f32 1.0, %v1338
    %1352 = vrot.lane.b32.xlu0 %v1349, 96
    %v1353 = vpop.permute.xlu0 %1352
    %v1355 = vmul.f32 %v1350, %v1353
    %v1357 = vmul.f32 %v1338, %v1294
    %v1358 = vadd.f32 %v1355, %v1357
    %1360 = vrot.lane.b32.xlu0 %v1358, 96
    %v1361 = vpop.permute.xlu0 %1360
    %1363 = vst.msk [vmem:[#allocation4 + $0x2] sm:$0x3] %vm1034, %v1361
    %v1364 = vld [vmem:[%s9] sm:$0xff]
    %v1365 = vld [vmem:[%s9 + $0x8] sm:$0xff]
    %v1366 = vld [vmem:[%s9 + $0x10] sm:$0xff]
    %v1367 = vld [vmem:[%s9 + $0x18] sm:$0xff]
    %v1368 = vld [vmem:[%s11] sm:$0x1]
    %v1370 = vperm.slane %v1368, 0
    %v1372 = vsel %vm241, %v1361, 0
    %1374 = vmatpush.msra.mxu0 0.0
    %1375 = vmatpush.msra.mxu0 0.0
    %1376 = vmatpush.msra.mxu0 0.0
    %1377 = vmatpush.msra.mxu0 0.0
    %1378 = vmatpush.msra.mxu0 0.0
    %1379 = vmatpush.msra.mxu0 0.0
    %1380 = vmatpush.msra.mxu0 0.0
    %1381 = vmatpush.msra.mxu0 0.0
    %1382 = vmatpush.msra.mxu0 0.0
    %1383 = vmatpush.msra.mxu0 0.0
    %1384 = vmatpush.msra.mxu0 0.0
    %1385 = vmatpush.msra.mxu0 0.0
    %1386 = vmatpush.msra.mxu0 %v1367
    %1387 = vmatpush.msra.mxu0 %v1366
    %1388 = vmatpush.msra.mxu0 %v1365
    %1389 = vmatpush.msra.mxu0 %v1364
    %1390 = vmatmul.f32.gmra.mxu0 %v1372
    %v1391 = vpop.f32.mrf.mxu0
    %v1392 = vadd.f32 %v1370, %v1391
    %1393 = vdwg.mxu0
    %v1395 = vrot.slane %v1392, 6
    %v1397 = vadd.f32 %v954, %v1395
    %v1398 = vxor.u32 %v1397, 2147483648
    %v1399 = vmul.f32 %v1398, 1.442695
    %v1400 = vpow.pop %v1399
    %v1401 = vadd.f32 %v1400, 1.0
    %v1402 = vrcp.pop %v1401
    %v1403 = vmul.f32 %v1401, %v1402
    %v1404 = vsub.f32 1.0, %v1403
    %v1405 = vmul.f32 %v1402, %v1404
    %v1406 = vadd.f32 %v1402, %v1405
    %vm1407 = vweird.f32 %v1401
    %vm1408 = vweird.f32 %v1402
    %vm1409 = vmor %vm1407, %vm1408
    %v1410 = vsel %vm1409, %v1402, %v1406
    %v1411 = vand.u32 2147483647, %v1401
    %vm1412 = vcmp.eq.f32.partialorder %v1411, 8.507059e+37
    %v1413 = vand.u32 %v1401, 2147483648
    %v1414 = vor.u32 1.1754944e-38, %v1413
    %v1415 = vsel %vm1412, %v1414, %v1410
    %v1416 = vmul.f32 1.0, %v1415
    %1417 = vrot.lane.b32.xlu0 %v1395, 64
    %v1418 = vpop.permute.xlu0 %1417
    %v1420 = vmul.f32 %v1416, %v1418
    %1422 = vrot.lane.b32.xlu0 %v1420, 64
    %v1423 = vpop.permute.xlu0 %1422
    %v1425 = vadd.f32 %v954, %v1423
    %v1426 = vtanh.pop %v1425
    %v1427 = vsub.f32 1.0, %v1416
    %1429 = vrot.lane.b32.xlu0 %v1426, 96
    %v1430 = vpop.permute.xlu0 %1429
    %v1432 = vmul.f32 %v1427, %v1430
    %v1433 = vrot.slane %v1358, 6
    %v1435 = vmul.f32 %v1416, %v1433
    %v1436 = vadd.f32 %v1432, %v1435
    %1438 = vst.sshfl [vmem:[#allocation1] sm:$0xff pattern:$0x73625140] %v1436
    %s1439 = scalar_lea.vmem [#allocation1], 1
    %v1440 = vld [vmem:[%s1439] ss:$4 sm:$0xff]
    %1442 = vst.msk [vmem:[#allocation4 + $0x2] sm:$0x3] %vm1114, %v1440
    %v1443 = vld [vmem:[%s9] sm:$0xff]
    %v1444 = vld [vmem:[%s9 + $0x8] sm:$0xff]
    %v1445 = vld [vmem:[%s9 + $0x10] sm:$0xff]
    %v1446 = vld [vmem:[%s9 + $0x18] sm:$0xff]
    %v1447 = vld [vmem:[%s11] sm:$0x1]
    %v1449 = vperm.slane %v1447, 0
    %v1451 = vrot.slane %v1436, 2
    %1452 = vrot.lane.b32.xlu0 %v1451, 96
    %v1453 = vpop.permute.xlu0 %1452
    %v1454 = vsel %vm241, %v1453, 0
    %1456 = vmatpush.msra.mxu0 0.0
    %1457 = vmatpush.msra.mxu0 0.0
    %1458 = vmatpush.msra.mxu0 0.0
    %1459 = vmatpush.msra.mxu0 0.0
    %1460 = vmatpush.msra.mxu0 0.0
    %1461 = vmatpush.msra.mxu0 0.0
    %1462 = vmatpush.msra.mxu0 0.0
    %1463 = vmatpush.msra.mxu0 0.0
    %1464 = vmatpush.msra.mxu0 0.0
    %1465 = vmatpush.msra.mxu0 0.0
    %1466 = vmatpush.msra.mxu0 0.0
    %1467 = vmatpush.msra.mxu0 0.0
    %1468 = vmatpush.msra.mxu0 %v1446
    %1469 = vmatpush.msra.mxu0 %v1445
    %1470 = vmatpush.msra.mxu0 %v1444
    %1471 = vmatpush.msra.mxu0 %v1443
    %1472 = vmatmul.f32.gmra.mxu0 %v1454
    %v1473 = vpop.f32.mrf.mxu0
    %v1474 = vadd.f32 %v1449, %v1473
    %1475 = vdwg.mxu0
    %v1477 = vrot.slane %v1474, 4
    %v1479 = vadd.f32 %v954, %v1477
    %v1480 = vxor.u32 %v1479, 2147483648
    %v1481 = vmul.f32 %v1480, 1.442695
    %v1482 = vpow.pop %v1481
    %v1483 = vadd.f32 %v1482, 1.0
    %v1484 = vrcp.pop %v1483
    %v1485 = vmul.f32 %v1483, %v1484
    %v1486 = vsub.f32 1.0, %v1485
    %v1487 = vmul.f32 %v1484, %v1486
    %v1488 = vadd.f32 %v1484, %v1487
    %vm1489 = vweird.f32 %v1483
    %vm1490 = vweird.f32 %v1484
    %vm1491 = vmor %vm1489, %vm1490
    %v1492 = vsel %vm1491, %v1484, %v1488
    %v1493 = vand.u32 2147483647, %v1483
    %vm1494 = vcmp.eq.f32.partialorder %v1493, 8.507059e+37
    %v1495 = vand.u32 %v1483, 2147483648
    %v1496 = vor.u32 1.1754944e-38, %v1495
    %v1497 = vsel %vm1494, %v1496, %v1492
    %v1498 = vmul.f32 1.0, %v1497
    %1499 = vrot.lane.b32.xlu0 %v1477, 64
    %v1500 = vpop.permute.xlu0 %1499
    %v1502 = vmul.f32 %v1498, %v1500
    %1504 = vrot.lane.b32.xlu0 %v1502, 64
    %v1505 = vpop.permute.xlu0 %1504
    %v1507 = vadd.f32 %v954, %v1505
    %v1508 = vtanh.pop %v1507
    %v1509 = vsub.f32 1.0, %v1498
    %1511 = vrot.lane.b32.xlu0 %v1508, 96
    %v1512 = vpop.permute.xlu0 %1511
    %v1514 = vmul.f32 %v1509, %v1512
    %v1515 = vrot.slane %v1436, 6
    %v1517 = vmul.f32 %v1498, %v1515
    %v1518 = vadd.f32 %v1514, %v1517
    %1520 = vst.sshfl [vmem:[#allocation1] sm:$0xff pattern:$0x73625140] %v1518
    %s1521 = scalar_lea.vmem [#allocation1], 2
    %v1522 = vld [vmem:[%s1521] ss:$4 sm:$0xff]
    %1523 = vrot.lane.b32.xlu0 %v1522, 32
    %v1524 = vpop.permute.xlu0 %1523
    %1526 = vst.msk [vmem:[#allocation4 + $0x2] sm:$0x3] %vm1199, %v1524
    %v1527 = vld [vmem:[%s9] sm:$0xff]
    %v1528 = vld [vmem:[%s9 + $0x8] sm:$0xff]
    %v1529 = vld [vmem:[%s9 + $0x10] sm:$0xff]
    %v1530 = vld [vmem:[%s9 + $0x18] sm:$0xff]
    %v1531 = vld [vmem:[%s11] sm:$0x1]
    %v1533 = vperm.slane %v1531, 0
    %v1535 = vrot.slane %v1518, 4
    %1536 = vrot.lane.b32.xlu0 %v1535, 96
    %v1537 = vpop.permute.xlu0 %1536
    %v1538 = vsel %vm241, %v1537, 0
    %1540 = vmatpush.msra.mxu0 0.0
    %1541 = vmatpush.msra.mxu0 0.0
    %1542 = vmatpush.msra.mxu0 0.0
    %1543 = vmatpush.msra.mxu0 0.0
    %1544 = vmatpush.msra.mxu0 0.0
    %1545 = vmatpush.msra.mxu0 0.0
    %1546 = vmatpush.msra.mxu0 0.0
    %1547 = vmatpush.msra.mxu0 0.0
    %1548 = vmatpush.msra.mxu0 0.0
    %1549 = vmatpush.msra.mxu0 0.0
    %1550 = vmatpush.msra.mxu0 0.0
    %1551 = vmatpush.msra.mxu0 0.0
    %1552 = vmatpush.msra.mxu0 %v1530
    %1553 = vmatpush.msra.mxu0 %v1529
    %1554 = vmatpush.msra.mxu0 %v1528
    %1555 = vmatpush.msra.mxu0 %v1527
    %1556 = vmatmul.f32.gmra.mxu0 %v1538
    %v1557 = vpop.f32.mrf.mxu0
    %v1558 = vadd.f32 %v1533, %v1557
    %1559 = vdwg.mxu0
    %v1561 = vrot.slane %v1558, 2
    %v1563 = vadd.f32 %v954, %v1561
    %v1564 = vxor.u32 %v1563, 2147483648
    %v1565 = vmul.f32 %v1564, 1.442695
    %v1566 = vpow.pop %v1565
    %v1567 = vadd.f32 %v1566, 1.0
    %v1568 = vrcp.pop %v1567
    %v1569 = vmul.f32 %v1567, %v1568
    %v1570 = vsub.f32 1.0, %v1569
    %v1571 = vmul.f32 %v1568, %v1570
    %v1572 = vadd.f32 %v1568, %v1571
    %vm1573 = vweird.f32 %v1567
    %vm1574 = vweird.f32 %v1568
    %vm1575 = vmor %vm1573, %vm1574
    %v1576 = vsel %vm1575, %v1568, %v1572
    %v1577 = vand.u32 2147483647, %v1567
    %vm1578 = vcmp.eq.f32.partialorder %v1577, 8.507059e+37
    %v1579 = vand.u32 %v1567, 2147483648
    %v1580 = vor.u32 1.1754944e-38, %v1579
    %v1581 = vsel %vm1578, %v1580, %v1576
    %v1582 = vmul.f32 1.0, %v1581
    %1583 = vrot.lane.b32.xlu0 %v1561, 64
    %v1584 = vpop.permute.xlu0 %1583
    %v1586 = vmul.f32 %v1582, %v1584
    %1588 = vrot.lane.b32.xlu0 %v1586, 64
    %v1589 = vpop.permute.xlu0 %1588
    %v1591 = vadd.f32 %v954, %v1589
    %v1592 = vtanh.pop %v1591
    %v1593 = vsub.f32 1.0, %v1582
    %1595 = vrot.lane.b32.xlu0 %v1592, 96
    %v1596 = vpop.permute.xlu0 %1595
    %v1598 = vmul.f32 %v1593, %v1596
    %v1599 = vrot.slane %v1518, 6
    %v1601 = vmul.f32 %v1582, %v1599
    %v1602 = vadd.f32 %v1598, %v1601
    %1604 = vst.sshfl [vmem:[#allocation1] sm:$0xff pattern:$0x73625140] %v1602
    %s1605 = scalar_lea.vmem [#allocation1], 3
    %v1606 = vld [vmem:[%s1605] ss:$4 sm:$0xff]
    %1607 = vrot.lane.b32.xlu0 %v1606, 64
    %v1608 = vpop.permute.xlu0 %1607
    %1610 = vst.msk [vmem:[#allocation4 + $0x2] sm:$0x3] %vm1284, %v1608
    %v1611 = vld [vmem:[#allocation4] sm:$0xf]
    %v1612 = vld [vmem:[%s12] sm:$0xff]
    %v1613 = vld [vmem:[%s12 + $0x8] sm:$0xff]
    %v1614 = vld [vmem:[%s12 + $0x10] sm:$0xff]
    %v1615 = vld [vmem:[%s12 + $0x18] sm:$0xff]
    %v1616 = vld [vmem:[%s12 + $0x20] sm:$0xff]
    %v1617 = vld [vmem:[%s12 + $0x28] sm:$0xff]
    %v1618 = vld [vmem:[%s12 + $0x30] sm:$0xff]
    %v1619 = vld [vmem:[%s12 + $0x38] sm:$0xff]
    %v1620 = vld [vmem:[%s12 + $0x40] sm:$0xff]
    %v1621 = vld [vmem:[%s12 + $0x48] sm:$0xff]
    %v1622 = vld [vmem:[%s12 + $0x50] sm:$0xff]
    %v1623 = vld [vmem:[%s12 + $0x58] sm:$0xff]
    %v1624 = vld [vmem:[%s12 + $0x60] sm:$0xff]
    %v1625 = vld [vmem:[%s12 + $0x68] sm:$0xff]
    %v1626 = vld [vmem:[%s12 + $0x70] sm:$0xff]
    %v1627 = vld [vmem:[%s12 + $0x78] sm:$0xff]
    %v1628 = vld [vmem:[%s12 + $0x80] sm:$0xff]
    %v1629 = vld [vmem:[%s12 + $0x88] sm:$0xff]
    %v1630 = vld [vmem:[%s12 + $0x90] sm:$0xff]
    %v1631 = vld [vmem:[%s12 + $0x98] sm:$0xff]
    %v1632 = vld [vmem:[%s12 + $0xa0] sm:$0xff]
    %v1633 = vld [vmem:[%s12 + $0xa8] sm:$0xff]
    %v1634 = vld [vmem:[%s12 + $0xb0] sm:$0xff]
    %v1635 = vld [vmem:[%s12 + $0xb8] sm:$0xff]
    %v1636 = vld [vmem:[%s12 + $0xc0] sm:$0xff]
    %v1637 = vld [vmem:[%s12 + $0xc8] sm:$0xff]
    %v1638 = vld [vmem:[%s12 + $0xd0] sm:$0xff]
    %v1639 = vld [vmem:[%s12 + $0xd8] sm:$0xff]
    %v1640 = vld [vmem:[%s12 + $0xe0] sm:$0xff]
    %v1641 = vld [vmem:[%s12 + $0xe8] sm:$0xff]
    %v1642 = vld [vmem:[%s12 + $0xf0] sm:$0xff]
    %v1643 = vld [vmem:[%s12 + $0xf8] sm:$0xff]
    %v1644 = vld [vmem:[%s13] sm:$0x1]
    %v1646 = vperm.slane %v1644, 0
    %1649 = vst [vmem:[#allocation1] ss:$4 sm:$0xff] %v1611
    %v1650 = vld.sshfl [vmem:[#allocation1] sm:$0xff pattern:$0x73625140]
    %v1651 = vld.sshfl [vmem:[#allocation1 + $0x8] sm:$0xff pattern:$0x73625140]
    %1654 = vmatpush.msra.mxu0 %v1627
    %1655 = vmatpush.msra.mxu0 %v1626
    %1656 = vmatpush.msra.mxu0 %v1625
    %1657 = vmatpush.msra.mxu0 %v1624
    %1658 = vmatpush.msra.mxu0 %v1623
    %1659 = vmatpush.msra.mxu0 %v1622
    %1660 = vmatpush.msra.mxu0 %v1621
    %1661 = vmatpush.msra.mxu0 %v1620
    %1662 = vmatpush.msra.mxu0 %v1619
    %1663 = vmatpush.msra.mxu0 %v1618
    %1664 = vmatpush.msra.mxu0 %v1617
    %1665 = vmatpush.msra.mxu0 %v1616
    %1666 = vmatpush.msra.mxu0 %v1615
    %1667 = vmatpush.msra.mxu0 %v1614
    %1668 = vmatpush.msra.mxu0 %v1613
    %1669 = vmatpush.msra.mxu0 %v1612
    %1670 = vmatmul.f32.gmra.mxu0 %v1650
    %v1671 = vpop.f32.mrf.mxu0
    %v1672 = vadd.f32 %v1646, %v1671
    %1673 = vdwg.mxu0
    %1674 = vmatpush.msra.mxu0 %v1643
    %1675 = vmatpush.msra.mxu0 %v1642
    %1676 = vmatpush.msra.mxu0 %v1641
    %1677 = vmatpush.msra.mxu0 %v1640
    %1678 = vmatpush.msra.mxu0 %v1639
    %1679 = vmatpush.msra.mxu0 %v1638
    %1680 = vmatpush.msra.mxu0 %v1637
    %1681 = vmatpush.msra.mxu0 %v1636
    %1682 = vmatpush.msra.mxu0 %v1635
    %1683 = vmatpush.msra.mxu0 %v1634
    %1684 = vmatpush.msra.mxu0 %v1633
    %1685 = vmatpush.msra.mxu0 %v1632
    %1686 = vmatpush.msra.mxu0 %v1631
    %1687 = vmatpush.msra.mxu0 %v1630
    %1688 = vmatpush.msra.mxu0 %v1629
    %1689 = vmatpush.msra.mxu0 %v1628
    %1690 = vmatmul.f32.gmra.mxu0 %v1651
    %v1691 = vpop.f32.mrf.mxu0
    %v1692 = vadd.f32 %v1672, %v1691
    %1693 = vdwg.mxu0
    %vm1694 = vcmask 74752
    %1695 = vst.msk [vmem:[#allocation8] sm:$0x3] %vm1694, %v1692
    // Predicated region
    $region50: #{tpu_custom_call.1} parent=1 // pred_check
      _
    $region51: #{tpu_custom_call.1} parent=1 // pred_check_branch
      %1697 = sbr.rel (0) target = $region53
    $region52: #{tpu_custom_call.1} parent=1 // pred_region
      %1699 = vsyncadd [#allocation9], 0
      %s1701 = sshll.u32 [#allocation8], 4
      %s1702 = int_to_ptr.vmem [resolvable:$true] %s1701
      %s1703 = sshll.u32 %s14, 4
      %s1704 = int_to_ptr.hbm [resolvable:$true] %s1703
      %1706 = dma.vmem_to_hbm [thread:$0]  %s1702, 32, %s1704, [#allocation9]
    $region53: #{tpu_custom_call.1} parent=1 // pred_fallthru
      _
    // Predicated region
    $region54: #{tpu_custom_call.1} parent=1 // pred_check
      _
    $region55: #{tpu_custom_call.1} parent=1 // pred_check_branch
      %1708 = sbr.rel (0) target = $region57
    $region56: #{tpu_custom_call.1} parent=1 // pred_region
      %1710 = dma.done [#allocation9], 32
    $region57: #{tpu_custom_call.1} parent=1 // pred_fallthru
      _
    %1711 = vsyncpa [#allocation9], 1

</llo_original>
